<compile_context>
chip_gen: v5e
topology: v5e:2x2
jax: 0.10.0
libtpu: 0.0.40
codegen_flags: <defaults>
</compile_context>

<pallas_src>
import functools
import math

import jax
import jax.numpy as jnp
from jax.experimental import pallas as pl
from jax.experimental.pallas import tpu as pltpu

FEAT_DIM = 128
HIDDEN = 1024


def _round_up(x, m):
    return (x + m - 1) // m * m


def _nbytes(n_elems, dtype):
    return int(n_elems) * jnp.dtype(dtype).itemsize


def _choose_out_tiling(out_dim):
    """Return (padded output width, lane tile width tn).

    Small outputs (<=2048 after 128-alignment): one lane-dense tile (minimal
    padding, zero per-step overhead).  Large outputs: pad UP to a multiple of
    the tile so tn never drops below 512; prefer tn=1024, which gives an even
    tile count at the default out=6144 (balanced v7x 2-TC split).
    """
    out_128 = _round_up(out_dim, 128)
    if out_128 <= 2048:
        return out_128, out_128
    out_p = _round_up(out_128, 512)
    if out_p % 1024 == 0 and out_p // 1024 >= 2:
        return out_p, 1024
    return out_p, 512


# ----- Stage 1: feat -> relu(fc1) -> relu(fc2) -> h2  (single block) -----------
def fc_hidden_kernel(x_ref, w1_ref, b1_ref, w2_ref, b2_ref, h_ref):
    # Activations are cast to the weight dtype (no-op for f32; bf16 when weight
    # streaming is enabled).  Accumulation is always f32 on the MXU.
    x = x_ref[...]
    h1 = jnp.dot(x.astype(w1_ref.dtype), w1_ref[...],
                 preferred_element_type=jnp.float32) + b1_ref[...]
    h1 = jnp.maximum(h1, 0.0)
    h2 = jnp.dot(h1.astype(w2_ref.dtype), w2_ref[...],
                 preferred_element_type=jnp.float32) + b2_ref[...]
    h2 = jnp.maximum(h2, 0.0)
    h_ref[...] = h2.astype(h_ref.dtype)


# ----- Stage 2: out_tile = h2 @ W3_tile + b3_tile  (N-tiled, pipelined) --------
def fc_out_kernel(h_ref, w3_ref, b3_ref, o_ref):
    o_ref[...] = (
        jnp.dot(h_ref[...].astype(w3_ref.dtype), w3_ref[...],
                preferred_element_type=jnp.float32)
        + b3_ref[...]
    ).astype(o_ref.dtype)


@functools.partial(jax.jit, static_argnames=("num_point",))
def fc_decoder(feat, params, *, num_point):
    """feat: (B, 128) float32 -> (B, num_point, 3) float32."""
    w1, b1, w2, b2, w3, b3 = params
    B = feat.shape[0]
    out_dim = num_point * 3

    # Sublane-align the batch (f32: multiples of 8) so output stores are
    # unmasked vst.  Blocks below keep the full (padded) batch resident; for
    # very large B (>~512) an M grid axis should be added instead.
    Bp = _round_up(B, 8)
    if Bp != B:
        feat = jnp.pad(feat, ((0, Bp - B), (0, 0)))

    # Stage 1: compute the (Bp, 1024) hidden activation exactly once.
    h2 = pl.pallas_call(
        fc_hidden_kernel,
        out_shape=jax.ShapeDtypeStruct((Bp, HIDDEN), jnp.float32),
        cost_estimate=pl.CostEstimate(
            flops=2 * Bp * (FEAT_DIM * HIDDEN + HIDDEN * HIDDEN),
            transcendentals=0,
            bytes_accessed=(_nbytes(Bp * FEAT_DIM, feat.dtype)
                            + _nbytes(FEAT_DIM * HIDDEN, w1.dtype)
                            + _nbytes(HIDDEN, b1.dtype)
                            + _nbytes(HIDDEN * HIDDEN, w2.dtype)
                            + _nbytes(HIDDEN, b2.dtype)
                            + _nbytes(Bp * HIDDEN, jnp.float32)),
        ),
        compiler_params=pltpu.CompilerParams(vmem_limit_bytes=32 << 20),
    )(feat, w1, b1, w2, b2)

    # Stage 2: lane-dense, N-tiled third layer (HBM-streaming of W3).
    out_p_dim, tn = _choose_out_tiling(out_dim)
    if out_p_dim != out_dim:
        w3 = jnp.pad(w3, ((0, 0), (0, out_p_dim - out_dim)))
        b3 = jnp.pad(b3, ((0, 0), (0, out_p_dim - out_dim)))
    grid_n = out_p_dim // tn

    out_p = pl.pallas_call(
        fc_out_kernel,
        out_shape=jax.ShapeDtypeStruct((Bp, out_p_dim), jnp.float32),
        grid=(grid_n,),
        in_specs=[
            pl.BlockSpec((Bp, HIDDEN), lambda j: (0, 0)),   # h2: resident
            pl.BlockSpec((HIDDEN, tn), lambda j: (0, j)),   # W3: streamed, 2-deep
            pl.BlockSpec((1, tn), lambda j: (0, j)),        # b3 tile
        ],
        out_specs=pl.BlockSpec((Bp, tn), lambda j: (0, j)),
        cost_estimate=pl.CostEstimate(
            flops=2 * Bp * HIDDEN * out_p_dim,
            transcendentals=0,
            bytes_accessed=(_nbytes(Bp * HIDDEN, jnp.float32)
                            + _nbytes(HIDDEN * out_p_dim, w3.dtype)
                            + _nbytes(out_p_dim, b3.dtype)
                            + _nbytes(Bp * out_p_dim, jnp.float32)),
        ),
        compiler_params=pltpu.CompilerParams(
            dimension_semantics=("parallel",),   # independent N tiles (v7x 2-TC)
            vmem_limit_bytes=32 << 20,           # fits v5e/v6e/v7x physical VMEM
        ),
    )(h2, w3, b3)

    return out_p[:B, :out_dim].reshape(B, num_point, 3)


def cast_weights_for_streaming(params):
    """Opt-in bf16 streaming of the two big matrices (W2, W3).

    Kernels accumulate in f32 on the MXU; W1 and all biases stay f32.  Output
    deviates from the f32 reference by ~0.5%, hence gated behind this helper
    (call it once, outside the jitted function, so the cast is not re-done per
    forward pass)."""
    w1, b1, w2, b2, w3, b3 = params
    return (w1, b1, w2.astype(jnp.bfloat16), b2, w3.astype(jnp.bfloat16), b3)


def init_params(key, num_point):
    """Deterministic synthetic init; linear layers as (in, out) + (1, out) bias."""
    dims = [(FEAT_DIM, HIDDEN), (HIDDEN, HIDDEN), (HIDDEN, num_point * 3)]
    params = []
    for din, dout in dims:
        kw, kb, key = jax.random.split(key, 3)
        scale = 1.0 / jnp.sqrt(jnp.float32(din))
        w = jax.random.uniform(kw, (din, dout), jnp.float32, -scale, scale)
        b = jax.random.uniform(kb, (1, dout), jnp.float32, -scale, scale)
        params += [w, b]
    return tuple(params)


def fc_decoder_ref(feat, params, num_point):
    w1, b1, w2, b2, w3, b3 = params
    h = jnp.maximum(feat @ w1 + b1, 0.0)
    h = jnp.maximum(h @ w2 + b2, 0.0)
    out = h @ w3 + b3
    return out.reshape(feat.shape[0], num_point, 3)


if __name__ == "__main__":
    key = jax.random.PRNGKey(0)
    k_feat, k_params = jax.random.split(key)

    B = 2
    feat = jax.random.normal(k_feat, (B, FEAT_DIM), jnp.float32)

    # 256 -> 768-wide single tile; 200 -> pad 600->640 single tile (exercises
    # the pad+slice path); 1024 -> 3072-wide, tn=1024, 3-tile streamed path.
    for num_point in (256, 200, 1024):
        params = init_params(jax.random.fold_in(k_params, num_point), num_point)
        ref = fc_decoder_ref(feat, params, num_point)

        # Exact-precision (f32) path.
        out = jax.block_until_ready(fc_decoder(feat, params, num_point=num_point))
        assert out.shape == (B, num_point, 3), out.shape
        assert jnp.allclose(out, ref, atol=1e-4, rtol=1e-4), (
            f"f32 mismatch vs reference for num_point={num_point}")

        # bf16 weight-streaming path (opt-in; looser tolerance vs f32 reference).
        params_bf16 = cast_weights_for_streaming(params)
        out_bf16 = jax.block_until_ready(
            fc_decoder(feat, params_bf16, num_point=num_point))
        assert out_bf16.shape == (B, num_point, 3), out_bf16.shape
        assert jnp.allclose(out_bf16, ref, atol=3e-2, rtol=3e-2), (
            f"bf16 mismatch vs reference for num_point={num_point}")

    print("KERNEL_OK")
</pallas_src>

<mosaic_0001>
module attributes {stable_mosaic.version = 11 : i64} {
  func.func @fc_hidden_kernel(%arg0: memref<8x128xf32, #tpu.memory_space<vmem>>, %arg1: memref<128x1024xf32, #tpu.memory_space<vmem>>, %arg2: memref<1x1024xf32, #tpu.memory_space<vmem>>, %arg3: memref<1024x1024xf32, #tpu.memory_space<vmem>>, %arg4: memref<1x1024xf32, #tpu.memory_space<vmem>>, %arg5: memref<8x1024xf32, #tpu.memory_space<vmem>>) attributes {dimension_semantics = [], scalar_prefetch = 0 : i64, scratch_operands = 0 : i64, tpu.core_type = #tpu.core_type<tc>} {
    %c0 = arith.constant 0 : index
    %c0_0 = arith.constant 0 : index
    %0 = vector.load %arg0[%c0, %c0_0] : memref<8x128xf32, #tpu.memory_space<vmem>>, vector<8x128xf32>
    %c0_1 = arith.constant 0 : index
    %c0_2 = arith.constant 0 : index
    %1 = vector.load %arg1[%c0_1, %c0_2] : memref<128x1024xf32, #tpu.memory_space<vmem>>, vector<128x1024xf32>
    %cst = arith.constant dense<0.000000e+00> : vector<8x1024xf32>
    %2 = tpu.matmul %0, %1, %cst {dimension_numbers = #tpu.dot_dimension_numbers<[1], [0], [0], [1], [0, 0, 1, 1], [], []>} : vector<8x128xf32>, vector<128x1024xf32>, vector<8x1024xf32> -> vector<8x1024xf32>
    %c0_3 = arith.constant 0 : index
    %c0_4 = arith.constant 0 : index
    %3 = vector.load %arg2[%c0_3, %c0_4] : memref<1x1024xf32, #tpu.memory_space<vmem>>, vector<1x1024xf32>
    %4 = vector.broadcast %3 : vector<1x1024xf32> to vector<8x1024xf32>
    %5 = arith.addf %2, %4 : vector<8x1024xf32>
    %cst_5 = arith.constant 0.000000e+00 : f32
    %6 = vector.broadcast %cst_5 : f32 to vector<8x1024xf32>
    %7 = arith.maximumf %5, %6 : vector<8x1024xf32>
    %c0_6 = arith.constant 0 : index
    %c0_7 = arith.constant 0 : index
    %8 = vector.load %arg3[%c0_6, %c0_7] : memref<1024x1024xf32, #tpu.memory_space<vmem>>, vector<1024x1024xf32>
    %cst_8 = arith.constant dense<0.000000e+00> : vector<8x1024xf32>
    %9 = tpu.matmul %7, %8, %cst_8 {dimension_numbers = #tpu.dot_dimension_numbers<[1], [0], [0], [1], [0, 0, 1, 1], [], []>} : vector<8x1024xf32>, vector<1024x1024xf32>, vector<8x1024xf32> -> vector<8x1024xf32>
    %c0_9 = arith.constant 0 : index
    %c0_10 = arith.constant 0 : index
    %10 = vector.load %arg4[%c0_9, %c0_10] : memref<1x1024xf32, #tpu.memory_space<vmem>>, vector<1x1024xf32>
    %11 = vector.broadcast %10 : vector<1x1024xf32> to vector<8x1024xf32>
    %12 = arith.addf %9, %11 : vector<8x1024xf32>
    %cst_11 = arith.constant 0.000000e+00 : f32
    %13 = vector.broadcast %cst_11 : f32 to vector<8x1024xf32>
    %14 = arith.maximumf %12, %13 : vector<8x1024xf32>
    %c0_12 = arith.constant 0 : index
    %c0_13 = arith.constant 0 : index
    %15 = vector.load %arg5[%c0_12, %c0_13] : memref<8x1024xf32, #tpu.memory_space<vmem>>, vector<8x1024xf32>
    tpu.vector_store %arg5[%c0_12, %c0_13], %14 {strides = array<i32>} : memref<8x1024xf32, #tpu.memory_space<vmem>>, vector<8x1024xf32>,
    return
  }
}

module attributes {stable_mosaic.version = 11 : i64} {
  func.func @fc_out_kernel(%arg0: i32, %arg1: memref<8x1024xf32, #tpu.memory_space<vmem>>, %arg2: memref<1024x768xf32, #tpu.memory_space<vmem>>, %arg3: memref<1x768xf32, #tpu.memory_space<vmem>>, %arg4: memref<8x768xf32, #tpu.memory_space<vmem>>) attributes {dimension_semantics = [#tpu.dimension_semantics<parallel>], iteration_bounds = array<i64: 1>, scalar_prefetch = 0 : i64, scratch_operands = 0 : i64, tpu.core_type = #tpu.core_type<tc>, window_params = [{pipeline_mode = #tpu.pipeline_mode<synchronous>, transform_indices = @transform_0, window_bounds = array<i64: 8, 1024>}, {transform_indices = @transform_1, window_bounds = array<i64: 1024, 768>}, {transform_indices = @transform_2, window_bounds = array<i64: 1, 768>}, {transform_indices = @transform_3, window_bounds = array<i64: 8, 768>}]} {
    %c0 = arith.constant 0 : index
    %c0_0 = arith.constant 0 : index
    %0 = vector.load %arg1[%c0, %c0_0] : memref<8x1024xf32, #tpu.memory_space<vmem>>, vector<8x1024xf32>
    %c0_1 = arith.constant 0 : index
    %c0_2 = arith.constant 0 : index
    %1 = vector.load %arg2[%c0_1, %c0_2] : memref<1024x768xf32, #tpu.memory_space<vmem>>, vector<1024x768xf32>
    %cst = arith.constant dense<0.000000e+00> : vector<8x768xf32>
    %2 = tpu.matmul %0, %1, %cst {dimension_numbers = #tpu.dot_dimension_numbers<[1], [0], [0], [1], [0, 0, 1, 1], [], []>} : vector<8x1024xf32>, vector<1024x768xf32>, vector<8x768xf32> -> vector<8x768xf32>
    %c0_3 = arith.constant 0 : index
    %c0_4 = arith.constant 0 : index
    %3 = vector.load %arg3[%c0_3, %c0_4] : memref<1x768xf32, #tpu.memory_space<vmem>>, vector<1x768xf32>
    %4 = vector.broadcast %3 : vector<1x768xf32> to vector<8x768xf32>
    %5 = arith.addf %2, %4 : vector<8x768xf32>
    %c0_5 = arith.constant 0 : index
    %c0_6 = arith.constant 0 : index
    %6 = vector.load %arg4[%c0_5, %c0_6] : memref<8x768xf32, #tpu.memory_space<vmem>>, vector<8x768xf32>
    tpu.vector_store %arg4[%c0_5, %c0_6], %5 {strides = array<i32>} : memref<8x768xf32, #tpu.memory_space<vmem>>, vector<8x768xf32>,
    return
  }
  func.func @transform_0(%arg0: i32) -> (i32, i32) {
    %c0_i32 = arith.constant 0 : i32
    %c0_i32_0 = arith.constant 0 : i32
    %c0_i32_1 = arith.constant 0 : i32
    return %c0_i32, %c0_i32_0 : i32, i32
  }
  func.func @transform_1(%arg0: i32) -> (i32, i32) {
    %c0_i32 = arith.constant 0 : i32
    %c0_i32_0 = arith.constant 0 : i32
    return %c0_i32, %arg0 : i32, i32
  }
  func.func @transform_2(%arg0: i32) -> (i32, i32) {
    %c0_i32 = arith.constant 0 : i32
    %c0_i32_0 = arith.constant 0 : i32
    return %c0_i32, %arg0 : i32, i32
  }
  func.func @transform_3(%arg0: i32) -> (i32, i32) {
    %c0_i32 = arith.constant 0 : i32
    %c0_i32_0 = arith.constant 0 : i32
    return %c0_i32, %arg0 : i32, i32
  }
}

</mosaic_0001>

<llo_original>
// kernel: fc_decoder.3
$region0: #{fc_decoder.3}
  #allocation0 [shape = 'u32[]', space=smem, size = 0x4, offset = 0x4, fixed_abs, tag = 'smem constant byte address 0x4 - core index']
  #allocation1 [shape = 'u32[72,128]{1,0:T(1,128)}', space=vmem, size = 0x9000, scoped, tag = 'internal scratch']
  %s0 = inlined_call_operand.vmem [shape: f32[8,1024], index: 0, kind: input, shape index: {}]
  %s1 = inlined_call_operand.vmem [shape: f32[1024,768], index: 1, kind: input, shape index: {}]
  %s2 = inlined_call_operand.vmem [shape: f32[1,768], index: 2, kind: input, shape index: {}]
  %s3 = inlined_call_operand.vmem [shape: f32[8,768], index: 3, kind: output, shape index: {}]
  %s4 = sld [smem:[#allocation0]]
  $region22: #{fc_decoder.3} parent=0
    _
  %s6 = ssub.s32 1, %s4
  %s7 = scalar_select 0, %s6, %s4
  // Predicated region
  $region2: #{fc_decoder.3} parent=0 // pred_check
    _
  $region3: #{fc_decoder.3} parent=0 // pred_check_branch
    %9 = sbr.rel (0) target = $region5
  $region4: #{fc_decoder.3} parent=0 // pred_region
    _
  $region5: #{fc_decoder.3} parent=0 // pred_fallthru
    _
  // Predicated region
  $region6: #{fc_decoder.3} parent=0 // pred_check
    _
  $region7: #{fc_decoder.3} parent=0 // pred_check_branch
    %11 = sbr.rel (0) target = $region9
  $region8: #{fc_decoder.3} parent=0 // pred_region
    _
  $region9: #{fc_decoder.3} parent=0 // pred_fallthru
    _
  // Predicated region
  $region10: #{fc_decoder.3} parent=0 // pred_check
    _
  $region11: #{fc_decoder.3} parent=0 // pred_check_branch
    %13 = sbr.rel (0) target = $region13
  $region12: #{fc_decoder.3} parent=0 // pred_region
    _
  $region13: #{fc_decoder.3} parent=0 // pred_fallthru
    _
  %v14 = vld [vmem:[%s0] sm:$0xff]
  %v15 = vld [vmem:[%s0 + $0x8] sm:$0xff]
  %v16 = vld [vmem:[%s0 + $0x10] sm:$0xff]
  %v17 = vld [vmem:[%s0 + $0x18] sm:$0xff]
  %v18 = vld [vmem:[%s0 + $0x20] sm:$0xff]
  %v19 = vld [vmem:[%s0 + $0x28] sm:$0xff]
  %v20 = vld [vmem:[%s0 + $0x30] sm:$0xff]
  %v21 = vld [vmem:[%s0 + $0x38] sm:$0xff]
  %v22 = vld [vmem:[%s1] sm:$0xff]
  %v23 = vld [vmem:[%s1 + $0x8] sm:$0xff]
  %v24 = vld [vmem:[%s1 + $0x10] sm:$0xff]
  %v25 = vld [vmem:[%s1 + $0x18] sm:$0xff]
  %v26 = vld [vmem:[%s1 + $0x20] sm:$0xff]
  %v27 = vld [vmem:[%s1 + $0x28] sm:$0xff]
  %v28 = vld [vmem:[%s1 + $0x30] sm:$0xff]
  %v29 = vld [vmem:[%s1 + $0x38] sm:$0xff]
  %v30 = vld [vmem:[%s1 + $0x40] sm:$0xff]
  %v31 = vld [vmem:[%s1 + $0x48] sm:$0xff]
  %v32 = vld [vmem:[%s1 + $0x50] sm:$0xff]
  %v33 = vld [vmem:[%s1 + $0x58] sm:$0xff]
  %v34 = vld [vmem:[%s1 + $0x60] sm:$0xff]
  %v35 = vld [vmem:[%s1 + $0x68] sm:$0xff]
  %v36 = vld [vmem:[%s1 + $0x70] sm:$0xff]
  %v37 = vld [vmem:[%s1 + $0x78] sm:$0xff]
  %v38 = vld [vmem:[%s1 + $0x80] sm:$0xff]
  %v39 = vld [vmem:[%s1 + $0x88] sm:$0xff]
  %v40 = vld [vmem:[%s1 + $0x90] sm:$0xff]
  %v41 = vld [vmem:[%s1 + $0x98] sm:$0xff]
  %v42 = vld [vmem:[%s1 + $0xa0] sm:$0xff]
  %v43 = vld [vmem:[%s1 + $0xa8] sm:$0xff]
  %v44 = vld [vmem:[%s1 + $0xb0] sm:$0xff]
  %v45 = vld [vmem:[%s1 + $0xb8] sm:$0xff]
  %v46 = vld [vmem:[%s1 + $0xc0] sm:$0xff]
  %v47 = vld [vmem:[%s1 + $0xc8] sm:$0xff]
  %v48 = vld [vmem:[%s1 + $0xd0] sm:$0xff]
  %v49 = vld [vmem:[%s1 + $0xd8] sm:$0xff]
  %v50 = vld [vmem:[%s1 + $0xe0] sm:$0xff]
  %v51 = vld [vmem:[%s1 + $0xe8] sm:$0xff]
  %v52 = vld [vmem:[%s1 + $0xf0] sm:$0xff]
  %v53 = vld [vmem:[%s1 + $0xf8] sm:$0xff]
  %v54 = vld [vmem:[%s1 + $0x100] sm:$0xff]
  %v55 = vld [vmem:[%s1 + $0x108] sm:$0xff]
  %v56 = vld [vmem:[%s1 + $0x110] sm:$0xff]
  %v57 = vld [vmem:[%s1 + $0x118] sm:$0xff]
  %v58 = vld [vmem:[%s1 + $0x120] sm:$0xff]
  %v59 = vld [vmem:[%s1 + $0x128] sm:$0xff]
  %v60 = vld [vmem:[%s1 + $0x130] sm:$0xff]
  %v61 = vld [vmem:[%s1 + $0x138] sm:$0xff]
  %v62 = vld [vmem:[%s1 + $0x140] sm:$0xff]
  %v63 = vld [vmem:[%s1 + $0x148] sm:$0xff]
  %v64 = vld [vmem:[%s1 + $0x150] sm:$0xff]
  %v65 = vld [vmem:[%s1 + $0x158] sm:$0xff]
  %v66 = vld [vmem:[%s1 + $0x160] sm:$0xff]
  %v67 = vld [vmem:[%s1 + $0x168] sm:$0xff]
  %v68 = vld [vmem:[%s1 + $0x170] sm:$0xff]
  %v69 = vld [vmem:[%s1 + $0x178] sm:$0xff]
  %v70 = vld [vmem:[%s1 + $0x180] sm:$0xff]
  %v71 = vld [vmem:[%s1 + $0x188] sm:$0xff]
  %v72 = vld [vmem:[%s1 + $0x190] sm:$0xff]
  %v73 = vld [vmem:[%s1 + $0x198] sm:$0xff]
  %v74 = vld [vmem:[%s1 + $0x1a0] sm:$0xff]
  %v75 = vld [vmem:[%s1 + $0x1a8] sm:$0xff]
  %v76 = vld [vmem:[%s1 + $0x1b0] sm:$0xff]
  %v77 = vld [vmem:[%s1 + $0x1b8] sm:$0xff]
  %v78 = vld [vmem:[%s1 + $0x1c0] sm:$0xff]
  %v79 = vld [vmem:[%s1 + $0x1c8] sm:$0xff]
  %v80 = vld [vmem:[%s1 + $0x1d0] sm:$0xff]
  %v81 = vld [vmem:[%s1 + $0x1d8] sm:$0xff]
  %v82 = vld [vmem:[%s1 + $0x1e0] sm:$0xff]
  %v83 = vld [vmem:[%s1 + $0x1e8] sm:$0xff]
  %v84 = vld [vmem:[%s1 + $0x1f0] sm:$0xff]
  %v85 = vld [vmem:[%s1 + $0x1f8] sm:$0xff]
  %v86 = vld [vmem:[%s1 + $0x200] sm:$0xff]
  %v87 = vld [vmem:[%s1 + $0x208] sm:$0xff]
  %v88 = vld [vmem:[%s1 + $0x210] sm:$0xff]
  %v89 = vld [vmem:[%s1 + $0x218] sm:$0xff]
  %v90 = vld [vmem:[%s1 + $0x220] sm:$0xff]
  %v91 = vld [vmem:[%s1 + $0x228] sm:$0xff]
  %v92 = vld [vmem:[%s1 + $0x230] sm:$0xff]
  %v93 = vld [vmem:[%s1 + $0x238] sm:$0xff]
  %v94 = vld [vmem:[%s1 + $0x240] sm:$0xff]
  %v95 = vld [vmem:[%s1 + $0x248] sm:$0xff]
  %v96 = vld [vmem:[%s1 + $0x250] sm:$0xff]
  %v97 = vld [vmem:[%s1 + $0x258] sm:$0xff]
  %v98 = vld [vmem:[%s1 + $0x260] sm:$0xff]
  %v99 = vld [vmem:[%s1 + $0x268] sm:$0xff]
  %v100 = vld [vmem:[%s1 + $0x270] sm:$0xff]
  %v101 = vld [vmem:[%s1 + $0x278] sm:$0xff]
  %v102 = vld [vmem:[%s1 + $0x280] sm:$0xff]
  %v103 = vld [vmem:[%s1 + $0x288] sm:$0xff]
  %v104 = vld [vmem:[%s1 + $0x290] sm:$0xff]
  %v105 = vld [vmem:[%s1 + $0x298] sm:$0xff]
  %v106 = vld [vmem:[%s1 + $0x2a0] sm:$0xff]
  %v107 = vld [vmem:[%s1 + $0x2a8] sm:$0xff]
  %v108 = vld [vmem:[%s1 + $0x2b0] sm:$0xff]
  %v109 = vld [vmem:[%s1 + $0x2b8] sm:$0xff]
  %v110 = vld [vmem:[%s1 + $0x2c0] sm:$0xff]
  %v111 = vld [vmem:[%s1 + $0x2c8] sm:$0xff]
  %v112 = vld [vmem:[%s1 + $0x2d0] sm:$0xff]
  %v113 = vld [vmem:[%s1 + $0x2d8] sm:$0xff]
  %v114 = vld [vmem:[%s1 + $0x2e0] sm:$0xff]
  %v115 = vld [vmem:[%s1 + $0x2e8] sm:$0xff]
  %v116 = vld [vmem:[%s1 + $0x2f0] sm:$0xff]
  %v117 = vld [vmem:[%s1 + $0x2f8] sm:$0xff]
  %v118 = vld [vmem:[%s1 + $0x300] sm:$0xff]
  %v119 = vld [vmem:[%s1 + $0x308] sm:$0xff]
  %v120 = vld [vmem:[%s1 + $0x310] sm:$0xff]
  %v121 = vld [vmem:[%s1 + $0x318] sm:$0xff]
  %v122 = vld [vmem:[%s1 + $0x320] sm:$0xff]
  %v123 = vld [vmem:[%s1 + $0x328] sm:$0xff]
  %v124 = vld [vmem:[%s1 + $0x330] sm:$0xff]
  %v125 = vld [vmem:[%s1 + $0x338] sm:$0xff]
  %v126 = vld [vmem:[%s1 + $0x340] sm:$0xff]
  %v127 = vld [vmem:[%s1 + $0x348] sm:$0xff]
  %v128 = vld [vmem:[%s1 + $0x350] sm:$0xff]
  %v129 = vld [vmem:[%s1 + $0x358] sm:$0xff]
  %v130 = vld [vmem:[%s1 + $0x360] sm:$0xff]
  %v131 = vld [vmem:[%s1 + $0x368] sm:$0xff]
  %v132 = vld [vmem:[%s1 + $0x370] sm:$0xff]
  %v133 = vld [vmem:[%s1 + $0x378] sm:$0xff]
  %v134 = vld [vmem:[%s1 + $0x380] sm:$0xff]
  %v135 = vld [vmem:[%s1 + $0x388] sm:$0xff]
  %v136 = vld [vmem:[%s1 + $0x390] sm:$0xff]
  %v137 = vld [vmem:[%s1 + $0x398] sm:$0xff]
  %v138 = vld [vmem:[%s1 + $0x3a0] sm:$0xff]
  %v139 = vld [vmem:[%s1 + $0x3a8] sm:$0xff]
  %v140 = vld [vmem:[%s1 + $0x3b0] sm:$0xff]
  %v141 = vld [vmem:[%s1 + $0x3b8] sm:$0xff]
  %v142 = vld [vmem:[%s1 + $0x3c0] sm:$0xff]
  %v143 = vld [vmem:[%s1 + $0x3c8] sm:$0xff]
  %v144 = vld [vmem:[%s1 + $0x3d0] sm:$0xff]
  %v145 = vld [vmem:[%s1 + $0x3d8] sm:$0xff]
  %v146 = vld [vmem:[%s1 + $0x3e0] sm:$0xff]
  %v147 = vld [vmem:[%s1 + $0x3e8] sm:$0xff]
  %v148 = vld [vmem:[%s1 + $0x3f0] sm:$0xff]
  %v149 = vld [vmem:[%s1 + $0x3f8] sm:$0xff]
  %v150 = vld [vmem:[%s1 + $0x400] sm:$0xff]
  %v151 = vld [vmem:[%s1 + $0x408] sm:$0xff]
  %v152 = vld [vmem:[%s1 + $0x410] sm:$0xff]
  %v153 = vld [vmem:[%s1 + $0x418] sm:$0xff]
  %v154 = vld [vmem:[%s1 + $0x420] sm:$0xff]
  %v155 = vld [vmem:[%s1 + $0x428] sm:$0xff]
  %v156 = vld [vmem:[%s1 + $0x430] sm:$0xff]
  %v157 = vld [vmem:[%s1 + $0x438] sm:$0xff]
  %v158 = vld [vmem:[%s1 + $0x440] sm:$0xff]
  %v159 = vld [vmem:[%s1 + $0x448] sm:$0xff]
  %v160 = vld [vmem:[%s1 + $0x450] sm:$0xff]
  %v161 = vld [vmem:[%s1 + $0x458] sm:$0xff]
  %v162 = vld [vmem:[%s1 + $0x460] sm:$0xff]
  %v163 = vld [vmem:[%s1 + $0x468] sm:$0xff]
  %v164 = vld [vmem:[%s1 + $0x470] sm:$0xff]
  %v165 = vld [vmem:[%s1 + $0x478] sm:$0xff]
  %v166 = vld [vmem:[%s1 + $0x480] sm:$0xff]
  %v167 = vld [vmem:[%s1 + $0x488] sm:$0xff]
  %v168 = vld [vmem:[%s1 + $0x490] sm:$0xff]
  %v169 = vld [vmem:[%s1 + $0x498] sm:$0xff]
  %v170 = vld [vmem:[%s1 + $0x4a0] sm:$0xff]
  %v171 = vld [vmem:[%s1 + $0x4a8] sm:$0xff]
  %v172 = vld [vmem:[%s1 + $0x4b0] sm:$0xff]
  %v173 = vld [vmem:[%s1 + $0x4b8] sm:$0xff]
  %v174 = vld [vmem:[%s1 + $0x4c0] sm:$0xff]
  %v175 = vld [vmem:[%s1 + $0x4c8] sm:$0xff]
  %v176 = vld [vmem:[%s1 + $0x4d0] sm:$0xff]
  %v177 = vld [vmem:[%s1 + $0x4d8] sm:$0xff]
  %v178 = vld [vmem:[%s1 + $0x4e0] sm:$0xff]
  %v179 = vld [vmem:[%s1 + $0x4e8] sm:$0xff]
  %v180 = vld [vmem:[%s1 + $0x4f0] sm:$0xff]
  %v181 = vld [vmem:[%s1 + $0x4f8] sm:$0xff]
  %v182 = vld [vmem:[%s1 + $0x500] sm:$0xff]
  %v183 = vld [vmem:[%s1 + $0x508] sm:$0xff]
  %v184 = vld [vmem:[%s1 + $0x510] sm:$0xff]
  %v185 = vld [vmem:[%s1 + $0x518] sm:$0xff]
  %v186 = vld [vmem:[%s1 + $0x520] sm:$0xff]
  %v187 = vld [vmem:[%s1 + $0x528] sm:$0xff]
  %v188 = vld [vmem:[%s1 + $0x530] sm:$0xff]
  %v189 = vld [vmem:[%s1 + $0x538] sm:$0xff]
  %v190 = vld [vmem:[%s1 + $0x540] sm:$0xff]
  %v191 = vld [vmem:[%s1 + $0x548] sm:$0xff]
  %v192 = vld [vmem:[%s1 + $0x550] sm:$0xff]
  %v193 = vld [vmem:[%s1 + $0x558] sm:$0xff]
  %v194 = vld [vmem:[%s1 + $0x560] sm:$0xff]
  %v195 = vld [vmem:[%s1 + $0x568] sm:$0xff]
  %v196 = vld [vmem:[%s1 + $0x570] sm:$0xff]
  %v197 = vld [vmem:[%s1 + $0x578] sm:$0xff]
  %v198 = vld [vmem:[%s1 + $0x580] sm:$0xff]
  %v199 = vld [vmem:[%s1 + $0x588] sm:$0xff]
  %v200 = vld [vmem:[%s1 + $0x590] sm:$0xff]
  %v201 = vld [vmem:[%s1 + $0x598] sm:$0xff]
  %v202 = vld [vmem:[%s1 + $0x5a0] sm:$0xff]
  %v203 = vld [vmem:[%s1 + $0x5a8] sm:$0xff]
  %v204 = vld [vmem:[%s1 + $0x5b0] sm:$0xff]
  %v205 = vld [vmem:[%s1 + $0x5b8] sm:$0xff]
  %v206 = vld [vmem:[%s1 + $0x5c0] sm:$0xff]
  %v207 = vld [vmem:[%s1 + $0x5c8] sm:$0xff]
  %v208 = vld [vmem:[%s1 + $0x5d0] sm:$0xff]
  %v209 = vld [vmem:[%s1 + $0x5d8] sm:$0xff]
  %v210 = vld [vmem:[%s1 + $0x5e0] sm:$0xff]
  %v211 = vld [vmem:[%s1 + $0x5e8] sm:$0xff]
  %v212 = vld [vmem:[%s1 + $0x5f0] sm:$0xff]
  %v213 = vld [vmem:[%s1 + $0x5f8] sm:$0xff]
  %v214 = vld [vmem:[%s1 + $0x600] sm:$0xff]
  %v215 = vld [vmem:[%s1 + $0x608] sm:$0xff]
  %v216 = vld [vmem:[%s1 + $0x610] sm:$0xff]
  %v217 = vld [vmem:[%s1 + $0x618] sm:$0xff]
  %v218 = vld [vmem:[%s1 + $0x620] sm:$0xff]
  %v219 = vld [vmem:[%s1 + $0x628] sm:$0xff]
  %v220 = vld [vmem:[%s1 + $0x630] sm:$0xff]
  %v221 = vld [vmem:[%s1 + $0x638] sm:$0xff]
  %v222 = vld [vmem:[%s1 + $0x640] sm:$0xff]
  %v223 = vld [vmem:[%s1 + $0x648] sm:$0xff]
  %v224 = vld [vmem:[%s1 + $0x650] sm:$0xff]
  %v225 = vld [vmem:[%s1 + $0x658] sm:$0xff]
  %v226 = vld [vmem:[%s1 + $0x660] sm:$0xff]
  %v227 = vld [vmem:[%s1 + $0x668] sm:$0xff]
  %v228 = vld [vmem:[%s1 + $0x670] sm:$0xff]
  %v229 = vld [vmem:[%s1 + $0x678] sm:$0xff]
  %v230 = vld [vmem:[%s1 + $0x680] sm:$0xff]
  %v231 = vld [vmem:[%s1 + $0x688] sm:$0xff]
  %v232 = vld [vmem:[%s1 + $0x690] sm:$0xff]
  %v233 = vld [vmem:[%s1 + $0x698] sm:$0xff]
  %v234 = vld [vmem:[%s1 + $0x6a0] sm:$0xff]
  %v235 = vld [vmem:[%s1 + $0x6a8] sm:$0xff]
  %v236 = vld [vmem:[%s1 + $0x6b0] sm:$0xff]
  %v237 = vld [vmem:[%s1 + $0x6b8] sm:$0xff]
  %v238 = vld [vmem:[%s1 + $0x6c0] sm:$0xff]
  %v239 = vld [vmem:[%s1 + $0x6c8] sm:$0xff]
  %v240 = vld [vmem:[%s1 + $0x6d0] sm:$0xff]
  %v241 = vld [vmem:[%s1 + $0x6d8] sm:$0xff]
  %v242 = vld [vmem:[%s1 + $0x6e0] sm:$0xff]
  %v243 = vld [vmem:[%s1 + $0x6e8] sm:$0xff]
  %v244 = vld [vmem:[%s1 + $0x6f0] sm:$0xff]
  %v245 = vld [vmem:[%s1 + $0x6f8] sm:$0xff]
  %v246 = vld [vmem:[%s1 + $0x700] sm:$0xff]
  %v247 = vld [vmem:[%s1 + $0x708] sm:$0xff]
  %v248 = vld [vmem:[%s1 + $0x710] sm:$0xff]
  %v249 = vld [vmem:[%s1 + $0x718] sm:$0xff]
  %v250 = vld [vmem:[%s1 + $0x720] sm:$0xff]
  %v251 = vld [vmem:[%s1 + $0x728] sm:$0xff]
  %v252 = vld [vmem:[%s1 + $0x730] sm:$0xff]
  %v253 = vld [vmem:[%s1 + $0x738] sm:$0xff]
  %v254 = vld [vmem:[%s1 + $0x740] sm:$0xff]
  %v255 = vld [vmem:[%s1 + $0x748] sm:$0xff]
  %v256 = vld [vmem:[%s1 + $0x750] sm:$0xff]
  %v257 = vld [vmem:[%s1 + $0x758] sm:$0xff]
  %v258 = vld [vmem:[%s1 + $0x760] sm:$0xff]
  %v259 = vld [vmem:[%s1 + $0x768] sm:$0xff]
  %v260 = vld [vmem:[%s1 + $0x770] sm:$0xff]
  %v261 = vld [vmem:[%s1 + $0x778] sm:$0xff]
  %v262 = vld [vmem:[%s1 + $0x780] sm:$0xff]
  %v263 = vld [vmem:[%s1 + $0x788] sm:$0xff]
  %v264 = vld [vmem:[%s1 + $0x790] sm:$0xff]
  %v265 = vld [vmem:[%s1 + $0x798] sm:$0xff]
  %v266 = vld [vmem:[%s1 + $0x7a0] sm:$0xff]
  %v267 = vld [vmem:[%s1 + $0x7a8] sm:$0xff]
  %v268 = vld [vmem:[%s1 + $0x7b0] sm:$0xff]
  %v269 = vld [vmem:[%s1 + $0x7b8] sm:$0xff]
  %v270 = vld [vmem:[%s1 + $0x7c0] sm:$0xff]
  %v271 = vld [vmem:[%s1 + $0x7c8] sm:$0xff]
  %v272 = vld [vmem:[%s1 + $0x7d0] sm:$0xff]
  %v273 = vld [vmem:[%s1 + $0x7d8] sm:$0xff]
  %v274 = vld [vmem:[%s1 + $0x7e0] sm:$0xff]
  %v275 = vld [vmem:[%s1 + $0x7e8] sm:$0xff]
  %v276 = vld [vmem:[%s1 + $0x7f0] sm:$0xff]
  %v277 = vld [vmem:[%s1 + $0x7f8] sm:$0xff]
  %v278 = vld [vmem:[%s1 + $0x800] sm:$0xff]
  %v279 = vld [vmem:[%s1 + $0x808] sm:$0xff]
  %v280 = vld [vmem:[%s1 + $0x810] sm:$0xff]
  %v281 = vld [vmem:[%s1 + $0x818] sm:$0xff]
  %v282 = vld [vmem:[%s1 + $0x820] sm:$0xff]
  %v283 = vld [vmem:[%s1 + $0x828] sm:$0xff]
  %v284 = vld [vmem:[%s1 + $0x830] sm:$0xff]
  %v285 = vld [vmem:[%s1 + $0x838] sm:$0xff]
  %v286 = vld [vmem:[%s1 + $0x840] sm:$0xff]
  %v287 = vld [vmem:[%s1 + $0x848] sm:$0xff]
  %v288 = vld [vmem:[%s1 + $0x850] sm:$0xff]
  %v289 = vld [vmem:[%s1 + $0x858] sm:$0xff]
  %v290 = vld [vmem:[%s1 + $0x860] sm:$0xff]
  %v291 = vld [vmem:[%s1 + $0x868] sm:$0xff]
  %v292 = vld [vmem:[%s1 + $0x870] sm:$0xff]
  %v293 = vld [vmem:[%s1 + $0x878] sm:$0xff]
  %v294 = vld [vmem:[%s1 + $0x880] sm:$0xff]
  %v295 = vld [vmem:[%s1 + $0x888] sm:$0xff]
  %v296 = vld [vmem:[%s1 + $0x890] sm:$0xff]
  %v297 = vld [vmem:[%s1 + $0x898] sm:$0xff]
  %v298 = vld [vmem:[%s1 + $0x8a0] sm:$0xff]
  %v299 = vld [vmem:[%s1 + $0x8a8] sm:$0xff]
  %v300 = vld [vmem:[%s1 + $0x8b0] sm:$0xff]
  %v301 = vld [vmem:[%s1 + $0x8b8] sm:$0xff]
  %v302 = vld [vmem:[%s1 + $0x8c0] sm:$0xff]
  %v303 = vld [vmem:[%s1 + $0x8c8] sm:$0xff]
  %v304 = vld [vmem:[%s1 + $0x8d0] sm:$0xff]
  %v305 = vld [vmem:[%s1 + $0x8d8] sm:$0xff]
  %v306 = vld [vmem:[%s1 + $0x8e0] sm:$0xff]
  %v307 = vld [vmem:[%s1 + $0x8e8] sm:$0xff]
  %v308 = vld [vmem:[%s1 + $0x8f0] sm:$0xff]
  %v309 = vld [vmem:[%s1 + $0x8f8] sm:$0xff]
  %v310 = vld [vmem:[%s1 + $0x900] sm:$0xff]
  %v311 = vld [vmem:[%s1 + $0x908] sm:$0xff]
  %v312 = vld [vmem:[%s1 + $0x910] sm:$0xff]
  %v313 = vld [vmem:[%s1 + $0x918] sm:$0xff]
  %v314 = vld [vmem:[%s1 + $0x920] sm:$0xff]
  %v315 = vld [vmem:[%s1 + $0x928] sm:$0xff]
  %v316 = vld [vmem:[%s1 + $0x930] sm:$0xff]
  %v317 = vld [vmem:[%s1 + $0x938] sm:$0xff]
  %v318 = vld [vmem:[%s1 + $0x940] sm:$0xff]
  %v319 = vld [vmem:[%s1 + $0x948] sm:$0xff]
  %v320 = vld [vmem:[%s1 + $0x950] sm:$0xff]
  %v321 = vld [vmem:[%s1 + $0x958] sm:$0xff]
  %v322 = vld [vmem:[%s1 + $0x960] sm:$0xff]
  %v323 = vld [vmem:[%s1 + $0x968] sm:$0xff]
  %v324 = vld [vmem:[%s1 + $0x970] sm:$0xff]
  %v325 = vld [vmem:[%s1 + $0x978] sm:$0xff]
  %v326 = vld [vmem:[%s1 + $0x980] sm:$0xff]
  %v327 = vld [vmem:[%s1 + $0x988] sm:$0xff]
  %v328 = vld [vmem:[%s1 + $0x990] sm:$0xff]
  %v329 = vld [vmem:[%s1 + $0x998] sm:$0xff]
  %v330 = vld [vmem:[%s1 + $0x9a0] sm:$0xff]
  %v331 = vld [vmem:[%s1 + $0x9a8] sm:$0xff]
  %v332 = vld [vmem:[%s1 + $0x9b0] sm:$0xff]
  %v333 = vld [vmem:[%s1 + $0x9b8] sm:$0xff]
  %v334 = vld [vmem:[%s1 + $0x9c0] sm:$0xff]
  %v335 = vld [vmem:[%s1 + $0x9c8] sm:$0xff]
  %v336 = vld [vmem:[%s1 + $0x9d0] sm:$0xff]
  %v337 = vld [vmem:[%s1 + $0x9d8] sm:$0xff]
  %v338 = vld [vmem:[%s1 + $0x9e0] sm:$0xff]
  %v339 = vld [vmem:[%s1 + $0x9e8] sm:$0xff]
  %v340 = vld [vmem:[%s1 + $0x9f0] sm:$0xff]
  %v341 = vld [vmem:[%s1 + $0x9f8] sm:$0xff]
  %v342 = vld [vmem:[%s1 + $0xa00] sm:$0xff]
  %v343 = vld [vmem:[%s1 + $0xa08] sm:$0xff]
  %v344 = vld [vmem:[%s1 + $0xa10] sm:$0xff]
  %v345 = vld [vmem:[%s1 + $0xa18] sm:$0xff]
  %v346 = vld [vmem:[%s1 + $0xa20] sm:$0xff]
  %v347 = vld [vmem:[%s1 + $0xa28] sm:$0xff]
  %v348 = vld [vmem:[%s1 + $0xa30] sm:$0xff]
  %v349 = vld [vmem:[%s1 + $0xa38] sm:$0xff]
  %v350 = vld [vmem:[%s1 + $0xa40] sm:$0xff]
  %v351 = vld [vmem:[%s1 + $0xa48] sm:$0xff]
  %v352 = vld [vmem:[%s1 + $0xa50] sm:$0xff]
  %v353 = vld [vmem:[%s1 + $0xa58] sm:$0xff]
  %v354 = vld [vmem:[%s1 + $0xa60] sm:$0xff]
  %v355 = vld [vmem:[%s1 + $0xa68] sm:$0xff]
  %v356 = vld [vmem:[%s1 + $0xa70] sm:$0xff]
  %v357 = vld [vmem:[%s1 + $0xa78] sm:$0xff]
  %v358 = vld [vmem:[%s1 + $0xa80] sm:$0xff]
  %v359 = vld [vmem:[%s1 + $0xa88] sm:$0xff]
  %v360 = vld [vmem:[%s1 + $0xa90] sm:$0xff]
  %v361 = vld [vmem:[%s1 + $0xa98] sm:$0xff]
  %v362 = vld [vmem:[%s1 + $0xaa0] sm:$0xff]
  %v363 = vld [vmem:[%s1 + $0xaa8] sm:$0xff]
  %v364 = vld [vmem:[%s1 + $0xab0] sm:$0xff]
  %v365 = vld [vmem:[%s1 + $0xab8] sm:$0xff]
  %v366 = vld [vmem:[%s1 + $0xac0] sm:$0xff]
  %v367 = vld [vmem:[%s1 + $0xac8] sm:$0xff]
  %v368 = vld [vmem:[%s1 + $0xad0] sm:$0xff]
  %v369 = vld [vmem:[%s1 + $0xad8] sm:$0xff]
  %v370 = vld [vmem:[%s1 + $0xae0] sm:$0xff]
  %v371 = vld [vmem:[%s1 + $0xae8] sm:$0xff]
  %v372 = vld [vmem:[%s1 + $0xaf0] sm:$0xff]
  %v373 = vld [vmem:[%s1 + $0xaf8] sm:$0xff]
  %v374 = vld [vmem:[%s1 + $0xb00] sm:$0xff]
  %v375 = vld [vmem:[%s1 + $0xb08] sm:$0xff]
  %v376 = vld [vmem:[%s1 + $0xb10] sm:$0xff]
  %v377 = vld [vmem:[%s1 + $0xb18] sm:$0xff]
  %v378 = vld [vmem:[%s1 + $0xb20] sm:$0xff]
  %v379 = vld [vmem:[%s1 + $0xb28] sm:$0xff]
  %v380 = vld [vmem:[%s1 + $0xb30] sm:$0xff]
  %v381 = vld [vmem:[%s1 + $0xb38] sm:$0xff]
  %v382 = vld [vmem:[%s1 + $0xb40] sm:$0xff]
  %v383 = vld [vmem:[%s1 + $0xb48] sm:$0xff]
  %v384 = vld [vmem:[%s1 + $0xb50] sm:$0xff]
  %v385 = vld [vmem:[%s1 + $0xb58] sm:$0xff]
  %v386 = vld [vmem:[%s1 + $0xb60] sm:$0xff]
  %v387 = vld [vmem:[%s1 + $0xb68] sm:$0xff]
  %v388 = vld [vmem:[%s1 + $0xb70] sm:$0xff]
  %v389 = vld [vmem:[%s1 + $0xb78] sm:$0xff]
  %v390 = vld [vmem:[%s1 + $0xb80] sm:$0xff]
  %v391 = vld [vmem:[%s1 + $0xb88] sm:$0xff]
  %v392 = vld [vmem:[%s1 + $0xb90] sm:$0xff]
  %v393 = vld [vmem:[%s1 + $0xb98] sm:$0xff]
  %v394 = vld [vmem:[%s1 + $0xba0] sm:$0xff]
  %v395 = vld [vmem:[%s1 + $0xba8] sm:$0xff]
  %v396 = vld [vmem:[%s1 + $0xbb0] sm:$0xff]
  %v397 = vld [vmem:[%s1 + $0xbb8] sm:$0xff]
  %v398 = vld [vmem:[%s1 + $0xbc0] sm:$0xff]
  %v399 = vld [vmem:[%s1 + $0xbc8] sm:$0xff]
  %v400 = vld [vmem:[%s1 + $0xbd0] sm:$0xff]
  %v401 = vld [vmem:[%s1 + $0xbd8] sm:$0xff]
  %v402 = vld [vmem:[%s1 + $0xbe0] sm:$0xff]
  %v403 = vld [vmem:[%s1 + $0xbe8] sm:$0xff]
  %v404 = vld [vmem:[%s1 + $0xbf0] sm:$0xff]
  %v405 = vld [vmem:[%s1 + $0xbf8] sm:$0xff]
  %v406 = vld [vmem:[%s1 + $0xc00] sm:$0xff]
  %v407 = vld [vmem:[%s1 + $0xc08] sm:$0xff]
  %v408 = vld [vmem:[%s1 + $0xc10] sm:$0xff]
  %v409 = vld [vmem:[%s1 + $0xc18] sm:$0xff]
  %v410 = vld [vmem:[%s1 + $0xc20] sm:$0xff]
  %v411 = vld [vmem:[%s1 + $0xc28] sm:$0xff]
  %v412 = vld [vmem:[%s1 + $0xc30] sm:$0xff]
  %v413 = vld [vmem:[%s1 + $0xc38] sm:$0xff]
  %v414 = vld [vmem:[%s1 + $0xc40] sm:$0xff]
  %v415 = vld [vmem:[%s1 + $0xc48] sm:$0xff]
  %v416 = vld [vmem:[%s1 + $0xc50] sm:$0xff]
  %v417 = vld [vmem:[%s1 + $0xc58] sm:$0xff]
  %v418 = vld [vmem:[%s1 + $0xc60] sm:$0xff]
  %v419 = vld [vmem:[%s1 + $0xc68] sm:$0xff]
  %v420 = vld [vmem:[%s1 + $0xc70] sm:$0xff]
  %v421 = vld [vmem:[%s1 + $0xc78] sm:$0xff]
  %v422 = vld [vmem:[%s1 + $0xc80] sm:$0xff]
  %v423 = vld [vmem:[%s1 + $0xc88] sm:$0xff]
  %v424 = vld [vmem:[%s1 + $0xc90] sm:$0xff]
  %v425 = vld [vmem:[%s1 + $0xc98] sm:$0xff]
  %v426 = vld [vmem:[%s1 + $0xca0] sm:$0xff]
  %v427 = vld [vmem:[%s1 + $0xca8] sm:$0xff]
  %v428 = vld [vmem:[%s1 + $0xcb0] sm:$0xff]
  %v429 = vld [vmem:[%s1 + $0xcb8] sm:$0xff]
  %v430 = vld [vmem:[%s1 + $0xcc0] sm:$0xff]
  %v431 = vld [vmem:[%s1 + $0xcc8] sm:$0xff]
  %v432 = vld [vmem:[%s1 + $0xcd0] sm:$0xff]
  %v433 = vld [vmem:[%s1 + $0xcd8] sm:$0xff]
  %v434 = vld [vmem:[%s1 + $0xce0] sm:$0xff]
  %v435 = vld [vmem:[%s1 + $0xce8] sm:$0xff]
  %v436 = vld [vmem:[%s1 + $0xcf0] sm:$0xff]
  %v437 = vld [vmem:[%s1 + $0xcf8] sm:$0xff]
  %v438 = vld [vmem:[%s1 + $0xd00] sm:$0xff]
  %v439 = vld [vmem:[%s1 + $0xd08] sm:$0xff]
  %v440 = vld [vmem:[%s1 + $0xd10] sm:$0xff]
  %v441 = vld [vmem:[%s1 + $0xd18] sm:$0xff]
  %v442 = vld [vmem:[%s1 + $0xd20] sm:$0xff]
  %v443 = vld [vmem:[%s1 + $0xd28] sm:$0xff]
  %v444 = vld [vmem:[%s1 + $0xd30] sm:$0xff]
  %v445 = vld [vmem:[%s1 + $0xd38] sm:$0xff]
  %v446 = vld [vmem:[%s1 + $0xd40] sm:$0xff]
  %v447 = vld [vmem:[%s1 + $0xd48] sm:$0xff]
  %v448 = vld [vmem:[%s1 + $0xd50] sm:$0xff]
  %v449 = vld [vmem:[%s1 + $0xd58] sm:$0xff]
  %v450 = vld [vmem:[%s1 + $0xd60] sm:$0xff]
  %v451 = vld [vmem:[%s1 + $0xd68] sm:$0xff]
  %v452 = vld [vmem:[%s1 + $0xd70] sm:$0xff]
  %v453 = vld [vmem:[%s1 + $0xd78] sm:$0xff]
  %v454 = vld [vmem:[%s1 + $0xd80] sm:$0xff]
  %v455 = vld [vmem:[%s1 + $0xd88] sm:$0xff]
  %v456 = vld [vmem:[%s1 + $0xd90] sm:$0xff]
  %v457 = vld [vmem:[%s1 + $0xd98] sm:$0xff]
  %v458 = vld [vmem:[%s1 + $0xda0] sm:$0xff]
  %v459 = vld [vmem:[%s1 + $0xda8] sm:$0xff]
  %v460 = vld [vmem:[%s1 + $0xdb0] sm:$0xff]
  %v461 = vld [vmem:[%s1 + $0xdb8] sm:$0xff]
  %v462 = vld [vmem:[%s1 + $0xdc0] sm:$0xff]
  %v463 = vld [vmem:[%s1 + $0xdc8] sm:$0xff]
  %v464 = vld [vmem:[%s1 + $0xdd0] sm:$0xff]
  %v465 = vld [vmem:[%s1 + $0xdd8] sm:$0xff]
  %v466 = vld [vmem:[%s1 + $0xde0] sm:$0xff]
  %v467 = vld [vmem:[%s1 + $0xde8] sm:$0xff]
  %v468 = vld [vmem:[%s1 + $0xdf0] sm:$0xff]
  %v469 = vld [vmem:[%s1 + $0xdf8] sm:$0xff]
  %v470 = vld [vmem:[%s1 + $0xe00] sm:$0xff]
  %v471 = vld [vmem:[%s1 + $0xe08] sm:$0xff]
  %v472 = vld [vmem:[%s1 + $0xe10] sm:$0xff]
  %v473 = vld [vmem:[%s1 + $0xe18] sm:$0xff]
  %v474 = vld [vmem:[%s1 + $0xe20] sm:$0xff]
  %v475 = vld [vmem:[%s1 + $0xe28] sm:$0xff]
  %v476 = vld [vmem:[%s1 + $0xe30] sm:$0xff]
  %v477 = vld [vmem:[%s1 + $0xe38] sm:$0xff]
  %v478 = vld [vmem:[%s1 + $0xe40] sm:$0xff]
  %v479 = vld [vmem:[%s1 + $0xe48] sm:$0xff]
  %v480 = vld [vmem:[%s1 + $0xe50] sm:$0xff]
  %v481 = vld [vmem:[%s1 + $0xe58] sm:$0xff]
  %v482 = vld [vmem:[%s1 + $0xe60] sm:$0xff]
  %v483 = vld [vmem:[%s1 + $0xe68] sm:$0xff]
  %v484 = vld [vmem:[%s1 + $0xe70] sm:$0xff]
  %v485 = vld [vmem:[%s1 + $0xe78] sm:$0xff]
  %v486 = vld [vmem:[%s1 + $0xe80] sm:$0xff]
  %v487 = vld [vmem:[%s1 + $0xe88] sm:$0xff]
  %v488 = vld [vmem:[%s1 + $0xe90] sm:$0xff]
  %v489 = vld [vmem:[%s1 + $0xe98] sm:$0xff]
  %v490 = vld [vmem:[%s1 + $0xea0] sm:$0xff]
  %v491 = vld [vmem:[%s1 + $0xea8] sm:$0xff]
  %v492 = vld [vmem:[%s1 + $0xeb0] sm:$0xff]
  %v493 = vld [vmem:[%s1 + $0xeb8] sm:$0xff]
  %v494 = vld [vmem:[%s1 + $0xec0] sm:$0xff]
  %v495 = vld [vmem:[%s1 + $0xec8] sm:$0xff]
  %v496 = vld [vmem:[%s1 + $0xed0] sm:$0xff]
  %v497 = vld [vmem:[%s1 + $0xed8] sm:$0xff]
  %v498 = vld [vmem:[%s1 + $0xee0] sm:$0xff]
  %v499 = vld [vmem:[%s1 + $0xee8] sm:$0xff]
  %v500 = vld [vmem:[%s1 + $0xef0] sm:$0xff]
  %v501 = vld [vmem:[%s1 + $0xef8] sm:$0xff]
  %v502 = vld [vmem:[%s1 + $0xf00] sm:$0xff]
  %v503 = vld [vmem:[%s1 + $0xf08] sm:$0xff]
  %v504 = vld [vmem:[%s1 + $0xf10] sm:$0xff]
  %v505 = vld [vmem:[%s1 + $0xf18] sm:$0xff]
  %v506 = vld [vmem:[%s1 + $0xf20] sm:$0xff]
  %v507 = vld [vmem:[%s1 + $0xf28] sm:$0xff]
  %v508 = vld [vmem:[%s1 + $0xf30] sm:$0xff]
  %v509 = vld [vmem:[%s1 + $0xf38] sm:$0xff]
  %v510 = vld [vmem:[%s1 + $0xf40] sm:$0xff]
  %v511 = vld [vmem:[%s1 + $0xf48] sm:$0xff]
  %v512 = vld [vmem:[%s1 + $0xf50] sm:$0xff]
  %v513 = vld [vmem:[%s1 + $0xf58] sm:$0xff]
  %v514 = vld [vmem:[%s1 + $0xf60] sm:$0xff]
  %v515 = vld [vmem:[%s1 + $0xf68] sm:$0xff]
  %v516 = vld [vmem:[%s1 + $0xf70] sm:$0xff]
  %v517 = vld [vmem:[%s1 + $0xf78] sm:$0xff]
  %v518 = vld [vmem:[%s1 + $0xf80] sm:$0xff]
  %v519 = vld [vmem:[%s1 + $0xf88] sm:$0xff]
  %v520 = vld [vmem:[%s1 + $0xf90] sm:$0xff]
  %v521 = vld [vmem:[%s1 + $0xf98] sm:$0xff]
  %v522 = vld [vmem:[%s1 + $0xfa0] sm:$0xff]
  %v523 = vld [vmem:[%s1 + $0xfa8] sm:$0xff]
  %v524 = vld [vmem:[%s1 + $0xfb0] sm:$0xff]
  %v525 = vld [vmem:[%s1 + $0xfb8] sm:$0xff]
  %v526 = vld [vmem:[%s1 + $0xfc0] sm:$0xff]
  %v527 = vld [vmem:[%s1 + $0xfc8] sm:$0xff]
  %v528 = vld [vmem:[%s1 + $0xfd0] sm:$0xff]
  %v529 = vld [vmem:[%s1 + $0xfd8] sm:$0xff]
  %v530 = vld [vmem:[%s1 + $0xfe0] sm:$0xff]
  %v531 = vld [vmem:[%s1 + $0xfe8] sm:$0xff]
  %v532 = vld [vmem:[%s1 + $0xff0] sm:$0xff]
  %v533 = vld [vmem:[%s1 + $0xff8] sm:$0xff]
  %v534 = vld [vmem:[%s1 + $0x1000] sm:$0xff]
  %v535 = vld [vmem:[%s1 + $0x1008] sm:$0xff]
  %v536 = vld [vmem:[%s1 + $0x1010] sm:$0xff]
  %v537 = vld [vmem:[%s1 + $0x1018] sm:$0xff]
  %v538 = vld [vmem:[%s1 + $0x1020] sm:$0xff]
  %v539 = vld [vmem:[%s1 + $0x1028] sm:$0xff]
  %v540 = vld [vmem:[%s1 + $0x1030] sm:$0xff]
  %v541 = vld [vmem:[%s1 + $0x1038] sm:$0xff]
  %v542 = vld [vmem:[%s1 + $0x1040] sm:$0xff]
  %v543 = vld [vmem:[%s1 + $0x1048] sm:$0xff]
  %v544 = vld [vmem:[%s1 + $0x1050] sm:$0xff]
  %v545 = vld [vmem:[%s1 + $0x1058] sm:$0xff]
  %v546 = vld [vmem:[%s1 + $0x1060] sm:$0xff]
  %v547 = vld [vmem:[%s1 + $0x1068] sm:$0xff]
  %v548 = vld [vmem:[%s1 + $0x1070] sm:$0xff]
  %v549 = vld [vmem:[%s1 + $0x1078] sm:$0xff]
  %v550 = vld [vmem:[%s1 + $0x1080] sm:$0xff]
  %v551 = vld [vmem:[%s1 + $0x1088] sm:$0xff]
  %v552 = vld [vmem:[%s1 + $0x1090] sm:$0xff]
  %v553 = vld [vmem:[%s1 + $0x1098] sm:$0xff]
  %v554 = vld [vmem:[%s1 + $0x10a0] sm:$0xff]
  %v555 = vld [vmem:[%s1 + $0x10a8] sm:$0xff]
  %v556 = vld [vmem:[%s1 + $0x10b0] sm:$0xff]
  %v557 = vld [vmem:[%s1 + $0x10b8] sm:$0xff]
  %v558 = vld [vmem:[%s1 + $0x10c0] sm:$0xff]
  %v559 = vld [vmem:[%s1 + $0x10c8] sm:$0xff]
  %v560 = vld [vmem:[%s1 + $0x10d0] sm:$0xff]
  %v561 = vld [vmem:[%s1 + $0x10d8] sm:$0xff]
  %v562 = vld [vmem:[%s1 + $0x10e0] sm:$0xff]
  %v563 = vld [vmem:[%s1 + $0x10e8] sm:$0xff]
  %v564 = vld [vmem:[%s1 + $0x10f0] sm:$0xff]
  %v565 = vld [vmem:[%s1 + $0x10f8] sm:$0xff]
  %v566 = vld [vmem:[%s1 + $0x1100] sm:$0xff]
  %v567 = vld [vmem:[%s1 + $0x1108] sm:$0xff]
  %v568 = vld [vmem:[%s1 + $0x1110] sm:$0xff]
  %v569 = vld [vmem:[%s1 + $0x1118] sm:$0xff]
  %v570 = vld [vmem:[%s1 + $0x1120] sm:$0xff]
  %v571 = vld [vmem:[%s1 + $0x1128] sm:$0xff]
  %v572 = vld [vmem:[%s1 + $0x1130] sm:$0xff]
  %v573 = vld [vmem:[%s1 + $0x1138] sm:$0xff]
  %v574 = vld [vmem:[%s1 + $0x1140] sm:$0xff]
  %v575 = vld [vmem:[%s1 + $0x1148] sm:$0xff]
  %v576 = vld [vmem:[%s1 + $0x1150] sm:$0xff]
  %v577 = vld [vmem:[%s1 + $0x1158] sm:$0xff]
  %v578 = vld [vmem:[%s1 + $0x1160] sm:$0xff]
  %v579 = vld [vmem:[%s1 + $0x1168] sm:$0xff]
  %v580 = vld [vmem:[%s1 + $0x1170] sm:$0xff]
  %v581 = vld [vmem:[%s1 + $0x1178] sm:$0xff]
  %v582 = vld [vmem:[%s1 + $0x1180] sm:$0xff]
  %v583 = vld [vmem:[%s1 + $0x1188] sm:$0xff]
  %v584 = vld [vmem:[%s1 + $0x1190] sm:$0xff]
  %v585 = vld [vmem:[%s1 + $0x1198] sm:$0xff]
  %v586 = vld [vmem:[%s1 + $0x11a0] sm:$0xff]
  %v587 = vld [vmem:[%s1 + $0x11a8] sm:$0xff]
  %v588 = vld [vmem:[%s1 + $0x11b0] sm:$0xff]
  %v589 = vld [vmem:[%s1 + $0x11b8] sm:$0xff]
  %v590 = vld [vmem:[%s1 + $0x11c0] sm:$0xff]
  %v591 = vld [vmem:[%s1 + $0x11c8] sm:$0xff]
  %v592 = vld [vmem:[%s1 + $0x11d0] sm:$0xff]
  %v593 = vld [vmem:[%s1 + $0x11d8] sm:$0xff]
  %v594 = vld [vmem:[%s1 + $0x11e0] sm:$0xff]
  %v595 = vld [vmem:[%s1 + $0x11e8] sm:$0xff]
  %v596 = vld [vmem:[%s1 + $0x11f0] sm:$0xff]
  %v597 = vld [vmem:[%s1 + $0x11f8] sm:$0xff]
  %v598 = vld [vmem:[%s1 + $0x1200] sm:$0xff]
  %v599 = vld [vmem:[%s1 + $0x1208] sm:$0xff]
  %v600 = vld [vmem:[%s1 + $0x1210] sm:$0xff]
  %v601 = vld [vmem:[%s1 + $0x1218] sm:$0xff]
  %v602 = vld [vmem:[%s1 + $0x1220] sm:$0xff]
  %v603 = vld [vmem:[%s1 + $0x1228] sm:$0xff]
  %v604 = vld [vmem:[%s1 + $0x1230] sm:$0xff]
  %v605 = vld [vmem:[%s1 + $0x1238] sm:$0xff]
  %v606 = vld [vmem:[%s1 + $0x1240] sm:$0xff]
  %v607 = vld [vmem:[%s1 + $0x1248] sm:$0xff]
  %v608 = vld [vmem:[%s1 + $0x1250] sm:$0xff]
  %v609 = vld [vmem:[%s1 + $0x1258] sm:$0xff]
  %v610 = vld [vmem:[%s1 + $0x1260] sm:$0xff]
  %v611 = vld [vmem:[%s1 + $0x1268] sm:$0xff]
  %v612 = vld [vmem:[%s1 + $0x1270] sm:$0xff]
  %v613 = vld [vmem:[%s1 + $0x1278] sm:$0xff]
  %v614 = vld [vmem:[%s1 + $0x1280] sm:$0xff]
  %v615 = vld [vmem:[%s1 + $0x1288] sm:$0xff]
  %v616 = vld [vmem:[%s1 + $0x1290] sm:$0xff]
  %v617 = vld [vmem:[%s1 + $0x1298] sm:$0xff]
  %v618 = vld [vmem:[%s1 + $0x12a0] sm:$0xff]
  %v619 = vld [vmem:[%s1 + $0x12a8] sm:$0xff]
  %v620 = vld [vmem:[%s1 + $0x12b0] sm:$0xff]
  %v621 = vld [vmem:[%s1 + $0x12b8] sm:$0xff]
  %v622 = vld [vmem:[%s1 + $0x12c0] sm:$0xff]
  %v623 = vld [vmem:[%s1 + $0x12c8] sm:$0xff]
  %v624 = vld [vmem:[%s1 + $0x12d0] sm:$0xff]
  %v625 = vld [vmem:[%s1 + $0x12d8] sm:$0xff]
  %v626 = vld [vmem:[%s1 + $0x12e0] sm:$0xff]
  %v627 = vld [vmem:[%s1 + $0x12e8] sm:$0xff]
  %v628 = vld [vmem:[%s1 + $0x12f0] sm:$0xff]
  %v629 = vld [vmem:[%s1 + $0x12f8] sm:$0xff]
  %v630 = vld [vmem:[%s1 + $0x1300] sm:$0xff]
  %v631 = vld [vmem:[%s1 + $0x1308] sm:$0xff]
  %v632 = vld [vmem:[%s1 + $0x1310] sm:$0xff]
  %v633 = vld [vmem:[%s1 + $0x1318] sm:$0xff]
  %v634 = vld [vmem:[%s1 + $0x1320] sm:$0xff]
  %v635 = vld [vmem:[%s1 + $0x1328] sm:$0xff]
  %v636 = vld [vmem:[%s1 + $0x1330] sm:$0xff]
  %v637 = vld [vmem:[%s1 + $0x1338] sm:$0xff]
  %v638 = vld [vmem:[%s1 + $0x1340] sm:$0xff]
  %v639 = vld [vmem:[%s1 + $0x1348] sm:$0xff]
  %v640 = vld [vmem:[%s1 + $0x1350] sm:$0xff]
  %v641 = vld [vmem:[%s1 + $0x1358] sm:$0xff]
  %v642 = vld [vmem:[%s1 + $0x1360] sm:$0xff]
  %v643 = vld [vmem:[%s1 + $0x1368] sm:$0xff]
  %v644 = vld [vmem:[%s1 + $0x1370] sm:$0xff]
  %v645 = vld [vmem:[%s1 + $0x1378] sm:$0xff]
  %v646 = vld [vmem:[%s1 + $0x1380] sm:$0xff]
  %v647 = vld [vmem:[%s1 + $0x1388] sm:$0xff]
  %v648 = vld [vmem:[%s1 + $0x1390] sm:$0xff]
  %v649 = vld [vmem:[%s1 + $0x1398] sm:$0xff]
  %v650 = vld [vmem:[%s1 + $0x13a0] sm:$0xff]
  %v651 = vld [vmem:[%s1 + $0x13a8] sm:$0xff]
  %v652 = vld [vmem:[%s1 + $0x13b0] sm:$0xff]
  %v653 = vld [vmem:[%s1 + $0x13b8] sm:$0xff]
  %v654 = vld [vmem:[%s1 + $0x13c0] sm:$0xff]
  %v655 = vld [vmem:[%s1 + $0x13c8] sm:$0xff]
  %v656 = vld [vmem:[%s1 + $0x13d0] sm:$0xff]
  %v657 = vld [vmem:[%s1 + $0x13d8] sm:$0xff]
  %v658 = vld [vmem:[%s1 + $0x13e0] sm:$0xff]
  %v659 = vld [vmem:[%s1 + $0x13e8] sm:$0xff]
  %v660 = vld [vmem:[%s1 + $0x13f0] sm:$0xff]
  %v661 = vld [vmem:[%s1 + $0x13f8] sm:$0xff]
  %v662 = vld [vmem:[%s1 + $0x1400] sm:$0xff]
  %v663 = vld [vmem:[%s1 + $0x1408] sm:$0xff]
  %v664 = vld [vmem:[%s1 + $0x1410] sm:$0xff]
  %v665 = vld [vmem:[%s1 + $0x1418] sm:$0xff]
  %v666 = vld [vmem:[%s1 + $0x1420] sm:$0xff]
  %v667 = vld [vmem:[%s1 + $0x1428] sm:$0xff]
  %v668 = vld [vmem:[%s1 + $0x1430] sm:$0xff]
  %v669 = vld [vmem:[%s1 + $0x1438] sm:$0xff]
  %v670 = vld [vmem:[%s1 + $0x1440] sm:$0xff]
  %v671 = vld [vmem:[%s1 + $0x1448] sm:$0xff]
  %v672 = vld [vmem:[%s1 + $0x1450] sm:$0xff]
  %v673 = vld [vmem:[%s1 + $0x1458] sm:$0xff]
  %v674 = vld [vmem:[%s1 + $0x1460] sm:$0xff]
  %v675 = vld [vmem:[%s1 + $0x1468] sm:$0xff]
  %v676 = vld [vmem:[%s1 + $0x1470] sm:$0xff]
  %v677 = vld [vmem:[%s1 + $0x1478] sm:$0xff]
  %v678 = vld [vmem:[%s1 + $0x1480] sm:$0xff]
  %v679 = vld [vmem:[%s1 + $0x1488] sm:$0xff]
  %v680 = vld [vmem:[%s1 + $0x1490] sm:$0xff]
  %v681 = vld [vmem:[%s1 + $0x1498] sm:$0xff]
  %v682 = vld [vmem:[%s1 + $0x14a0] sm:$0xff]
  %v683 = vld [vmem:[%s1 + $0x14a8] sm:$0xff]
  %v684 = vld [vmem:[%s1 + $0x14b0] sm:$0xff]
  %v685 = vld [vmem:[%s1 + $0x14b8] sm:$0xff]
  %v686 = vld [vmem:[%s1 + $0x14c0] sm:$0xff]
  %v687 = vld [vmem:[%s1 + $0x14c8] sm:$0xff]
  %v688 = vld [vmem:[%s1 + $0x14d0] sm:$0xff]
  %v689 = vld [vmem:[%s1 + $0x14d8] sm:$0xff]
  %v690 = vld [vmem:[%s1 + $0x14e0] sm:$0xff]
  %v691 = vld [vmem:[%s1 + $0x14e8] sm:$0xff]
  %v692 = vld [vmem:[%s1 + $0x14f0] sm:$0xff]
  %v693 = vld [vmem:[%s1 + $0x14f8] sm:$0xff]
  %v694 = vld [vmem:[%s1 + $0x1500] sm:$0xff]
  %v695 = vld [vmem:[%s1 + $0x1508] sm:$0xff]
  %v696 = vld [vmem:[%s1 + $0x1510] sm:$0xff]
  %v697 = vld [vmem:[%s1 + $0x1518] sm:$0xff]
  %v698 = vld [vmem:[%s1 + $0x1520] sm:$0xff]
  %v699 = vld [vmem:[%s1 + $0x1528] sm:$0xff]
  %v700 = vld [vmem:[%s1 + $0x1530] sm:$0xff]
  %v701 = vld [vmem:[%s1 + $0x1538] sm:$0xff]
  %v702 = vld [vmem:[%s1 + $0x1540] sm:$0xff]
  %v703 = vld [vmem:[%s1 + $0x1548] sm:$0xff]
  %v704 = vld [vmem:[%s1 + $0x1550] sm:$0xff]
  %v705 = vld [vmem:[%s1 + $0x1558] sm:$0xff]
  %v706 = vld [vmem:[%s1 + $0x1560] sm:$0xff]
  %v707 = vld [vmem:[%s1 + $0x1568] sm:$0xff]
  %v708 = vld [vmem:[%s1 + $0x1570] sm:$0xff]
  %v709 = vld [vmem:[%s1 + $0x1578] sm:$0xff]
  %v710 = vld [vmem:[%s1 + $0x1580] sm:$0xff]
  %v711 = vld [vmem:[%s1 + $0x1588] sm:$0xff]
  %v712 = vld [vmem:[%s1 + $0x1590] sm:$0xff]
  %v713 = vld [vmem:[%s1 + $0x1598] sm:$0xff]
  %v714 = vld [vmem:[%s1 + $0x15a0] sm:$0xff]
  %v715 = vld [vmem:[%s1 + $0x15a8] sm:$0xff]
  %v716 = vld [vmem:[%s1 + $0x15b0] sm:$0xff]
  %v717 = vld [vmem:[%s1 + $0x15b8] sm:$0xff]
  %v718 = vld [vmem:[%s1 + $0x15c0] sm:$0xff]
  %v719 = vld [vmem:[%s1 + $0x15c8] sm:$0xff]
  %v720 = vld [vmem:[%s1 + $0x15d0] sm:$0xff]
  %v721 = vld [vmem:[%s1 + $0x15d8] sm:$0xff]
  %v722 = vld [vmem:[%s1 + $0x15e0] sm:$0xff]
  %v723 = vld [vmem:[%s1 + $0x15e8] sm:$0xff]
  %v724 = vld [vmem:[%s1 + $0x15f0] sm:$0xff]
  %v725 = vld [vmem:[%s1 + $0x15f8] sm:$0xff]
  %v726 = vld [vmem:[%s1 + $0x1600] sm:$0xff]
  %v727 = vld [vmem:[%s1 + $0x1608] sm:$0xff]
  %v728 = vld [vmem:[%s1 + $0x1610] sm:$0xff]
  %v729 = vld [vmem:[%s1 + $0x1618] sm:$0xff]
  %v730 = vld [vmem:[%s1 + $0x1620] sm:$0xff]
  %v731 = vld [vmem:[%s1 + $0x1628] sm:$0xff]
  %v732 = vld [vmem:[%s1 + $0x1630] sm:$0xff]
  %v733 = vld [vmem:[%s1 + $0x1638] sm:$0xff]
  %v734 = vld [vmem:[%s1 + $0x1640] sm:$0xff]
  %v735 = vld [vmem:[%s1 + $0x1648] sm:$0xff]
  %v736 = vld [vmem:[%s1 + $0x1650] sm:$0xff]
  %v737 = vld [vmem:[%s1 + $0x1658] sm:$0xff]
  %v738 = vld [vmem:[%s1 + $0x1660] sm:$0xff]
  %v739 = vld [vmem:[%s1 + $0x1668] sm:$0xff]
  %v740 = vld [vmem:[%s1 + $0x1670] sm:$0xff]
  %v741 = vld [vmem:[%s1 + $0x1678] sm:$0xff]
  %v742 = vld [vmem:[%s1 + $0x1680] sm:$0xff]
  %v743 = vld [vmem:[%s1 + $0x1688] sm:$0xff]
  %v744 = vld [vmem:[%s1 + $0x1690] sm:$0xff]
  %v745 = vld [vmem:[%s1 + $0x1698] sm:$0xff]
  %v746 = vld [vmem:[%s1 + $0x16a0] sm:$0xff]
  %v747 = vld [vmem:[%s1 + $0x16a8] sm:$0xff]
  %v748 = vld [vmem:[%s1 + $0x16b0] sm:$0xff]
  %v749 = vld [vmem:[%s1 + $0x16b8] sm:$0xff]
  %v750 = vld [vmem:[%s1 + $0x16c0] sm:$0xff]
  %v751 = vld [vmem:[%s1 + $0x16c8] sm:$0xff]
  %v752 = vld [vmem:[%s1 + $0x16d0] sm:$0xff]
  %v753 = vld [vmem:[%s1 + $0x16d8] sm:$0xff]
  %v754 = vld [vmem:[%s1 + $0x16e0] sm:$0xff]
  %v755 = vld [vmem:[%s1 + $0x16e8] sm:$0xff]
  %v756 = vld [vmem:[%s1 + $0x16f0] sm:$0xff]
  %v757 = vld [vmem:[%s1 + $0x16f8] sm:$0xff]
  %v758 = vld [vmem:[%s1 + $0x1700] sm:$0xff]
  %v759 = vld [vmem:[%s1 + $0x1708] sm:$0xff]
  %v760 = vld [vmem:[%s1 + $0x1710] sm:$0xff]
  %v761 = vld [vmem:[%s1 + $0x1718] sm:$0xff]
  %v762 = vld [vmem:[%s1 + $0x1720] sm:$0xff]
  %v763 = vld [vmem:[%s1 + $0x1728] sm:$0xff]
  %v764 = vld [vmem:[%s1 + $0x1730] sm:$0xff]
  %v765 = vld [vmem:[%s1 + $0x1738] sm:$0xff]
  %v766 = vld [vmem:[%s1 + $0x1740] sm:$0xff]
  %v767 = vld [vmem:[%s1 + $0x1748] sm:$0xff]
  %v768 = vld [vmem:[%s1 + $0x1750] sm:$0xff]
  %v769 = vld [vmem:[%s1 + $0x1758] sm:$0xff]
  %v770 = vld [vmem:[%s1 + $0x1760] sm:$0xff]
  %v771 = vld [vmem:[%s1 + $0x1768] sm:$0xff]
  %v772 = vld [vmem:[%s1 + $0x1770] sm:$0xff]
  %v773 = vld [vmem:[%s1 + $0x1778] sm:$0xff]
  %v774 = vld [vmem:[%s1 + $0x1780] sm:$0xff]
  %v775 = vld [vmem:[%s1 + $0x1788] sm:$0xff]
  %v776 = vld [vmem:[%s1 + $0x1790] sm:$0xff]
  %v777 = vld [vmem:[%s1 + $0x1798] sm:$0xff]
  %v778 = vld [vmem:[%s1 + $0x17a0] sm:$0xff]
  %v779 = vld [vmem:[%s1 + $0x17a8] sm:$0xff]
  %v780 = vld [vmem:[%s1 + $0x17b0] sm:$0xff]
  %v781 = vld [vmem:[%s1 + $0x17b8] sm:$0xff]
  %v782 = vld [vmem:[%s1 + $0x17c0] sm:$0xff]
  %v783 = vld [vmem:[%s1 + $0x17c8] sm:$0xff]
  %v784 = vld [vmem:[%s1 + $0x17d0] sm:$0xff]
  %v785 = vld [vmem:[%s1 + $0x17d8] sm:$0xff]
  %v786 = vld [vmem:[%s1 + $0x17e0] sm:$0xff]
  %v787 = vld [vmem:[%s1 + $0x17e8] sm:$0xff]
  %v788 = vld [vmem:[%s1 + $0x17f0] sm:$0xff]
  %v789 = vld [vmem:[%s1 + $0x17f8] sm:$0xff]
  %v790 = vld [vmem:[%s2] sm:$0x3f]
  %v792 = vperm.slane %v790, 0
  %v793 = vperm.slane %v790, 1
  %v794 = vperm.slane %v790, 2
  %v795 = vperm.slane %v790, 3
  %v796 = vperm.slane %v790, 4
  %v797 = vperm.slane %v790, 5
  %804 = vmatpush.msra.mxu0 %v112
  %805 = vmatpush.msra.mxu0 %v106
  %806 = vmatpush.msra.mxu0 %v100
  %807 = vmatpush.msra.mxu0 %v94
  %808 = vmatpush.msra.mxu0 %v88
  %809 = vmatpush.msra.mxu0 %v82
  %810 = vmatpush.msra.mxu0 %v76
  %811 = vmatpush.msra.mxu0 %v70
  %812 = vmatpush.msra.mxu0 %v64
  %813 = vmatpush.msra.mxu0 %v58
  %814 = vmatpush.msra.mxu0 %v52
  %815 = vmatpush.msra.mxu0 %v46
  %816 = vmatpush.msra.mxu0 %v40
  %817 = vmatpush.msra.mxu0 %v34
  %818 = vmatpush.msra.mxu0 %v28
  %819 = vmatpush.msra.mxu0 %v22
  %820 = vmatmul.f32.gmra.mxu0 %v14
  %v821 = vpop.f32.mrf.mxu0
  %v822 = vadd.f32 %v792, %v821
  %823 = vdwg.mxu0
  %824 = vmatpush.msra.mxu0 %v208
  %825 = vmatpush.msra.mxu0 %v202
  %826 = vmatpush.msra.mxu0 %v196
  %827 = vmatpush.msra.mxu0 %v190
  %828 = vmatpush.msra.mxu0 %v184
  %829 = vmatpush.msra.mxu0 %v178
  %830 = vmatpush.msra.mxu0 %v172
  %831 = vmatpush.msra.mxu0 %v166
  %832 = vmatpush.msra.mxu0 %v160
  %833 = vmatpush.msra.mxu0 %v154
  %834 = vmatpush.msra.mxu0 %v148
  %835 = vmatpush.msra.mxu0 %v142
  %836 = vmatpush.msra.mxu0 %v136
  %837 = vmatpush.msra.mxu0 %v130
  %838 = vmatpush.msra.mxu0 %v124
  %839 = vmatpush.msra.mxu0 %v118
  %840 = vmatmul.f32.gmra.mxu0 %v15
  %v841 = vpop.f32.mrf.mxu0
  %v842 = vadd.f32 %v822, %v841
  %843 = vdwg.mxu0
  %844 = vmatpush.msra.mxu0 %v304
  %845 = vmatpush.msra.mxu0 %v298
  %846 = vmatpush.msra.mxu0 %v292
  %847 = vmatpush.msra.mxu0 %v286
  %848 = vmatpush.msra.mxu0 %v280
  %849 = vmatpush.msra.mxu0 %v274
  %850 = vmatpush.msra.mxu0 %v268
  %851 = vmatpush.msra.mxu0 %v262
  %852 = vmatpush.msra.mxu0 %v256
  %853 = vmatpush.msra.mxu0 %v250
  %854 = vmatpush.msra.mxu0 %v244
  %855 = vmatpush.msra.mxu0 %v238
  %856 = vmatpush.msra.mxu0 %v232
  %857 = vmatpush.msra.mxu0 %v226
  %858 = vmatpush.msra.mxu0 %v220
  %859 = vmatpush.msra.mxu0 %v214
  %860 = vmatmul.f32.gmra.mxu0 %v16
  %v861 = vpop.f32.mrf.mxu0
  %v862 = vadd.f32 %v842, %v861
  %863 = vdwg.mxu0
  %864 = vmatpush.msra.mxu0 %v400
  %865 = vmatpush.msra.mxu0 %v394
  %866 = vmatpush.msra.mxu0 %v388
  %867 = vmatpush.msra.mxu0 %v382
  %868 = vmatpush.msra.mxu0 %v376
  %869 = vmatpush.msra.mxu0 %v370
  %870 = vmatpush.msra.mxu0 %v364
  %871 = vmatpush.msra.mxu0 %v358
  %872 = vmatpush.msra.mxu0 %v352
  %873 = vmatpush.msra.mxu0 %v346
  %874 = vmatpush.msra.mxu0 %v340
  %875 = vmatpush.msra.mxu0 %v334
  %876 = vmatpush.msra.mxu0 %v328
  %877 = vmatpush.msra.mxu0 %v322
  %878 = vmatpush.msra.mxu0 %v316
  %879 = vmatpush.msra.mxu0 %v310
  %880 = vmatmul.f32.gmra.mxu0 %v17
  %v881 = vpop.f32.mrf.mxu0
  %v882 = vadd.f32 %v862, %v881
  %883 = vdwg.mxu0
  %884 = vmatpush.msra.mxu0 %v496
  %885 = vmatpush.msra.mxu0 %v490
  %886 = vmatpush.msra.mxu0 %v484
  %887 = vmatpush.msra.mxu0 %v478
  %888 = vmatpush.msra.mxu0 %v472
  %889 = vmatpush.msra.mxu0 %v466
  %890 = vmatpush.msra.mxu0 %v460
  %891 = vmatpush.msra.mxu0 %v454
  %892 = vmatpush.msra.mxu0 %v448
  %893 = vmatpush.msra.mxu0 %v442
  %894 = vmatpush.msra.mxu0 %v436
  %895 = vmatpush.msra.mxu0 %v430
  %896 = vmatpush.msra.mxu0 %v424
  %897 = vmatpush.msra.mxu0 %v418
  %898 = vmatpush.msra.mxu0 %v412
  %899 = vmatpush.msra.mxu0 %v406
  %900 = vmatmul.f32.gmra.mxu0 %v18
  %v901 = vpop.f32.mrf.mxu0
  %v902 = vadd.f32 %v882, %v901
  %903 = vdwg.mxu0
  %904 = vmatpush.msra.mxu0 %v592
  %905 = vmatpush.msra.mxu0 %v586
  %906 = vmatpush.msra.mxu0 %v580
  %907 = vmatpush.msra.mxu0 %v574
  %908 = vmatpush.msra.mxu0 %v568
  %909 = vmatpush.msra.mxu0 %v562
  %910 = vmatpush.msra.mxu0 %v556
  %911 = vmatpush.msra.mxu0 %v550
  %912 = vmatpush.msra.mxu0 %v544
  %913 = vmatpush.msra.mxu0 %v538
  %914 = vmatpush.msra.mxu0 %v532
  %915 = vmatpush.msra.mxu0 %v526
  %916 = vmatpush.msra.mxu0 %v520
  %917 = vmatpush.msra.mxu0 %v514
  %918 = vmatpush.msra.mxu0 %v508
  %919 = vmatpush.msra.mxu0 %v502
  %920 = vmatmul.f32.gmra.mxu0 %v19
  %v921 = vpop.f32.mrf.mxu0
  %v922 = vadd.f32 %v902, %v921
  %923 = vdwg.mxu0
  %924 = vmatpush.msra.mxu0 %v688
  %925 = vmatpush.msra.mxu0 %v682
  %926 = vmatpush.msra.mxu0 %v676
  %927 = vmatpush.msra.mxu0 %v670
  %928 = vmatpush.msra.mxu0 %v664
  %929 = vmatpush.msra.mxu0 %v658
  %930 = vmatpush.msra.mxu0 %v652
  %931 = vmatpush.msra.mxu0 %v646
  %932 = vmatpush.msra.mxu0 %v640
  %933 = vmatpush.msra.mxu0 %v634
  %934 = vmatpush.msra.mxu0 %v628
  %935 = vmatpush.msra.mxu0 %v622
  %936 = vmatpush.msra.mxu0 %v616
  %937 = vmatpush.msra.mxu0 %v610
  %938 = vmatpush.msra.mxu0 %v604
  %939 = vmatpush.msra.mxu0 %v598
  %940 = vmatmul.f32.gmra.mxu0 %v20
  %v941 = vpop.f32.mrf.mxu0
  %v942 = vadd.f32 %v922, %v941
  %943 = vdwg.mxu0
  %944 = vmatpush.msra.mxu0 %v784
  %945 = vmatpush.msra.mxu0 %v778
  %946 = vmatpush.msra.mxu0 %v772
  %947 = vmatpush.msra.mxu0 %v766
  %948 = vmatpush.msra.mxu0 %v760
  %949 = vmatpush.msra.mxu0 %v754
  %950 = vmatpush.msra.mxu0 %v748
  %951 = vmatpush.msra.mxu0 %v742
  %952 = vmatpush.msra.mxu0 %v736
  %953 = vmatpush.msra.mxu0 %v730
  %954 = vmatpush.msra.mxu0 %v724
  %955 = vmatpush.msra.mxu0 %v718
  %956 = vmatpush.msra.mxu0 %v712
  %957 = vmatpush.msra.mxu0 %v706
  %958 = vmatpush.msra.mxu0 %v700
  %959 = vmatpush.msra.mxu0 %v694
  %960 = vmatmul.f32.gmra.mxu0 %v21
  %v961 = vpop.f32.mrf.mxu0
  %v962 = vadd.f32 %v942, %v961
  %963 = vdwg.mxu0
  %964 = vmatpush.msra.mxu0 %v113
  %965 = vmatpush.msra.mxu0 %v107
  %966 = vmatpush.msra.mxu0 %v101
  %967 = vmatpush.msra.mxu0 %v95
  %968 = vmatpush.msra.mxu0 %v89
  %969 = vmatpush.msra.mxu0 %v83
  %970 = vmatpush.msra.mxu0 %v77
  %971 = vmatpush.msra.mxu0 %v71
  %972 = vmatpush.msra.mxu0 %v65
  %973 = vmatpush.msra.mxu0 %v59
  %974 = vmatpush.msra.mxu0 %v53
  %975 = vmatpush.msra.mxu0 %v47
  %976 = vmatpush.msra.mxu0 %v41
  %977 = vmatpush.msra.mxu0 %v35
  %978 = vmatpush.msra.mxu0 %v29
  %979 = vmatpush.msra.mxu0 %v23
  %980 = vmatmul.f32.gmra.mxu0 %v14
  %v981 = vpop.f32.mrf.mxu0
  %v982 = vadd.f32 %v793, %v981
  %983 = vdwg.mxu0
  %984 = vmatpush.msra.mxu0 %v209
  %985 = vmatpush.msra.mxu0 %v203
  %986 = vmatpush.msra.mxu0 %v197
  %987 = vmatpush.msra.mxu0 %v191
  %988 = vmatpush.msra.mxu0 %v185
  %989 = vmatpush.msra.mxu0 %v179
  %990 = vmatpush.msra.mxu0 %v173
  %991 = vmatpush.msra.mxu0 %v167
  %992 = vmatpush.msra.mxu0 %v161
  %993 = vmatpush.msra.mxu0 %v155
  %994 = vmatpush.msra.mxu0 %v149
  %995 = vmatpush.msra.mxu0 %v143
  %996 = vmatpush.msra.mxu0 %v137
  %997 = vmatpush.msra.mxu0 %v131
  %998 = vmatpush.msra.mxu0 %v125
  %999 = vmatpush.msra.mxu0 %v119
  %1000 = vmatmul.f32.gmra.mxu0 %v15
  %v1001 = vpop.f32.mrf.mxu0
  %v1002 = vadd.f32 %v982, %v1001
  %1003 = vdwg.mxu0
  %1004 = vmatpush.msra.mxu0 %v305
  %1005 = vmatpush.msra.mxu0 %v299
  %1006 = vmatpush.msra.mxu0 %v293
  %1007 = vmatpush.msra.mxu0 %v287
  %1008 = vmatpush.msra.mxu0 %v281
  %1009 = vmatpush.msra.mxu0 %v275
  %1010 = vmatpush.msra.mxu0 %v269
  %1011 = vmatpush.msra.mxu0 %v263
  %1012 = vmatpush.msra.mxu0 %v257
  %1013 = vmatpush.msra.mxu0 %v251
  %1014 = vmatpush.msra.mxu0 %v245
  %1015 = vmatpush.msra.mxu0 %v239
  %1016 = vmatpush.msra.mxu0 %v233
  %1017 = vmatpush.msra.mxu0 %v227
  %1018 = vmatpush.msra.mxu0 %v221
  %1019 = vmatpush.msra.mxu0 %v215
  %1020 = vmatmul.f32.gmra.mxu0 %v16
  %v1021 = vpop.f32.mrf.mxu0
  %v1022 = vadd.f32 %v1002, %v1021
  %1023 = vdwg.mxu0
  %1024 = vmatpush.msra.mxu0 %v401
  %1025 = vmatpush.msra.mxu0 %v395
  %1026 = vmatpush.msra.mxu0 %v389
  %1027 = vmatpush.msra.mxu0 %v383
  %1028 = vmatpush.msra.mxu0 %v377
  %1029 = vmatpush.msra.mxu0 %v371
  %1030 = vmatpush.msra.mxu0 %v365
  %1031 = vmatpush.msra.mxu0 %v359
  %1032 = vmatpush.msra.mxu0 %v353
  %1033 = vmatpush.msra.mxu0 %v347
  %1034 = vmatpush.msra.mxu0 %v341
  %1035 = vmatpush.msra.mxu0 %v335
  %1036 = vmatpush.msra.mxu0 %v329
  %1037 = vmatpush.msra.mxu0 %v323
  %1038 = vmatpush.msra.mxu0 %v317
  %1039 = vmatpush.msra.mxu0 %v311
  %1040 = vmatmul.f32.gmra.mxu0 %v17
  %v1041 = vpop.f32.mrf.mxu0
  %v1042 = vadd.f32 %v1022, %v1041
  %1043 = vdwg.mxu0
  %1044 = vmatpush.msra.mxu0 %v497
  %1045 = vmatpush.msra.mxu0 %v491
  %1046 = vmatpush.msra.mxu0 %v485
  %1047 = vmatpush.msra.mxu0 %v479
  %1048 = vmatpush.msra.mxu0 %v473
  %1049 = vmatpush.msra.mxu0 %v467
  %1050 = vmatpush.msra.mxu0 %v461
  %1051 = vmatpush.msra.mxu0 %v455
  %1052 = vmatpush.msra.mxu0 %v449
  %1053 = vmatpush.msra.mxu0 %v443
  %1054 = vmatpush.msra.mxu0 %v437
  %1055 = vmatpush.msra.mxu0 %v431
  %1056 = vmatpush.msra.mxu0 %v425
  %1057 = vmatpush.msra.mxu0 %v419
  %1058 = vmatpush.msra.mxu0 %v413
  %1059 = vmatpush.msra.mxu0 %v407
  %1060 = vmatmul.f32.gmra.mxu0 %v18
  %v1061 = vpop.f32.mrf.mxu0
  %v1062 = vadd.f32 %v1042, %v1061
  %1063 = vdwg.mxu0
  %1064 = vmatpush.msra.mxu0 %v593
  %1065 = vmatpush.msra.mxu0 %v587
  %1066 = vmatpush.msra.mxu0 %v581
  %1067 = vmatpush.msra.mxu0 %v575
  %1068 = vmatpush.msra.mxu0 %v569
  %1069 = vmatpush.msra.mxu0 %v563
  %1070 = vmatpush.msra.mxu0 %v557
  %1071 = vmatpush.msra.mxu0 %v551
  %1072 = vmatpush.msra.mxu0 %v545
  %1073 = vmatpush.msra.mxu0 %v539
  %1074 = vmatpush.msra.mxu0 %v533
  %1075 = vmatpush.msra.mxu0 %v527
  %1076 = vmatpush.msra.mxu0 %v521
  %1077 = vmatpush.msra.mxu0 %v515
  %1078 = vmatpush.msra.mxu0 %v509
  %1079 = vmatpush.msra.mxu0 %v503
  %1080 = vmatmul.f32.gmra.mxu0 %v19
  %v1081 = vpop.f32.mrf.mxu0
  %v1082 = vadd.f32 %v1062, %v1081
  %1083 = vdwg.mxu0
  %1084 = vmatpush.msra.mxu0 %v689
  %1085 = vmatpush.msra.mxu0 %v683
  %1086 = vmatpush.msra.mxu0 %v677
  %1087 = vmatpush.msra.mxu0 %v671
  %1088 = vmatpush.msra.mxu0 %v665
  %1089 = vmatpush.msra.mxu0 %v659
  %1090 = vmatpush.msra.mxu0 %v653
  %1091 = vmatpush.msra.mxu0 %v647
  %1092 = vmatpush.msra.mxu0 %v641
  %1093 = vmatpush.msra.mxu0 %v635
  %1094 = vmatpush.msra.mxu0 %v629
  %1095 = vmatpush.msra.mxu0 %v623
  %1096 = vmatpush.msra.mxu0 %v617
  %1097 = vmatpush.msra.mxu0 %v611
  %1098 = vmatpush.msra.mxu0 %v605
  %1099 = vmatpush.msra.mxu0 %v599
  %1100 = vmatmul.f32.gmra.mxu0 %v20
  %v1101 = vpop.f32.mrf.mxu0
  %v1102 = vadd.f32 %v1082, %v1101
  %1103 = vdwg.mxu0
  %1104 = vmatpush.msra.mxu0 %v785
  %1105 = vmatpush.msra.mxu0 %v779
  %1106 = vmatpush.msra.mxu0 %v773
  %1107 = vmatpush.msra.mxu0 %v767
  %1108 = vmatpush.msra.mxu0 %v761
  %1109 = vmatpush.msra.mxu0 %v755
  %1110 = vmatpush.msra.mxu0 %v749
  %1111 = vmatpush.msra.mxu0 %v743
  %1112 = vmatpush.msra.mxu0 %v737
  %1113 = vmatpush.msra.mxu0 %v731
  %1114 = vmatpush.msra.mxu0 %v725
  %1115 = vmatpush.msra.mxu0 %v719
  %1116 = vmatpush.msra.mxu0 %v713
  %1117 = vmatpush.msra.mxu0 %v707
  %1118 = vmatpush.msra.mxu0 %v701
  %1119 = vmatpush.msra.mxu0 %v695
  %1120 = vmatmul.f32.gmra.mxu0 %v21
  %v1121 = vpop.f32.mrf.mxu0
  %v1122 = vadd.f32 %v1102, %v1121
  %1123 = vdwg.mxu0
  %1124 = vmatpush.msra.mxu0 %v114
  %1125 = vmatpush.msra.mxu0 %v108
  %1126 = vmatpush.msra.mxu0 %v102
  %1127 = vmatpush.msra.mxu0 %v96
  %1128 = vmatpush.msra.mxu0 %v90
  %1129 = vmatpush.msra.mxu0 %v84
  %1130 = vmatpush.msra.mxu0 %v78
  %1131 = vmatpush.msra.mxu0 %v72
  %1132 = vmatpush.msra.mxu0 %v66
  %1133 = vmatpush.msra.mxu0 %v60
  %1134 = vmatpush.msra.mxu0 %v54
  %1135 = vmatpush.msra.mxu0 %v48
  %1136 = vmatpush.msra.mxu0 %v42
  %1137 = vmatpush.msra.mxu0 %v36
  %1138 = vmatpush.msra.mxu0 %v30
  %1139 = vmatpush.msra.mxu0 %v24
  %1140 = vmatmul.f32.gmra.mxu0 %v14
  %v1141 = vpop.f32.mrf.mxu0
  %v1142 = vadd.f32 %v794, %v1141
  %1143 = vdwg.mxu0
  %1144 = vmatpush.msra.mxu0 %v210
  %1145 = vmatpush.msra.mxu0 %v204
  %1146 = vmatpush.msra.mxu0 %v198
  %1147 = vmatpush.msra.mxu0 %v192
  %1148 = vmatpush.msra.mxu0 %v186
  %1149 = vmatpush.msra.mxu0 %v180
  %1150 = vmatpush.msra.mxu0 %v174
  %1151 = vmatpush.msra.mxu0 %v168
  %1152 = vmatpush.msra.mxu0 %v162
  %1153 = vmatpush.msra.mxu0 %v156
  %1154 = vmatpush.msra.mxu0 %v150
  %1155 = vmatpush.msra.mxu0 %v144
  %1156 = vmatpush.msra.mxu0 %v138
  %1157 = vmatpush.msra.mxu0 %v132
  %1158 = vmatpush.msra.mxu0 %v126
  %1159 = vmatpush.msra.mxu0 %v120
  %1160 = vmatmul.f32.gmra.mxu0 %v15
  %v1161 = vpop.f32.mrf.mxu0
  %v1162 = vadd.f32 %v1142, %v1161
  %1163 = vdwg.mxu0
  %1164 = vmatpush.msra.mxu0 %v306
  %1165 = vmatpush.msra.mxu0 %v300
  %1166 = vmatpush.msra.mxu0 %v294
  %1167 = vmatpush.msra.mxu0 %v288
  %1168 = vmatpush.msra.mxu0 %v282
  %1169 = vmatpush.msra.mxu0 %v276
  %1170 = vmatpush.msra.mxu0 %v270
  %1171 = vmatpush.msra.mxu0 %v264
  %1172 = vmatpush.msra.mxu0 %v258
  %1173 = vmatpush.msra.mxu0 %v252
  %1174 = vmatpush.msra.mxu0 %v246
  %1175 = vmatpush.msra.mxu0 %v240
  %1176 = vmatpush.msra.mxu0 %v234
  %1177 = vmatpush.msra.mxu0 %v228
  %1178 = vmatpush.msra.mxu0 %v222
  %1179 = vmatpush.msra.mxu0 %v216
  %1180 = vmatmul.f32.gmra.mxu0 %v16
  %v1181 = vpop.f32.mrf.mxu0
  %v1182 = vadd.f32 %v1162, %v1181
  %1183 = vdwg.mxu0
  %1184 = vmatpush.msra.mxu0 %v402
  %1185 = vmatpush.msra.mxu0 %v396
  %1186 = vmatpush.msra.mxu0 %v390
  %1187 = vmatpush.msra.mxu0 %v384
  %1188 = vmatpush.msra.mxu0 %v378
  %1189 = vmatpush.msra.mxu0 %v372
  %1190 = vmatpush.msra.mxu0 %v366
  %1191 = vmatpush.msra.mxu0 %v360
  %1192 = vmatpush.msra.mxu0 %v354
  %1193 = vmatpush.msra.mxu0 %v348
  %1194 = vmatpush.msra.mxu0 %v342
  %1195 = vmatpush.msra.mxu0 %v336
  %1196 = vmatpush.msra.mxu0 %v330
  %1197 = vmatpush.msra.mxu0 %v324
  %1198 = vmatpush.msra.mxu0 %v318
  %1199 = vmatpush.msra.mxu0 %v312
  %1200 = vmatmul.f32.gmra.mxu0 %v17
  %v1201 = vpop.f32.mrf.mxu0
  %v1202 = vadd.f32 %v1182, %v1201
  %1203 = vdwg.mxu0
  %1204 = vmatpush.msra.mxu0 %v498
  %1205 = vmatpush.msra.mxu0 %v492
  %1206 = vmatpush.msra.mxu0 %v486
  %1207 = vmatpush.msra.mxu0 %v480
  %1208 = vmatpush.msra.mxu0 %v474
  %1209 = vmatpush.msra.mxu0 %v468
  %1210 = vmatpush.msra.mxu0 %v462
  %1211 = vmatpush.msra.mxu0 %v456
  %1212 = vmatpush.msra.mxu0 %v450
  %1213 = vmatpush.msra.mxu0 %v444
  %1214 = vmatpush.msra.mxu0 %v438
  %1215 = vmatpush.msra.mxu0 %v432
  %1216 = vmatpush.msra.mxu0 %v426
  %1217 = vmatpush.msra.mxu0 %v420
  %1218 = vmatpush.msra.mxu0 %v414
  %1219 = vmatpush.msra.mxu0 %v408
  %1220 = vmatmul.f32.gmra.mxu0 %v18
  %v1221 = vpop.f32.mrf.mxu0
  %v1222 = vadd.f32 %v1202, %v1221
  %1223 = vdwg.mxu0
  %1224 = vmatpush.msra.mxu0 %v594
  %1225 = vmatpush.msra.mxu0 %v588
  %1226 = vmatpush.msra.mxu0 %v582
  %1227 = vmatpush.msra.mxu0 %v576
  %1228 = vmatpush.msra.mxu0 %v570
  %1229 = vmatpush.msra.mxu0 %v564
  %1230 = vmatpush.msra.mxu0 %v558
  %1231 = vmatpush.msra.mxu0 %v552
  %1232 = vmatpush.msra.mxu0 %v546
  %1233 = vmatpush.msra.mxu0 %v540
  %1234 = vmatpush.msra.mxu0 %v534
  %1235 = vmatpush.msra.mxu0 %v528
  %1236 = vmatpush.msra.mxu0 %v522
  %1237 = vmatpush.msra.mxu0 %v516
  %1238 = vmatpush.msra.mxu0 %v510
  %1239 = vmatpush.msra.mxu0 %v504
  %1240 = vmatmul.f32.gmra.mxu0 %v19
  %v1241 = vpop.f32.mrf.mxu0
  %v1242 = vadd.f32 %v1222, %v1241
  %1243 = vdwg.mxu0
  %1244 = vmatpush.msra.mxu0 %v690
  %1245 = vmatpush.msra.mxu0 %v684
  %1246 = vmatpush.msra.mxu0 %v678
  %1247 = vmatpush.msra.mxu0 %v672
  %1248 = vmatpush.msra.mxu0 %v666
  %1249 = vmatpush.msra.mxu0 %v660
  %1250 = vmatpush.msra.mxu0 %v654
  %1251 = vmatpush.msra.mxu0 %v648
  %1252 = vmatpush.msra.mxu0 %v642
  %1253 = vmatpush.msra.mxu0 %v636
  %1254 = vmatpush.msra.mxu0 %v630
  %1255 = vmatpush.msra.mxu0 %v624
  %1256 = vmatpush.msra.mxu0 %v618
  %1257 = vmatpush.msra.mxu0 %v612
  %1258 = vmatpush.msra.mxu0 %v606
  %1259 = vmatpush.msra.mxu0 %v600
  %1260 = vmatmul.f32.gmra.mxu0 %v20
  %v1261 = vpop.f32.mrf.mxu0
  %v1262 = vadd.f32 %v1242, %v1261
  %1263 = vdwg.mxu0
  %1264 = vmatpush.msra.mxu0 %v786
  %1265 = vmatpush.msra.mxu0 %v780
  %1266 = vmatpush.msra.mxu0 %v774
  %1267 = vmatpush.msra.mxu0 %v768
  %1268 = vmatpush.msra.mxu0 %v762
  %1269 = vmatpush.msra.mxu0 %v756
  %1270 = vmatpush.msra.mxu0 %v750
  %1271 = vmatpush.msra.mxu0 %v744
  %1272 = vmatpush.msra.mxu0 %v738
  %1273 = vmatpush.msra.mxu0 %v732
  %1274 = vmatpush.msra.mxu0 %v726
  %1275 = vmatpush.msra.mxu0 %v720
  %1276 = vmatpush.msra.mxu0 %v714
  %1277 = vmatpush.msra.mxu0 %v708
  %1278 = vmatpush.msra.mxu0 %v702
  %1279 = vmatpush.msra.mxu0 %v696
  %1280 = vmatmul.f32.gmra.mxu0 %v21
  %v1281 = vpop.f32.mrf.mxu0
  %v1282 = vadd.f32 %v1262, %v1281
  %1283 = vdwg.mxu0
  %1284 = vmatpush.msra.mxu0 %v115
  %1285 = vmatpush.msra.mxu0 %v109
  %1286 = vmatpush.msra.mxu0 %v103
  %1287 = vmatpush.msra.mxu0 %v97
  %1288 = vmatpush.msra.mxu0 %v91
  %1289 = vmatpush.msra.mxu0 %v85
  %1290 = vmatpush.msra.mxu0 %v79
  %1291 = vmatpush.msra.mxu0 %v73
  %1292 = vmatpush.msra.mxu0 %v67
  %1293 = vmatpush.msra.mxu0 %v61
  %1294 = vmatpush.msra.mxu0 %v55
  %1295 = vmatpush.msra.mxu0 %v49
  %1296 = vmatpush.msra.mxu0 %v43
  %1297 = vmatpush.msra.mxu0 %v37
  %1298 = vmatpush.msra.mxu0 %v31
  %1299 = vmatpush.msra.mxu0 %v25
  %1300 = vmatmul.f32.gmra.mxu0 %v14
  %v1301 = vpop.f32.mrf.mxu0
  %v1302 = vadd.f32 %v795, %v1301
  %1303 = vdwg.mxu0
  %1304 = vmatpush.msra.mxu0 %v211
  %1305 = vmatpush.msra.mxu0 %v205
  %1306 = vmatpush.msra.mxu0 %v199
  %1307 = vmatpush.msra.mxu0 %v193
  %1308 = vmatpush.msra.mxu0 %v187
  %1309 = vmatpush.msra.mxu0 %v181
  %1310 = vmatpush.msra.mxu0 %v175
  %1311 = vmatpush.msra.mxu0 %v169
  %1312 = vmatpush.msra.mxu0 %v163
  %1313 = vmatpush.msra.mxu0 %v157
  %1314 = vmatpush.msra.mxu0 %v151
  %1315 = vmatpush.msra.mxu0 %v145
  %1316 = vmatpush.msra.mxu0 %v139
  %1317 = vmatpush.msra.mxu0 %v133
  %1318 = vmatpush.msra.mxu0 %v127
  %1319 = vmatpush.msra.mxu0 %v121
  %1320 = vmatmul.f32.gmra.mxu0 %v15
  %v1321 = vpop.f32.mrf.mxu0
  %v1322 = vadd.f32 %v1302, %v1321
  %1323 = vdwg.mxu0
  %1324 = vmatpush.msra.mxu0 %v307
  %1325 = vmatpush.msra.mxu0 %v301
  %1326 = vmatpush.msra.mxu0 %v295
  %1327 = vmatpush.msra.mxu0 %v289
  %1328 = vmatpush.msra.mxu0 %v283
  %1329 = vmatpush.msra.mxu0 %v277
  %1330 = vmatpush.msra.mxu0 %v271
  %1331 = vmatpush.msra.mxu0 %v265
  %1332 = vmatpush.msra.mxu0 %v259
  %1333 = vmatpush.msra.mxu0 %v253
  %1334 = vmatpush.msra.mxu0 %v247
  %1335 = vmatpush.msra.mxu0 %v241
  %1336 = vmatpush.msra.mxu0 %v235
  %1337 = vmatpush.msra.mxu0 %v229
  %1338 = vmatpush.msra.mxu0 %v223
  %1339 = vmatpush.msra.mxu0 %v217
  %1340 = vmatmul.f32.gmra.mxu0 %v16
  %v1341 = vpop.f32.mrf.mxu0
  %v1342 = vadd.f32 %v1322, %v1341
  %1343 = vdwg.mxu0
  %1344 = vmatpush.msra.mxu0 %v403
  %1345 = vmatpush.msra.mxu0 %v397
  %1346 = vmatpush.msra.mxu0 %v391
  %1347 = vmatpush.msra.mxu0 %v385
  %1348 = vmatpush.msra.mxu0 %v379
  %1349 = vmatpush.msra.mxu0 %v373
  %1350 = vmatpush.msra.mxu0 %v367
  %1351 = vmatpush.msra.mxu0 %v361
  %1352 = vmatpush.msra.mxu0 %v355
  %1353 = vmatpush.msra.mxu0 %v349
  %1354 = vmatpush.msra.mxu0 %v343
  %1355 = vmatpush.msra.mxu0 %v337
  %1356 = vmatpush.msra.mxu0 %v331
  %1357 = vmatpush.msra.mxu0 %v325
  %1358 = vmatpush.msra.mxu0 %v319
  %1359 = vmatpush.msra.mxu0 %v313
  %1360 = vmatmul.f32.gmra.mxu0 %v17
  %v1361 = vpop.f32.mrf.mxu0
  %v1362 = vadd.f32 %v1342, %v1361
  %1363 = vdwg.mxu0
  %1364 = vmatpush.msra.mxu0 %v499
  %1365 = vmatpush.msra.mxu0 %v493
  %1366 = vmatpush.msra.mxu0 %v487
  %1367 = vmatpush.msra.mxu0 %v481
  %1368 = vmatpush.msra.mxu0 %v475
  %1369 = vmatpush.msra.mxu0 %v469
  %1370 = vmatpush.msra.mxu0 %v463
  %1371 = vmatpush.msra.mxu0 %v457
  %1372 = vmatpush.msra.mxu0 %v451
  %1373 = vmatpush.msra.mxu0 %v445
  %1374 = vmatpush.msra.mxu0 %v439
  %1375 = vmatpush.msra.mxu0 %v433
  %1376 = vmatpush.msra.mxu0 %v427
  %1377 = vmatpush.msra.mxu0 %v421
  %1378 = vmatpush.msra.mxu0 %v415
  %1379 = vmatpush.msra.mxu0 %v409
  %1380 = vmatmul.f32.gmra.mxu0 %v18
  %v1381 = vpop.f32.mrf.mxu0
  %v1382 = vadd.f32 %v1362, %v1381
  %1383 = vdwg.mxu0
  %1384 = vmatpush.msra.mxu0 %v595
  %1385 = vmatpush.msra.mxu0 %v589
  %1386 = vmatpush.msra.mxu0 %v583
  %1387 = vmatpush.msra.mxu0 %v577
  %1388 = vmatpush.msra.mxu0 %v571
  %1389 = vmatpush.msra.mxu0 %v565
  %1390 = vmatpush.msra.mxu0 %v559
  %1391 = vmatpush.msra.mxu0 %v553
  %1392 = vmatpush.msra.mxu0 %v547
  %1393 = vmatpush.msra.mxu0 %v541
  %1394 = vmatpush.msra.mxu0 %v535
  %1395 = vmatpush.msra.mxu0 %v529
  %1396 = vmatpush.msra.mxu0 %v523
  %1397 = vmatpush.msra.mxu0 %v517
  %1398 = vmatpush.msra.mxu0 %v511
  %1399 = vmatpush.msra.mxu0 %v505
  %1400 = vmatmul.f32.gmra.mxu0 %v19
  %v1401 = vpop.f32.mrf.mxu0
  %v1402 = vadd.f32 %v1382, %v1401
  %1403 = vdwg.mxu0
  %1404 = vmatpush.msra.mxu0 %v691
  %1405 = vmatpush.msra.mxu0 %v685
  %1406 = vmatpush.msra.mxu0 %v679
  %1407 = vmatpush.msra.mxu0 %v673
  %1408 = vmatpush.msra.mxu0 %v667
  %1409 = vmatpush.msra.mxu0 %v661
  %1410 = vmatpush.msra.mxu0 %v655
  %1411 = vmatpush.msra.mxu0 %v649
  %1412 = vmatpush.msra.mxu0 %v643
  %1413 = vmatpush.msra.mxu0 %v637
  %1414 = vmatpush.msra.mxu0 %v631
  %1415 = vmatpush.msra.mxu0 %v625
  %1416 = vmatpush.msra.mxu0 %v619
  %1417 = vmatpush.msra.mxu0 %v613
  %1418 = vmatpush.msra.mxu0 %v607
  %1419 = vmatpush.msra.mxu0 %v601
  %1420 = vmatmul.f32.gmra.mxu0 %v20
  %v1421 = vpop.f32.mrf.mxu0
  %v1422 = vadd.f32 %v1402, %v1421
  %1423 = vdwg.mxu0
  %1424 = vmatpush.msra.mxu0 %v787
  %1425 = vmatpush.msra.mxu0 %v781
  %1426 = vmatpush.msra.mxu0 %v775
  %1427 = vmatpush.msra.mxu0 %v769
  %1428 = vmatpush.msra.mxu0 %v763
  %1429 = vmatpush.msra.mxu0 %v757
  %1430 = vmatpush.msra.mxu0 %v751
  %1431 = vmatpush.msra.mxu0 %v745
  %1432 = vmatpush.msra.mxu0 %v739
  %1433 = vmatpush.msra.mxu0 %v733
  %1434 = vmatpush.msra.mxu0 %v727
  %1435 = vmatpush.msra.mxu0 %v721
  %1436 = vmatpush.msra.mxu0 %v715
  %1437 = vmatpush.msra.mxu0 %v709
  %1438 = vmatpush.msra.mxu0 %v703
  %1439 = vmatpush.msra.mxu0 %v697
  %1440 = vmatmul.f32.gmra.mxu0 %v21
  %v1441 = vpop.f32.mrf.mxu0
  %v1442 = vadd.f32 %v1422, %v1441
  %1443 = vdwg.mxu0
  %1444 = vmatpush.msra.mxu0 %v116
  %1445 = vmatpush.msra.mxu0 %v110
  %1446 = vmatpush.msra.mxu0 %v104
  %1447 = vmatpush.msra.mxu0 %v98
  %1448 = vmatpush.msra.mxu0 %v92
  %1449 = vmatpush.msra.mxu0 %v86
  %1450 = vmatpush.msra.mxu0 %v80
  %1451 = vmatpush.msra.mxu0 %v74
  %1452 = vmatpush.msra.mxu0 %v68
  %1453 = vmatpush.msra.mxu0 %v62
  %1454 = vmatpush.msra.mxu0 %v56
  %1455 = vmatpush.msra.mxu0 %v50
  %1456 = vmatpush.msra.mxu0 %v44
  %1457 = vmatpush.msra.mxu0 %v38
  %1458 = vmatpush.msra.mxu0 %v32
  %1459 = vmatpush.msra.mxu0 %v26
  %1460 = vmatmul.f32.gmra.mxu0 %v14
  %v1461 = vpop.f32.mrf.mxu0
  %v1462 = vadd.f32 %v796, %v1461
  %1463 = vdwg.mxu0
  %1464 = vmatpush.msra.mxu0 %v212
  %1465 = vmatpush.msra.mxu0 %v206
  %1466 = vmatpush.msra.mxu0 %v200
  %1467 = vmatpush.msra.mxu0 %v194
  %1468 = vmatpush.msra.mxu0 %v188
  %1469 = vmatpush.msra.mxu0 %v182
  %1470 = vmatpush.msra.mxu0 %v176
  %1471 = vmatpush.msra.mxu0 %v170
  %1472 = vmatpush.msra.mxu0 %v164
  %1473 = vmatpush.msra.mxu0 %v158
  %1474 = vmatpush.msra.mxu0 %v152
  %1475 = vmatpush.msra.mxu0 %v146
  %1476 = vmatpush.msra.mxu0 %v140
  %1477 = vmatpush.msra.mxu0 %v134
  %1478 = vmatpush.msra.mxu0 %v128
  %1479 = vmatpush.msra.mxu0 %v122
  %1480 = vmatmul.f32.gmra.mxu0 %v15
  %v1481 = vpop.f32.mrf.mxu0
  %v1482 = vadd.f32 %v1462, %v1481
  %1483 = vdwg.mxu0
  %1484 = vmatpush.msra.mxu0 %v308
  %1485 = vmatpush.msra.mxu0 %v302
  %1486 = vmatpush.msra.mxu0 %v296
  %1487 = vmatpush.msra.mxu0 %v290
  %1488 = vmatpush.msra.mxu0 %v284
  %1489 = vmatpush.msra.mxu0 %v278
  %1490 = vmatpush.msra.mxu0 %v272
  %1491 = vmatpush.msra.mxu0 %v266
  %1492 = vmatpush.msra.mxu0 %v260
  %1493 = vmatpush.msra.mxu0 %v254
  %1494 = vmatpush.msra.mxu0 %v248
  %1495 = vmatpush.msra.mxu0 %v242
  %1496 = vmatpush.msra.mxu0 %v236
  %1497 = vmatpush.msra.mxu0 %v230
  %1498 = vmatpush.msra.mxu0 %v224
  %1499 = vmatpush.msra.mxu0 %v218
  %1500 = vmatmul.f32.gmra.mxu0 %v16
  %v1501 = vpop.f32.mrf.mxu0
  %v1502 = vadd.f32 %v1482, %v1501
  %1503 = vdwg.mxu0
  %1504 = vmatpush.msra.mxu0 %v404
  %1505 = vmatpush.msra.mxu0 %v398
  %1506 = vmatpush.msra.mxu0 %v392
  %1507 = vmatpush.msra.mxu0 %v386
  %1508 = vmatpush.msra.mxu0 %v380
  %1509 = vmatpush.msra.mxu0 %v374
  %1510 = vmatpush.msra.mxu0 %v368
  %1511 = vmatpush.msra.mxu0 %v362
  %1512 = vmatpush.msra.mxu0 %v356
  %1513 = vmatpush.msra.mxu0 %v350
  %1514 = vmatpush.msra.mxu0 %v344
  %1515 = vmatpush.msra.mxu0 %v338
  %1516 = vmatpush.msra.mxu0 %v332
  %1517 = vmatpush.msra.mxu0 %v326
  %1518 = vmatpush.msra.mxu0 %v320
  %1519 = vmatpush.msra.mxu0 %v314
  %1520 = vmatmul.f32.gmra.mxu0 %v17
  %v1521 = vpop.f32.mrf.mxu0
  %v1522 = vadd.f32 %v1502, %v1521
  %1523 = vdwg.mxu0
  %1524 = vmatpush.msra.mxu0 %v500
  %1525 = vmatpush.msra.mxu0 %v494
  %1526 = vmatpush.msra.mxu0 %v488
  %1527 = vmatpush.msra.mxu0 %v482
  %1528 = vmatpush.msra.mxu0 %v476
  %1529 = vmatpush.msra.mxu0 %v470
  %1530 = vmatpush.msra.mxu0 %v464
  %1531 = vmatpush.msra.mxu0 %v458
  %1532 = vmatpush.msra.mxu0 %v452
  %1533 = vmatpush.msra.mxu0 %v446
  %1534 = vmatpush.msra.mxu0 %v440
  %1535 = vmatpush.msra.mxu0 %v434
  %1536 = vmatpush.msra.mxu0 %v428
  %1537 = vmatpush.msra.mxu0 %v422
  %1538 = vmatpush.msra.mxu0 %v416
  %1539 = vmatpush.msra.mxu0 %v410
  %1540 = vmatmul.f32.gmra.mxu0 %v18
  %v1541 = vpop.f32.mrf.mxu0
  %v1542 = vadd.f32 %v1522, %v1541
  %1543 = vdwg.mxu0
  %1544 = vmatpush.msra.mxu0 %v596
  %1545 = vmatpush.msra.mxu0 %v590
  %1546 = vmatpush.msra.mxu0 %v584
  %1547 = vmatpush.msra.mxu0 %v578
  %1548 = vmatpush.msra.mxu0 %v572
  %1549 = vmatpush.msra.mxu0 %v566
  %1550 = vmatpush.msra.mxu0 %v560
  %1551 = vmatpush.msra.mxu0 %v554
  %1552 = vmatpush.msra.mxu0 %v548
  %1553 = vmatpush.msra.mxu0 %v542
  %1554 = vmatpush.msra.mxu0 %v536
  %1555 = vmatpush.msra.mxu0 %v530
  %1556 = vmatpush.msra.mxu0 %v524
  %1557 = vmatpush.msra.mxu0 %v518
  %1558 = vmatpush.msra.mxu0 %v512
  %1559 = vmatpush.msra.mxu0 %v506
  %1560 = vmatmul.f32.gmra.mxu0 %v19
  %v1561 = vpop.f32.mrf.mxu0
  %v1562 = vadd.f32 %v1542, %v1561
  %1563 = vdwg.mxu0
  %1564 = vmatpush.msra.mxu0 %v692
  %1565 = vmatpush.msra.mxu0 %v686
  %1566 = vmatpush.msra.mxu0 %v680
  %1567 = vmatpush.msra.mxu0 %v674
  %1568 = vmatpush.msra.mxu0 %v668
  %1569 = vmatpush.msra.mxu0 %v662
  %1570 = vmatpush.msra.mxu0 %v656
  %1571 = vmatpush.msra.mxu0 %v650
  %1572 = vmatpush.msra.mxu0 %v644
  %1573 = vmatpush.msra.mxu0 %v638
  %1574 = vmatpush.msra.mxu0 %v632
  %1575 = vmatpush.msra.mxu0 %v626
  %1576 = vmatpush.msra.mxu0 %v620
  %1577 = vmatpush.msra.mxu0 %v614
  %1578 = vmatpush.msra.mxu0 %v608
  %1579 = vmatpush.msra.mxu0 %v602
  %1580 = vmatmul.f32.gmra.mxu0 %v20
  %v1581 = vpop.f32.mrf.mxu0
  %v1582 = vadd.f32 %v1562, %v1581
  %1583 = vdwg.mxu0
  %1584 = vmatpush.msra.mxu0 %v788
  %1585 = vmatpush.msra.mxu0 %v782
  %1586 = vmatpush.msra.mxu0 %v776
  %1587 = vmatpush.msra.mxu0 %v770
  %1588 = vmatpush.msra.mxu0 %v764
  %1589 = vmatpush.msra.mxu0 %v758
  %1590 = vmatpush.msra.mxu0 %v752
  %1591 = vmatpush.msra.mxu0 %v746
  %1592 = vmatpush.msra.mxu0 %v740
  %1593 = vmatpush.msra.mxu0 %v734
  %1594 = vmatpush.msra.mxu0 %v728
  %1595 = vmatpush.msra.mxu0 %v722
  %1596 = vmatpush.msra.mxu0 %v716
  %1597 = vmatpush.msra.mxu0 %v710
  %1598 = vmatpush.msra.mxu0 %v704
  %1599 = vmatpush.msra.mxu0 %v698
  %1600 = vmatmul.f32.gmra.mxu0 %v21
  %v1601 = vpop.f32.mrf.mxu0
  %v1602 = vadd.f32 %v1582, %v1601
  %1603 = vdwg.mxu0
  %1604 = vmatpush.msra.mxu0 %v117
  %1605 = vmatpush.msra.mxu0 %v111
  %1606 = vmatpush.msra.mxu0 %v105
  %1607 = vmatpush.msra.mxu0 %v99
  %1608 = vmatpush.msra.mxu0 %v93
  %1609 = vmatpush.msra.mxu0 %v87
  %1610 = vmatpush.msra.mxu0 %v81
  %1611 = vmatpush.msra.mxu0 %v75
  %1612 = vmatpush.msra.mxu0 %v69
  %1613 = vmatpush.msra.mxu0 %v63
  %1614 = vmatpush.msra.mxu0 %v57
  %1615 = vmatpush.msra.mxu0 %v51
  %1616 = vmatpush.msra.mxu0 %v45
  %1617 = vmatpush.msra.mxu0 %v39
  %1618 = vmatpush.msra.mxu0 %v33
  %1619 = vmatpush.msra.mxu0 %v27
  %1620 = vmatmul.f32.gmra.mxu0 %v14
  %v1621 = vpop.f32.mrf.mxu0
  %v1622 = vadd.f32 %v797, %v1621
  %1623 = vdwg.mxu0
  %1624 = vmatpush.msra.mxu0 %v213
  %1625 = vmatpush.msra.mxu0 %v207
  %1626 = vmatpush.msra.mxu0 %v201
  %1627 = vmatpush.msra.mxu0 %v195
  %1628 = vmatpush.msra.mxu0 %v189
  %1629 = vmatpush.msra.mxu0 %v183
  %1630 = vmatpush.msra.mxu0 %v177
  %1631 = vmatpush.msra.mxu0 %v171
  %1632 = vmatpush.msra.mxu0 %v165
  %1633 = vmatpush.msra.mxu0 %v159
  %1634 = vmatpush.msra.mxu0 %v153
  %1635 = vmatpush.msra.mxu0 %v147
  %1636 = vmatpush.msra.mxu0 %v141
  %1637 = vmatpush.msra.mxu0 %v135
  %1638 = vmatpush.msra.mxu0 %v129
  %1639 = vmatpush.msra.mxu0 %v123
  %1640 = vmatmul.f32.gmra.mxu0 %v15
  %v1641 = vpop.f32.mrf.mxu0
  %v1642 = vadd.f32 %v1622, %v1641
  %1643 = vdwg.mxu0
  %1644 = vmatpush.msra.mxu0 %v309
  %1645 = vmatpush.msra.mxu0 %v303
  %1646 = vmatpush.msra.mxu0 %v297
  %1647 = vmatpush.msra.mxu0 %v291
  %1648 = vmatpush.msra.mxu0 %v285
  %1649 = vmatpush.msra.mxu0 %v279
  %1650 = vmatpush.msra.mxu0 %v273
  %1651 = vmatpush.msra.mxu0 %v267
  %1652 = vmatpush.msra.mxu0 %v261
  %1653 = vmatpush.msra.mxu0 %v255
  %1654 = vmatpush.msra.mxu0 %v249
  %1655 = vmatpush.msra.mxu0 %v243
  %1656 = vmatpush.msra.mxu0 %v237
  %1657 = vmatpush.msra.mxu0 %v231
  %1658 = vmatpush.msra.mxu0 %v225
  %1659 = vmatpush.msra.mxu0 %v219
  %1660 = vmatmul.f32.gmra.mxu0 %v16
  %v1661 = vpop.f32.mrf.mxu0
  %v1662 = vadd.f32 %v1642, %v1661
  %1663 = vdwg.mxu0
  %1664 = vmatpush.msra.mxu0 %v405
  %1665 = vmatpush.msra.mxu0 %v399
  %1666 = vmatpush.msra.mxu0 %v393
  %1667 = vmatpush.msra.mxu0 %v387
  %1668 = vmatpush.msra.mxu0 %v381
  %1669 = vmatpush.msra.mxu0 %v375
  %1670 = vmatpush.msra.mxu0 %v369
  %1671 = vmatpush.msra.mxu0 %v363
  %1672 = vmatpush.msra.mxu0 %v357
  %1673 = vmatpush.msra.mxu0 %v351
  %1674 = vmatpush.msra.mxu0 %v345
  %1675 = vmatpush.msra.mxu0 %v339
  %1676 = vmatpush.msra.mxu0 %v333
  %1677 = vmatpush.msra.mxu0 %v327
  %1678 = vmatpush.msra.mxu0 %v321
  %1679 = vmatpush.msra.mxu0 %v315
  %1680 = vmatmul.f32.gmra.mxu0 %v17
  %v1681 = vpop.f32.mrf.mxu0
  %v1682 = vadd.f32 %v1662, %v1681
  %1683 = vdwg.mxu0
  %1684 = vmatpush.msra.mxu0 %v501
  %1685 = vmatpush.msra.mxu0 %v495
  %1686 = vmatpush.msra.mxu0 %v489
  %1687 = vmatpush.msra.mxu0 %v483
  %1688 = vmatpush.msra.mxu0 %v477
  %1689 = vmatpush.msra.mxu0 %v471
  %1690 = vmatpush.msra.mxu0 %v465
  %1691 = vmatpush.msra.mxu0 %v459
  %1692 = vmatpush.msra.mxu0 %v453
  %1693 = vmatpush.msra.mxu0 %v447
  %1694 = vmatpush.msra.mxu0 %v441
  %1695 = vmatpush.msra.mxu0 %v435
  %1696 = vmatpush.msra.mxu0 %v429
  %1697 = vmatpush.msra.mxu0 %v423
  %1698 = vmatpush.msra.mxu0 %v417
  %1699 = vmatpush.msra.mxu0 %v411
  %1700 = vmatmul.f32.gmra.mxu0 %v18
  %v1701 = vpop.f32.mrf.mxu0
  %v1702 = vadd.f32 %v1682, %v1701
  %1703 = vdwg.mxu0
  %1704 = vmatpush.msra.mxu0 %v597
  %1705 = vmatpush.msra.mxu0 %v591
  %1706 = vmatpush.msra.mxu0 %v585
  %1707 = vmatpush.msra.mxu0 %v579
  %1708 = vmatpush.msra.mxu0 %v573
  %1709 = vmatpush.msra.mxu0 %v567
  %1710 = vmatpush.msra.mxu0 %v561
  %1711 = vmatpush.msra.mxu0 %v555
  %1712 = vmatpush.msra.mxu0 %v549
  %1713 = vmatpush.msra.mxu0 %v543
  %1714 = vmatpush.msra.mxu0 %v537
  %1715 = vmatpush.msra.mxu0 %v531
  %1716 = vmatpush.msra.mxu0 %v525
  %1717 = vmatpush.msra.mxu0 %v519
  %1718 = vmatpush.msra.mxu0 %v513
  %1719 = vmatpush.msra.mxu0 %v507
  %1720 = vmatmul.f32.gmra.mxu0 %v19
  %v1721 = vpop.f32.mrf.mxu0
  %v1722 = vadd.f32 %v1702, %v1721
  %1723 = vdwg.mxu0
  %1724 = vmatpush.msra.mxu0 %v693
  %1725 = vmatpush.msra.mxu0 %v687
  %1726 = vmatpush.msra.mxu0 %v681
  %1727 = vmatpush.msra.mxu0 %v675
  %1728 = vmatpush.msra.mxu0 %v669
  %1729 = vmatpush.msra.mxu0 %v663
  %1730 = vmatpush.msra.mxu0 %v657
  %1731 = vmatpush.msra.mxu0 %v651
  %1732 = vmatpush.msra.mxu0 %v645
  %1733 = vmatpush.msra.mxu0 %v639
  %1734 = vmatpush.msra.mxu0 %v633
  %1735 = vmatpush.msra.mxu0 %v627
  %1736 = vmatpush.msra.mxu0 %v621
  %1737 = vmatpush.msra.mxu0 %v615
  %1738 = vmatpush.msra.mxu0 %v609
  %1739 = vmatpush.msra.mxu0 %v603
  %1740 = vmatmul.f32.gmra.mxu0 %v20
  %v1741 = vpop.f32.mrf.mxu0
  %v1742 = vadd.f32 %v1722, %v1741
  %1743 = vdwg.mxu0
  %1744 = vmatpush.msra.mxu0 %v789
  %1745 = vmatpush.msra.mxu0 %v783
  %1746 = vmatpush.msra.mxu0 %v777
  %1747 = vmatpush.msra.mxu0 %v771
  %1748 = vmatpush.msra.mxu0 %v765
  %1749 = vmatpush.msra.mxu0 %v759
  %1750 = vmatpush.msra.mxu0 %v753
  %1751 = vmatpush.msra.mxu0 %v747
  %1752 = vmatpush.msra.mxu0 %v741
  %1753 = vmatpush.msra.mxu0 %v735
  %1754 = vmatpush.msra.mxu0 %v729
  %1755 = vmatpush.msra.mxu0 %v723
  %1756 = vmatpush.msra.mxu0 %v717
  %1757 = vmatpush.msra.mxu0 %v711
  %1758 = vmatpush.msra.mxu0 %v705
  %1759 = vmatpush.msra.mxu0 %v699
  %1760 = vmatmul.f32.gmra.mxu0 %v21
  %v1761 = vpop.f32.mrf.mxu0
  %v1762 = vadd.f32 %v1742, %v1761
  %1763 = vdwg.mxu0
  %1764 = vst [vmem:[%s3] sm:$0xff] %v962
  %1765 = vst [vmem:[%s3 + $0x8] sm:$0xff] %v1122
  %1766 = vst [vmem:[%s3 + $0x10] sm:$0xff] %v1282
  %1767 = vst [vmem:[%s3 + $0x18] sm:$0xff] %v1442
  %1768 = vst [vmem:[%s3 + $0x20] sm:$0xff] %v1602
  %1769 = vst [vmem:[%s3 + $0x28] sm:$0xff] %v1762
  // Predicated region
  $region14: #{fc_decoder.3} parent=0 // pred_check
    _
  $region15: #{fc_decoder.3} parent=0 // pred_check_branch
    %1771 = sbr.rel (0) target = $region17
  $region16: #{fc_decoder.3} parent=0 // pred_region
    _
  $region17: #{fc_decoder.3} parent=0 // pred_fallthru
    _
  // Predicated region
  $region18: #{fc_decoder.3} parent=0 // pred_check
    _
  $region19: #{fc_decoder.3} parent=0 // pred_check_branch
    %1773 = sbr.rel (0) target = $region21
  $region20: #{fc_decoder.3} parent=0 // pred_region
    _
  $region21: #{fc_decoder.3} parent=0 // pred_fallthru
    _

// kernel: fc_decoder.2
$region0: #{fc_decoder.2}
  #allocation0 [shape = 'u32[]', space=smem, size = 0x4, offset = 0x4, fixed_abs, tag = 'smem constant byte address 0x4 - core index']
  #allocation1 [shape = 'u32[72,128]{1,0:T(1,128)}', space=vmem, size = 0x9000, scoped, tag = 'internal scratch']
  %s0 = inlined_call_operand.vmem [shape: f32[8,128], index: 0, kind: input, shape index: {}]
  %s1 = inlined_call_operand.hbm [shape: f32[128,1024], index: 1, kind: input, shape index: {}]
  %s2 = inlined_call_operand.hbm [shape: f32[1,1024], index: 2, kind: input, shape index: {}]
  %s3 = inlined_call_operand.hbm [shape: f32[1024,1024], index: 3, kind: input, shape index: {}]
  %s4 = inlined_call_operand.hbm [shape: f32[1,1024], index: 4, kind: input, shape index: {}]
  %s5 = inlined_call_operand.vmem [shape: f32[8,1024], index: 5, kind: output, shape index: {}]
  %s6 = sld [smem:[#allocation0]]
  $region46: #{fc_decoder.2} parent=0
    _
  %s8 = ssub.s32 1, %s6
  %s9 = scalar_select 0, %s8, %s6
  $region1: #{fc_decoder.2} parent=0
    #allocation2 [shape = 'u8[524288]{0}', space=vmem, size = 0x80000, scoped, tag = 'input window, operand 1, single buffered']
    #allocation3 [shape = 's32[1]{0}', space=sflag, size = 0x4, scoped, tag = 'scoped memory for fc_decoder.2']
    #allocation4 [shape = 'u8[4096]{0}', space=vmem, size = 0x1000, scoped, tag = 'input window, operand 2, single buffered']
    #allocation5 [shape = 's32[1]{0}', space=sflag, size = 0x4, scoped, tag = 'scoped memory for fc_decoder.2']
    #allocation6 [shape = 'u8[4194304]{0}', space=vmem, size = 0x400000, scoped, tag = 'input window, operand 3, single buffered']
    #allocation7 [shape = 'u8[4096]{0}', space=vmem, size = 0x1000, scoped, tag = 'input window, operand 4, single buffered']
    #allocation8 [shape = 's32[1]{0}', space=sflag, size = 0x4, scoped, tag = 'scoped memory for fc_decoder.2']
    %10 = vsyncpa [#allocation3], 0
    %11 = vsyncpa [#allocation5], 0
    %12 = vsyncpa [#allocation8], 0
    // Predicated region
    $region2: #{fc_decoder.2} parent=1 // pred_check
      _
    $region3: #{fc_decoder.2} parent=1 // pred_check_branch
      %14 = sbr.rel (0) target = $region5
    $region4: #{fc_decoder.2} parent=1 // pred_region
      _
    $region5: #{fc_decoder.2} parent=1 // pred_fallthru
      _
    // Predicated region
    $region6: #{fc_decoder.2} parent=1 // pred_check
      _
    $region7: #{fc_decoder.2} parent=1 // pred_check_branch
      %16 = sbr.rel (0) target = $region9
    $region8: #{fc_decoder.2} parent=1 // pred_region
      %18 = vsyncadd [#allocation3], 0
      %s19 = sshll.u32 %s1, 4
      %s20 = int_to_ptr.hbm [resolvable:$true] %s19
      %s21 = sshll.u32 [#allocation2], 4
      %s22 = int_to_ptr.vmem [resolvable:$true] %s21
      %27 = dma.hbm_to_vmem [thread:$0]  %s20, 16384, %s22, [#allocation3], 1024, 1024, 64
    $region9: #{fc_decoder.2} parent=1 // pred_fallthru
      _
    // Predicated region
    $region10: #{fc_decoder.2} parent=1 // pred_check
      _
    $region11: #{fc_decoder.2} parent=1 // pred_check_branch
      %29 = sbr.rel (0) target = $region13
    $region12: #{fc_decoder.2} parent=1 // pred_region
      %31 = vsyncadd [#allocation5], 0
      %s33 = sshll.u32 %s2, 4
      %s34 = int_to_ptr.hbm [resolvable:$true] %s33
      %s35 = sshll.u32 [#allocation4], 4
      %s36 = int_to_ptr.vmem [resolvable:$true] %s35
      %38 = dma.hbm_to_vmem [thread:$0]  %s34, 128, %s36, [#allocation5]
    $region13: #{fc_decoder.2} parent=1 // pred_fallthru
      _
    // Predicated region
    $region14: #{fc_decoder.2} parent=1 // pred_check
      _
    $region15: #{fc_decoder.2} parent=1 // pred_check_branch
      %40 = sbr.rel (0) target = $region17
    $region16: #{fc_decoder.2} parent=1 // pred_region
      %42 = vsyncadd [#allocation5], 0
      %s43 = sshll.u32 %s3, 4
      %s44 = int_to_ptr.hbm [resolvable:$true] %s43
      %s45 = sshll.u32 [#allocation6], 4
      %s46 = int_to_ptr.vmem [resolvable:$true] %s45
      %51 = dma.hbm_to_vmem [thread:$0]  %s44, 131072, %s46, [#allocation5], 1024, 1024, 64
    $region17: #{fc_decoder.2} parent=1 // pred_fallthru
      _
    // Predicated region
    $region18: #{fc_decoder.2} parent=1 // pred_check
      _
    $region19: #{fc_decoder.2} parent=1 // pred_check_branch
      %53 = sbr.rel (0) target = $region21
    $region20: #{fc_decoder.2} parent=1 // pred_region
      %55 = vsyncadd [#allocation8], 0
      %s57 = sshll.u32 %s4, 4
      %s58 = int_to_ptr.hbm [resolvable:$true] %s57
      %s59 = sshll.u32 [#allocation7], 4
      %s60 = int_to_ptr.vmem [resolvable:$true] %s59
      %62 = dma.hbm_to_vmem [thread:$0]  %s58, 128, %s60, [#allocation8]
    $region21: #{fc_decoder.2} parent=1 // pred_fallthru
      _
    // Predicated region
    $region22: #{fc_decoder.2} parent=1 // pred_check
      _
    $region23: #{fc_decoder.2} parent=1 // pred_check_branch
      %64 = sbr.rel (0) target = $region25
    $region24: #{fc_decoder.2} parent=1 // pred_region
      %66 = dma.done [#allocation3], 16384
    $region25: #{fc_decoder.2} parent=1 // pred_fallthru
      _
    // Predicated region
    $region26: #{fc_decoder.2} parent=1 // pred_check
      _
    $region27: #{fc_decoder.2} parent=1 // pred_check_branch
      %68 = sbr.rel (0) target = $region29
    $region28: #{fc_decoder.2} parent=1 // pred_region
      %70 = dma.done [#allocation5], 128
    $region29: #{fc_decoder.2} parent=1 // pred_fallthru
      _
    // Predicated region
    $region30: #{fc_decoder.2} parent=1 // pred_check
      _
    $region31: #{fc_decoder.2} parent=1 // pred_check_branch
      %72 = sbr.rel (0) target = $region33
    $region32: #{fc_decoder.2} parent=1 // pred_region
      %74 = dma.done [#allocation5], 131072
    $region33: #{fc_decoder.2} parent=1 // pred_fallthru
      _
    // Predicated region
    $region34: #{fc_decoder.2} parent=1 // pred_check
      _
    $region35: #{fc_decoder.2} parent=1 // pred_check_branch
      %76 = sbr.rel (0) target = $region37
    $region36: #{fc_decoder.2} parent=1 // pred_region
      %78 = dma.done [#allocation8], 128
    $region37: #{fc_decoder.2} parent=1 // pred_fallthru
      _
    %v79 = vld [vmem:[%s0] sm:$0xff]
    %v80 = vld [vmem:[#allocation2] sm:$0xff]
    %v81 = vld [vmem:[#allocation2 + $0x8] sm:$0xff]
    %v82 = vld [vmem:[#allocation2 + $0x10] sm:$0xff]
    %v83 = vld [vmem:[#allocation2 + $0x18] sm:$0xff]
    %v84 = vld [vmem:[#allocation2 + $0x20] sm:$0xff]
    %v85 = vld [vmem:[#allocation2 + $0x28] sm:$0xff]
    %v86 = vld [vmem:[#allocation2 + $0x30] sm:$0xff]
    %v87 = vld [vmem:[#allocation2 + $0x38] sm:$0xff]
    %v88 = vld [vmem:[#allocation2 + $0x40] sm:$0xff]
    %v89 = vld [vmem:[#allocation2 + $0x48] sm:$0xff]
    %v90 = vld [vmem:[#allocation2 + $0x50] sm:$0xff]
    %v91 = vld [vmem:[#allocation2 + $0x58] sm:$0xff]
    %v92 = vld [vmem:[#allocation2 + $0x60] sm:$0xff]
    %v93 = vld [vmem:[#allocation2 + $0x68] sm:$0xff]
    %v94 = vld [vmem:[#allocation2 + $0x70] sm:$0xff]
    %v95 = vld [vmem:[#allocation2 + $0x78] sm:$0xff]
    %v96 = vld [vmem:[#allocation2 + $0x80] sm:$0xff]
    %v97 = vld [vmem:[#allocation2 + $0x88] sm:$0xff]
    %v98 = vld [vmem:[#allocation2 + $0x90] sm:$0xff]
    %v99 = vld [vmem:[#allocation2 + $0x98] sm:$0xff]
    %v100 = vld [vmem:[#allocation2 + $0xa0] sm:$0xff]
    %v101 = vld [vmem:[#allocation2 + $0xa8] sm:$0xff]
    %v102 = vld [vmem:[#allocation2 + $0xb0] sm:$0xff]
    %v103 = vld [vmem:[#allocation2 + $0xb8] sm:$0xff]
    %v104 = vld [vmem:[#allocation2 + $0xc0] sm:$0xff]
    %v105 = vld [vmem:[#allocation2 + $0xc8] sm:$0xff]
    %v106 = vld [vmem:[#allocation2 + $0xd0] sm:$0xff]
    %v107 = vld [vmem:[#allocation2 + $0xd8] sm:$0xff]
    %v108 = vld [vmem:[#allocation2 + $0xe0] sm:$0xff]
    %v109 = vld [vmem:[#allocation2 + $0xe8] sm:$0xff]
    %v110 = vld [vmem:[#allocation2 + $0xf0] sm:$0xff]
    %v111 = vld [vmem:[#allocation2 + $0xf8] sm:$0xff]
    %v112 = vld [vmem:[#allocation2 + $0x100] sm:$0xff]
    %v113 = vld [vmem:[#allocation2 + $0x108] sm:$0xff]
    %v114 = vld [vmem:[#allocation2 + $0x110] sm:$0xff]
    %v115 = vld [vmem:[#allocation2 + $0x118] sm:$0xff]
    %v116 = vld [vmem:[#allocation2 + $0x120] sm:$0xff]
    %v117 = vld [vmem:[#allocation2 + $0x128] sm:$0xff]
    %v118 = vld [vmem:[#allocation2 + $0x130] sm:$0xff]
    %v119 = vld [vmem:[#allocation2 + $0x138] sm:$0xff]
    %v120 = vld [vmem:[#allocation2 + $0x140] sm:$0xff]
    %v121 = vld [vmem:[#allocation2 + $0x148] sm:$0xff]
    %v122 = vld [vmem:[#allocation2 + $0x150] sm:$0xff]
    %v123 = vld [vmem:[#allocation2 + $0x158] sm:$0xff]
    %v124 = vld [vmem:[#allocation2 + $0x160] sm:$0xff]
    %v125 = vld [vmem:[#allocation2 + $0x168] sm:$0xff]
    %v126 = vld [vmem:[#allocation2 + $0x170] sm:$0xff]
    %v127 = vld [vmem:[#allocation2 + $0x178] sm:$0xff]
    %v128 = vld [vmem:[#allocation2 + $0x180] sm:$0xff]
    %v129 = vld [vmem:[#allocation2 + $0x188] sm:$0xff]
    %v130 = vld [vmem:[#allocation2 + $0x190] sm:$0xff]
    %v131 = vld [vmem:[#allocation2 + $0x198] sm:$0xff]
    %v132 = vld [vmem:[#allocation2 + $0x1a0] sm:$0xff]
    %v133 = vld [vmem:[#allocation2 + $0x1a8] sm:$0xff]
    %v134 = vld [vmem:[#allocation2 + $0x1b0] sm:$0xff]
    %v135 = vld [vmem:[#allocation2 + $0x1b8] sm:$0xff]
    %v136 = vld [vmem:[#allocation2 + $0x1c0] sm:$0xff]
    %v137 = vld [vmem:[#allocation2 + $0x1c8] sm:$0xff]
    %v138 = vld [vmem:[#allocation2 + $0x1d0] sm:$0xff]
    %v139 = vld [vmem:[#allocation2 + $0x1d8] sm:$0xff]
    %v140 = vld [vmem:[#allocation2 + $0x1e0] sm:$0xff]
    %v141 = vld [vmem:[#allocation2 + $0x1e8] sm:$0xff]
    %v142 = vld [vmem:[#allocation2 + $0x1f0] sm:$0xff]
    %v143 = vld [vmem:[#allocation2 + $0x1f8] sm:$0xff]
    %v144 = vld [vmem:[#allocation2 + $0x200] sm:$0xff]
    %v145 = vld [vmem:[#allocation2 + $0x208] sm:$0xff]
    %v146 = vld [vmem:[#allocation2 + $0x210] sm:$0xff]
    %v147 = vld [vmem:[#allocation2 + $0x218] sm:$0xff]
    %v148 = vld [vmem:[#allocation2 + $0x220] sm:$0xff]
    %v149 = vld [vmem:[#allocation2 + $0x228] sm:$0xff]
    %v150 = vld [vmem:[#allocation2 + $0x230] sm:$0xff]
    %v151 = vld [vmem:[#allocation2 + $0x238] sm:$0xff]
    %v152 = vld [vmem:[#allocation2 + $0x240] sm:$0xff]
    %v153 = vld [vmem:[#allocation2 + $0x248] sm:$0xff]
    %v154 = vld [vmem:[#allocation2 + $0x250] sm:$0xff]
    %v155 = vld [vmem:[#allocation2 + $0x258] sm:$0xff]
    %v156 = vld [vmem:[#allocation2 + $0x260] sm:$0xff]
    %v157 = vld [vmem:[#allocation2 + $0x268] sm:$0xff]
    %v158 = vld [vmem:[#allocation2 + $0x270] sm:$0xff]
    %v159 = vld [vmem:[#allocation2 + $0x278] sm:$0xff]
    %v160 = vld [vmem:[#allocation2 + $0x280] sm:$0xff]
    %v161 = vld [vmem:[#allocation2 + $0x288] sm:$0xff]
    %v162 = vld [vmem:[#allocation2 + $0x290] sm:$0xff]
    %v163 = vld [vmem:[#allocation2 + $0x298] sm:$0xff]
    %v164 = vld [vmem:[#allocation2 + $0x2a0] sm:$0xff]
    %v165 = vld [vmem:[#allocation2 + $0x2a8] sm:$0xff]
    %v166 = vld [vmem:[#allocation2 + $0x2b0] sm:$0xff]
    %v167 = vld [vmem:[#allocation2 + $0x2b8] sm:$0xff]
    %v168 = vld [vmem:[#allocation2 + $0x2c0] sm:$0xff]
    %v169 = vld [vmem:[#allocation2 + $0x2c8] sm:$0xff]
    %v170 = vld [vmem:[#allocation2 + $0x2d0] sm:$0xff]
    %v171 = vld [vmem:[#allocation2 + $0x2d8] sm:$0xff]
    %v172 = vld [vmem:[#allocation2 + $0x2e0] sm:$0xff]
    %v173 = vld [vmem:[#allocation2 + $0x2e8] sm:$0xff]
    %v174 = vld [vmem:[#allocation2 + $0x2f0] sm:$0xff]
    %v175 = vld [vmem:[#allocation2 + $0x2f8] sm:$0xff]
    %v176 = vld [vmem:[#allocation2 + $0x300] sm:$0xff]
    %v177 = vld [vmem:[#allocation2 + $0x308] sm:$0xff]
    %v178 = vld [vmem:[#allocation2 + $0x310] sm:$0xff]
    %v179 = vld [vmem:[#allocation2 + $0x318] sm:$0xff]
    %v180 = vld [vmem:[#allocation2 + $0x320] sm:$0xff]
    %v181 = vld [vmem:[#allocation2 + $0x328] sm:$0xff]
    %v182 = vld [vmem:[#allocation2 + $0x330] sm:$0xff]
    %v183 = vld [vmem:[#allocation2 + $0x338] sm:$0xff]
    %v184 = vld [vmem:[#allocation2 + $0x340] sm:$0xff]
    %v185 = vld [vmem:[#allocation2 + $0x348] sm:$0xff]
    %v186 = vld [vmem:[#allocation2 + $0x350] sm:$0xff]
    %v187 = vld [vmem:[#allocation2 + $0x358] sm:$0xff]
    %v188 = vld [vmem:[#allocation2 + $0x360] sm:$0xff]
    %v189 = vld [vmem:[#allocation2 + $0x368] sm:$0xff]
    %v190 = vld [vmem:[#allocation2 + $0x370] sm:$0xff]
    %v191 = vld [vmem:[#allocation2 + $0x378] sm:$0xff]
    %v192 = vld [vmem:[#allocation2 + $0x380] sm:$0xff]
    %v193 = vld [vmem:[#allocation2 + $0x388] sm:$0xff]
    %v194 = vld [vmem:[#allocation2 + $0x390] sm:$0xff]
    %v195 = vld [vmem:[#allocation2 + $0x398] sm:$0xff]
    %v196 = vld [vmem:[#allocation2 + $0x3a0] sm:$0xff]
    %v197 = vld [vmem:[#allocation2 + $0x3a8] sm:$0xff]
    %v198 = vld [vmem:[#allocation2 + $0x3b0] sm:$0xff]
    %v199 = vld [vmem:[#allocation2 + $0x3b8] sm:$0xff]
    %v200 = vld [vmem:[#allocation2 + $0x3c0] sm:$0xff]
    %v201 = vld [vmem:[#allocation2 + $0x3c8] sm:$0xff]
    %v202 = vld [vmem:[#allocation2 + $0x3d0] sm:$0xff]
    %v203 = vld [vmem:[#allocation2 + $0x3d8] sm:$0xff]
    %v204 = vld [vmem:[#allocation2 + $0x3e0] sm:$0xff]
    %v205 = vld [vmem:[#allocation2 + $0x3e8] sm:$0xff]
    %v206 = vld [vmem:[#allocation2 + $0x3f0] sm:$0xff]
    %v207 = vld [vmem:[#allocation2 + $0x3f8] sm:$0xff]
    %v208 = vld [vmem:[#allocation4] sm:$0xff]
    %v210 = vperm.slane %v208, 0
    %v211 = vperm.slane %v208, 1
    %v212 = vperm.slane %v208, 2
    %v213 = vperm.slane %v208, 3
    %v214 = vperm.slane %v208, 4
    %v215 = vperm.slane %v208, 5
    %v216 = vperm.slane %v208, 6
    %v217 = vperm.slane %v208, 7
    %226 = vmatpush.msra.mxu0 %v200
    %227 = vmatpush.msra.mxu0 %v192
    %228 = vmatpush.msra.mxu0 %v184
    %229 = vmatpush.msra.mxu0 %v176
    %230 = vmatpush.msra.mxu0 %v168
    %231 = vmatpush.msra.mxu0 %v160
    %232 = vmatpush.msra.mxu0 %v152
    %233 = vmatpush.msra.mxu0 %v144
    %234 = vmatpush.msra.mxu0 %v136
    %235 = vmatpush.msra.mxu0 %v128
    %236 = vmatpush.msra.mxu0 %v120
    %237 = vmatpush.msra.mxu0 %v112
    %238 = vmatpush.msra.mxu0 %v104
    %239 = vmatpush.msra.mxu0 %v96
    %240 = vmatpush.msra.mxu0 %v88
    %241 = vmatpush.msra.mxu0 %v80
    %242 = vmatmul.f32.gmra.mxu0 %v79
    %v243 = vpop.f32.mrf.mxu0
    %v244 = vadd.f32 %v210, %v243
    %245 = vdwg.mxu0
    %246 = vmatpush.msra.mxu0 %v201
    %247 = vmatpush.msra.mxu0 %v193
    %248 = vmatpush.msra.mxu0 %v185
    %249 = vmatpush.msra.mxu0 %v177
    %250 = vmatpush.msra.mxu0 %v169
    %251 = vmatpush.msra.mxu0 %v161
    %252 = vmatpush.msra.mxu0 %v153
    %253 = vmatpush.msra.mxu0 %v145
    %254 = vmatpush.msra.mxu0 %v137
    %255 = vmatpush.msra.mxu0 %v129
    %256 = vmatpush.msra.mxu0 %v121
    %257 = vmatpush.msra.mxu0 %v113
    %258 = vmatpush.msra.mxu0 %v105
    %259 = vmatpush.msra.mxu0 %v97
    %260 = vmatpush.msra.mxu0 %v89
    %261 = vmatpush.msra.mxu0 %v81
    %262 = vmatmul.f32.gmra.mxu0 %v79
    %v263 = vpop.f32.mrf.mxu0
    %v264 = vadd.f32 %v211, %v263
    %265 = vdwg.mxu0
    %266 = vmatpush.msra.mxu0 %v202
    %267 = vmatpush.msra.mxu0 %v194
    %268 = vmatpush.msra.mxu0 %v186
    %269 = vmatpush.msra.mxu0 %v178
    %270 = vmatpush.msra.mxu0 %v170
    %271 = vmatpush.msra.mxu0 %v162
    %272 = vmatpush.msra.mxu0 %v154
    %273 = vmatpush.msra.mxu0 %v146
    %274 = vmatpush.msra.mxu0 %v138
    %275 = vmatpush.msra.mxu0 %v130
    %276 = vmatpush.msra.mxu0 %v122
    %277 = vmatpush.msra.mxu0 %v114
    %278 = vmatpush.msra.mxu0 %v106
    %279 = vmatpush.msra.mxu0 %v98
    %280 = vmatpush.msra.mxu0 %v90
    %281 = vmatpush.msra.mxu0 %v82
    %282 = vmatmul.f32.gmra.mxu0 %v79
    %v283 = vpop.f32.mrf.mxu0
    %v284 = vadd.f32 %v212, %v283
    %285 = vdwg.mxu0
    %286 = vmatpush.msra.mxu0 %v203
    %287 = vmatpush.msra.mxu0 %v195
    %288 = vmatpush.msra.mxu0 %v187
    %289 = vmatpush.msra.mxu0 %v179
    %290 = vmatpush.msra.mxu0 %v171
    %291 = vmatpush.msra.mxu0 %v163
    %292 = vmatpush.msra.mxu0 %v155
    %293 = vmatpush.msra.mxu0 %v147
    %294 = vmatpush.msra.mxu0 %v139
    %295 = vmatpush.msra.mxu0 %v131
    %296 = vmatpush.msra.mxu0 %v123
    %297 = vmatpush.msra.mxu0 %v115
    %298 = vmatpush.msra.mxu0 %v107
    %299 = vmatpush.msra.mxu0 %v99
    %300 = vmatpush.msra.mxu0 %v91
    %301 = vmatpush.msra.mxu0 %v83
    %302 = vmatmul.f32.gmra.mxu0 %v79
    %v303 = vpop.f32.mrf.mxu0
    %v304 = vadd.f32 %v213, %v303
    %305 = vdwg.mxu0
    %306 = vmatpush.msra.mxu0 %v204
    %307 = vmatpush.msra.mxu0 %v196
    %308 = vmatpush.msra.mxu0 %v188
    %309 = vmatpush.msra.mxu0 %v180
    %310 = vmatpush.msra.mxu0 %v172
    %311 = vmatpush.msra.mxu0 %v164
    %312 = vmatpush.msra.mxu0 %v156
    %313 = vmatpush.msra.mxu0 %v148
    %314 = vmatpush.msra.mxu0 %v140
    %315 = vmatpush.msra.mxu0 %v132
    %316 = vmatpush.msra.mxu0 %v124
    %317 = vmatpush.msra.mxu0 %v116
    %318 = vmatpush.msra.mxu0 %v108
    %319 = vmatpush.msra.mxu0 %v100
    %320 = vmatpush.msra.mxu0 %v92
    %321 = vmatpush.msra.mxu0 %v84
    %322 = vmatmul.f32.gmra.mxu0 %v79
    %v323 = vpop.f32.mrf.mxu0
    %v324 = vadd.f32 %v214, %v323
    %325 = vdwg.mxu0
    %326 = vmatpush.msra.mxu0 %v205
    %327 = vmatpush.msra.mxu0 %v197
    %328 = vmatpush.msra.mxu0 %v189
    %329 = vmatpush.msra.mxu0 %v181
    %330 = vmatpush.msra.mxu0 %v173
    %331 = vmatpush.msra.mxu0 %v165
    %332 = vmatpush.msra.mxu0 %v157
    %333 = vmatpush.msra.mxu0 %v149
    %334 = vmatpush.msra.mxu0 %v141
    %335 = vmatpush.msra.mxu0 %v133
    %336 = vmatpush.msra.mxu0 %v125
    %337 = vmatpush.msra.mxu0 %v117
    %338 = vmatpush.msra.mxu0 %v109
    %339 = vmatpush.msra.mxu0 %v101
    %340 = vmatpush.msra.mxu0 %v93
    %341 = vmatpush.msra.mxu0 %v85
    %342 = vmatmul.f32.gmra.mxu0 %v79
    %v343 = vpop.f32.mrf.mxu0
    %v344 = vadd.f32 %v215, %v343
    %345 = vdwg.mxu0
    %346 = vmatpush.msra.mxu0 %v206
    %347 = vmatpush.msra.mxu0 %v198
    %348 = vmatpush.msra.mxu0 %v190
    %349 = vmatpush.msra.mxu0 %v182
    %350 = vmatpush.msra.mxu0 %v174
    %351 = vmatpush.msra.mxu0 %v166
    %352 = vmatpush.msra.mxu0 %v158
    %353 = vmatpush.msra.mxu0 %v150
    %354 = vmatpush.msra.mxu0 %v142
    %355 = vmatpush.msra.mxu0 %v134
    %356 = vmatpush.msra.mxu0 %v126
    %357 = vmatpush.msra.mxu0 %v118
    %358 = vmatpush.msra.mxu0 %v110
    %359 = vmatpush.msra.mxu0 %v102
    %360 = vmatpush.msra.mxu0 %v94
    %361 = vmatpush.msra.mxu0 %v86
    %362 = vmatmul.f32.gmra.mxu0 %v79
    %v363 = vpop.f32.mrf.mxu0
    %v364 = vadd.f32 %v216, %v363
    %365 = vdwg.mxu0
    %366 = vmatpush.msra.mxu0 %v207
    %367 = vmatpush.msra.mxu0 %v199
    %368 = vmatpush.msra.mxu0 %v191
    %369 = vmatpush.msra.mxu0 %v183
    %370 = vmatpush.msra.mxu0 %v175
    %371 = vmatpush.msra.mxu0 %v167
    %372 = vmatpush.msra.mxu0 %v159
    %373 = vmatpush.msra.mxu0 %v151
    %374 = vmatpush.msra.mxu0 %v143
    %375 = vmatpush.msra.mxu0 %v135
    %376 = vmatpush.msra.mxu0 %v127
    %377 = vmatpush.msra.mxu0 %v119
    %378 = vmatpush.msra.mxu0 %v111
    %379 = vmatpush.msra.mxu0 %v103
    %380 = vmatpush.msra.mxu0 %v95
    %381 = vmatpush.msra.mxu0 %v87
    %382 = vmatmul.f32.gmra.mxu0 %v79
    %v383 = vpop.f32.mrf.mxu0
    %v384 = vadd.f32 %v217, %v383
    %385 = vdwg.mxu0
    %v386 = vmax.f32 %v244, 0.0
    %v387 = vmax.f32 %v264, 0.0
    %v388 = vmax.f32 %v284, 0.0
    %v389 = vmax.f32 %v304, 0.0
    %v390 = vmax.f32 %v324, 0.0
    %v391 = vmax.f32 %v344, 0.0
    %v392 = vmax.f32 %v364, 0.0
    %v393 = vmax.f32 %v384, 0.0
    %v394 = vld [vmem:[#allocation6] sm:$0xff]
    %v395 = vld [vmem:[#allocation6 + $0x8] sm:$0xff]
    %v396 = vld [vmem:[#allocation6 + $0x10] sm:$0xff]
    %v397 = vld [vmem:[#allocation6 + $0x18] sm:$0xff]
    %v398 = vld [vmem:[#allocation6 + $0x20] sm:$0xff]
    %v399 = vld [vmem:[#allocation6 + $0x28] sm:$0xff]
    %v400 = vld [vmem:[#allocation6 + $0x30] sm:$0xff]
    %v401 = vld [vmem:[#allocation6 + $0x38] sm:$0xff]
    %v402 = vld [vmem:[#allocation6 + $0x40] sm:$0xff]
    %v403 = vld [vmem:[#allocation6 + $0x48] sm:$0xff]
    %v404 = vld [vmem:[#allocation6 + $0x50] sm:$0xff]
    %v405 = vld [vmem:[#allocation6 + $0x58] sm:$0xff]
    %v406 = vld [vmem:[#allocation6 + $0x60] sm:$0xff]
    %v407 = vld [vmem:[#allocation6 + $0x68] sm:$0xff]
    %v408 = vld [vmem:[#allocation6 + $0x70] sm:$0xff]
    %v409 = vld [vmem:[#allocation6 + $0x78] sm:$0xff]
    %v410 = vld [vmem:[#allocation6 + $0x80] sm:$0xff]
    %v411 = vld [vmem:[#allocation6 + $0x88] sm:$0xff]
    %v412 = vld [vmem:[#allocation6 + $0x90] sm:$0xff]
    %v413 = vld [vmem:[#allocation6 + $0x98] sm:$0xff]
    %v414 = vld [vmem:[#allocation6 + $0xa0] sm:$0xff]
    %v415 = vld [vmem:[#allocation6 + $0xa8] sm:$0xff]
    %v416 = vld [vmem:[#allocation6 + $0xb0] sm:$0xff]
    %v417 = vld [vmem:[#allocation6 + $0xb8] sm:$0xff]
    %v418 = vld [vmem:[#allocation6 + $0xc0] sm:$0xff]
    %v419 = vld [vmem:[#allocation6 + $0xc8] sm:$0xff]
    %v420 = vld [vmem:[#allocation6 + $0xd0] sm:$0xff]
    %v421 = vld [vmem:[#allocation6 + $0xd8] sm:$0xff]
    %v422 = vld [vmem:[#allocation6 + $0xe0] sm:$0xff]
    %v423 = vld [vmem:[#allocation6 + $0xe8] sm:$0xff]
    %v424 = vld [vmem:[#allocation6 + $0xf0] sm:$0xff]
    %v425 = vld [vmem:[#allocation6 + $0xf8] sm:$0xff]
    %v426 = vld [vmem:[#allocation6 + $0x100] sm:$0xff]
    %v427 = vld [vmem:[#allocation6 + $0x108] sm:$0xff]
    %v428 = vld [vmem:[#allocation6 + $0x110] sm:$0xff]
    %v429 = vld [vmem:[#allocation6 + $0x118] sm:$0xff]
    %v430 = vld [vmem:[#allocation6 + $0x120] sm:$0xff]
    %v431 = vld [vmem:[#allocation6 + $0x128] sm:$0xff]
    %v432 = vld [vmem:[#allocation6 + $0x130] sm:$0xff]
    %v433 = vld [vmem:[#allocation6 + $0x138] sm:$0xff]
    %v434 = vld [vmem:[#allocation6 + $0x140] sm:$0xff]
    %v435 = vld [vmem:[#allocation6 + $0x148] sm:$0xff]
    %v436 = vld [vmem:[#allocation6 + $0x150] sm:$0xff]
    %v437 = vld [vmem:[#allocation6 + $0x158] sm:$0xff]
    %v438 = vld [vmem:[#allocation6 + $0x160] sm:$0xff]
    %v439 = vld [vmem:[#allocation6 + $0x168] sm:$0xff]
    %v440 = vld [vmem:[#allocation6 + $0x170] sm:$0xff]
    %v441 = vld [vmem:[#allocation6 + $0x178] sm:$0xff]
    %v442 = vld [vmem:[#allocation6 + $0x180] sm:$0xff]
    %v443 = vld [vmem:[#allocation6 + $0x188] sm:$0xff]
    %v444 = vld [vmem:[#allocation6 + $0x190] sm:$0xff]
    %v445 = vld [vmem:[#allocation6 + $0x198] sm:$0xff]
    %v446 = vld [vmem:[#allocation6 + $0x1a0] sm:$0xff]
    %v447 = vld [vmem:[#allocation6 + $0x1a8] sm:$0xff]
    %v448 = vld [vmem:[#allocation6 + $0x1b0] sm:$0xff]
    %v449 = vld [vmem:[#allocation6 + $0x1b8] sm:$0xff]
    %v450 = vld [vmem:[#allocation6 + $0x1c0] sm:$0xff]
    %v451 = vld [vmem:[#allocation6 + $0x1c8] sm:$0xff]
    %v452 = vld [vmem:[#allocation6 + $0x1d0] sm:$0xff]
    %v453 = vld [vmem:[#allocation6 + $0x1d8] sm:$0xff]
    %v454 = vld [vmem:[#allocation6 + $0x1e0] sm:$0xff]
    %v455 = vld [vmem:[#allocation6 + $0x1e8] sm:$0xff]
    %v456 = vld [vmem:[#allocation6 + $0x1f0] sm:$0xff]
    %v457 = vld [vmem:[#allocation6 + $0x1f8] sm:$0xff]
    %v458 = vld [vmem:[#allocation6 + $0x200] sm:$0xff]
    %v459 = vld [vmem:[#allocation6 + $0x208] sm:$0xff]
    %v460 = vld [vmem:[#allocation6 + $0x210] sm:$0xff]
    %v461 = vld [vmem:[#allocation6 + $0x218] sm:$0xff]
    %v462 = vld [vmem:[#allocation6 + $0x220] sm:$0xff]
    %v463 = vld [vmem:[#allocation6 + $0x228] sm:$0xff]
    %v464 = vld [vmem:[#allocation6 + $0x230] sm:$0xff]
    %v465 = vld [vmem:[#allocation6 + $0x238] sm:$0xff]
    %v466 = vld [vmem:[#allocation6 + $0x240] sm:$0xff]
    %v467 = vld [vmem:[#allocation6 + $0x248] sm:$0xff]
    %v468 = vld [vmem:[#allocation6 + $0x250] sm:$0xff]
    %v469 = vld [vmem:[#allocation6 + $0x258] sm:$0xff]
    %v470 = vld [vmem:[#allocation6 + $0x260] sm:$0xff]
    %v471 = vld [vmem:[#allocation6 + $0x268] sm:$0xff]
    %v472 = vld [vmem:[#allocation6 + $0x270] sm:$0xff]
    %v473 = vld [vmem:[#allocation6 + $0x278] sm:$0xff]
    %v474 = vld [vmem:[#allocation6 + $0x280] sm:$0xff]
    %v475 = vld [vmem:[#allocation6 + $0x288] sm:$0xff]
    %v476 = vld [vmem:[#allocation6 + $0x290] sm:$0xff]
    %v477 = vld [vmem:[#allocation6 + $0x298] sm:$0xff]
    %v478 = vld [vmem:[#allocation6 + $0x2a0] sm:$0xff]
    %v479 = vld [vmem:[#allocation6 + $0x2a8] sm:$0xff]
    %v480 = vld [vmem:[#allocation6 + $0x2b0] sm:$0xff]
    %v481 = vld [vmem:[#allocation6 + $0x2b8] sm:$0xff]
    %v482 = vld [vmem:[#allocation6 + $0x2c0] sm:$0xff]
    %v483 = vld [vmem:[#allocation6 + $0x2c8] sm:$0xff]
    %v484 = vld [vmem:[#allocation6 + $0x2d0] sm:$0xff]
    %v485 = vld [vmem:[#allocation6 + $0x2d8] sm:$0xff]
    %v486 = vld [vmem:[#allocation6 + $0x2e0] sm:$0xff]
    %v487 = vld [vmem:[#allocation6 + $0x2e8] sm:$0xff]
    %v488 = vld [vmem:[#allocation6 + $0x2f0] sm:$0xff]
    %v489 = vld [vmem:[#allocation6 + $0x2f8] sm:$0xff]
    %v490 = vld [vmem:[#allocation6 + $0x300] sm:$0xff]
    %v491 = vld [vmem:[#allocation6 + $0x308] sm:$0xff]
    %v492 = vld [vmem:[#allocation6 + $0x310] sm:$0xff]
    %v493 = vld [vmem:[#allocation6 + $0x318] sm:$0xff]
    %v494 = vld [vmem:[#allocation6 + $0x320] sm:$0xff]
    %v495 = vld [vmem:[#allocation6 + $0x328] sm:$0xff]
    %v496 = vld [vmem:[#allocation6 + $0x330] sm:$0xff]
    %v497 = vld [vmem:[#allocation6 + $0x338] sm:$0xff]
    %v498 = vld [vmem:[#allocation6 + $0x340] sm:$0xff]
    %v499 = vld [vmem:[#allocation6 + $0x348] sm:$0xff]
    %v500 = vld [vmem:[#allocation6 + $0x350] sm:$0xff]
    %v501 = vld [vmem:[#allocation6 + $0x358] sm:$0xff]
    %v502 = vld [vmem:[#allocation6 + $0x360] sm:$0xff]
    %v503 = vld [vmem:[#allocation6 + $0x368] sm:$0xff]
    %v504 = vld [vmem:[#allocation6 + $0x370] sm:$0xff]
    %v505 = vld [vmem:[#allocation6 + $0x378] sm:$0xff]
    %v506 = vld [vmem:[#allocation6 + $0x380] sm:$0xff]
    %v507 = vld [vmem:[#allocation6 + $0x388] sm:$0xff]
    %v508 = vld [vmem:[#allocation6 + $0x390] sm:$0xff]
    %v509 = vld [vmem:[#allocation6 + $0x398] sm:$0xff]
    %v510 = vld [vmem:[#allocation6 + $0x3a0] sm:$0xff]
    %v511 = vld [vmem:[#allocation6 + $0x3a8] sm:$0xff]
    %v512 = vld [vmem:[#allocation6 + $0x3b0] sm:$0xff]
    %v513 = vld [vmem:[#allocation6 + $0x3b8] sm:$0xff]
    %v514 = vld [vmem:[#allocation6 + $0x3c0] sm:$0xff]
    %v515 = vld [vmem:[#allocation6 + $0x3c8] sm:$0xff]
    %v516 = vld [vmem:[#allocation6 + $0x3d0] sm:$0xff]
    %v517 = vld [vmem:[#allocation6 + $0x3d8] sm:$0xff]
    %v518 = vld [vmem:[#allocation6 + $0x3e0] sm:$0xff]
    %v519 = vld [vmem:[#allocation6 + $0x3e8] sm:$0xff]
    %v520 = vld [vmem:[#allocation6 + $0x3f0] sm:$0xff]
    %v521 = vld [vmem:[#allocation6 + $0x3f8] sm:$0xff]
    %v522 = vld [vmem:[#allocation6 + $0x400] sm:$0xff]
    %v523 = vld [vmem:[#allocation6 + $0x408] sm:$0xff]
    %v524 = vld [vmem:[#allocation6 + $0x410] sm:$0xff]
    %v525 = vld [vmem:[#allocation6 + $0x418] sm:$0xff]
    %v526 = vld [vmem:[#allocation6 + $0x420] sm:$0xff]
    %v527 = vld [vmem:[#allocation6 + $0x428] sm:$0xff]
    %v528 = vld [vmem:[#allocation6 + $0x430] sm:$0xff]
    %v529 = vld [vmem:[#allocation6 + $0x438] sm:$0xff]
    %v530 = vld [vmem:[#allocation6 + $0x440] sm:$0xff]
    %v531 = vld [vmem:[#allocation6 + $0x448] sm:$0xff]
    %v532 = vld [vmem:[#allocation6 + $0x450] sm:$0xff]
    %v533 = vld [vmem:[#allocation6 + $0x458] sm:$0xff]
    %v534 = vld [vmem:[#allocation6 + $0x460] sm:$0xff]
    %v535 = vld [vmem:[#allocation6 + $0x468] sm:$0xff]
    %v536 = vld [vmem:[#allocation6 + $0x470] sm:$0xff]
    %v537 = vld [vmem:[#allocation6 + $0x478] sm:$0xff]
    %v538 = vld [vmem:[#allocation6 + $0x480] sm:$0xff]
    %v539 = vld [vmem:[#allocation6 + $0x488] sm:$0xff]
    %v540 = vld [vmem:[#allocation6 + $0x490] sm:$0xff]
    %v541 = vld [vmem:[#allocation6 + $0x498] sm:$0xff]
    %v542 = vld [vmem:[#allocation6 + $0x4a0] sm:$0xff]
    %v543 = vld [vmem:[#allocation6 + $0x4a8] sm:$0xff]
    %v544 = vld [vmem:[#allocation6 + $0x4b0] sm:$0xff]
    %v545 = vld [vmem:[#allocation6 + $0x4b8] sm:$0xff]
    %v546 = vld [vmem:[#allocation6 + $0x4c0] sm:$0xff]
    %v547 = vld [vmem:[#allocation6 + $0x4c8] sm:$0xff]
    %v548 = vld [vmem:[#allocation6 + $0x4d0] sm:$0xff]
    %v549 = vld [vmem:[#allocation6 + $0x4d8] sm:$0xff]
    %v550 = vld [vmem:[#allocation6 + $0x4e0] sm:$0xff]
    %v551 = vld [vmem:[#allocation6 + $0x4e8] sm:$0xff]
    %v552 = vld [vmem:[#allocation6 + $0x4f0] sm:$0xff]
    %v553 = vld [vmem:[#allocation6 + $0x4f8] sm:$0xff]
    %v554 = vld [vmem:[#allocation6 + $0x500] sm:$0xff]
    %v555 = vld [vmem:[#allocation6 + $0x508] sm:$0xff]
    %v556 = vld [vmem:[#allocation6 + $0x510] sm:$0xff]
    %v557 = vld [vmem:[#allocation6 + $0x518] sm:$0xff]
    %v558 = vld [vmem:[#allocation6 + $0x520] sm:$0xff]
    %v559 = vld [vmem:[#allocation6 + $0x528] sm:$0xff]
    %v560 = vld [vmem:[#allocation6 + $0x530] sm:$0xff]
    %v561 = vld [vmem:[#allocation6 + $0x538] sm:$0xff]
    %v562 = vld [vmem:[#allocation6 + $0x540] sm:$0xff]
    %v563 = vld [vmem:[#allocation6 + $0x548] sm:$0xff]
    %v564 = vld [vmem:[#allocation6 + $0x550] sm:$0xff]
    %v565 = vld [vmem:[#allocation6 + $0x558] sm:$0xff]
    %v566 = vld [vmem:[#allocation6 + $0x560] sm:$0xff]
    %v567 = vld [vmem:[#allocation6 + $0x568] sm:$0xff]
    %v568 = vld [vmem:[#allocation6 + $0x570] sm:$0xff]
    %v569 = vld [vmem:[#allocation6 + $0x578] sm:$0xff]
    %v570 = vld [vmem:[#allocation6 + $0x580] sm:$0xff]
    %v571 = vld [vmem:[#allocation6 + $0x588] sm:$0xff]
    %v572 = vld [vmem:[#allocation6 + $0x590] sm:$0xff]
    %v573 = vld [vmem:[#allocation6 + $0x598] sm:$0xff]
    %v574 = vld [vmem:[#allocation6 + $0x5a0] sm:$0xff]
    %v575 = vld [vmem:[#allocation6 + $0x5a8] sm:$0xff]
    %v576 = vld [vmem:[#allocation6 + $0x5b0] sm:$0xff]
    %v577 = vld [vmem:[#allocation6 + $0x5b8] sm:$0xff]
    %v578 = vld [vmem:[#allocation6 + $0x5c0] sm:$0xff]
    %v579 = vld [vmem:[#allocation6 + $0x5c8] sm:$0xff]
    %v580 = vld [vmem:[#allocation6 + $0x5d0] sm:$0xff]
    %v581 = vld [vmem:[#allocation6 + $0x5d8] sm:$0xff]
    %v582 = vld [vmem:[#allocation6 + $0x5e0] sm:$0xff]
    %v583 = vld [vmem:[#allocation6 + $0x5e8] sm:$0xff]
    %v584 = vld [vmem:[#allocation6 + $0x5f0] sm:$0xff]
    %v585 = vld [vmem:[#allocation6 + $0x5f8] sm:$0xff]
    %v586 = vld [vmem:[#allocation6 + $0x600] sm:$0xff]
    %v587 = vld [vmem:[#allocation6 + $0x608] sm:$0xff]
    %v588 = vld [vmem:[#allocation6 + $0x610] sm:$0xff]
    %v589 = vld [vmem:[#allocation6 + $0x618] sm:$0xff]
    %v590 = vld [vmem:[#allocation6 + $0x620] sm:$0xff]
    %v591 = vld [vmem:[#allocation6 + $0x628] sm:$0xff]
    %v592 = vld [vmem:[#allocation6 + $0x630] sm:$0xff]
    %v593 = vld [vmem:[#allocation6 + $0x638] sm:$0xff]
    %v594 = vld [vmem:[#allocation6 + $0x640] sm:$0xff]
    %v595 = vld [vmem:[#allocation6 + $0x648] sm:$0xff]
    %v596 = vld [vmem:[#allocation6 + $0x650] sm:$0xff]
    %v597 = vld [vmem:[#allocation6 + $0x658] sm:$0xff]
    %v598 = vld [vmem:[#allocation6 + $0x660] sm:$0xff]
    %v599 = vld [vmem:[#allocation6 + $0x668] sm:$0xff]
    %v600 = vld [vmem:[#allocation6 + $0x670] sm:$0xff]
    %v601 = vld [vmem:[#allocation6 + $0x678] sm:$0xff]
    %v602 = vld [vmem:[#allocation6 + $0x680] sm:$0xff]
    %v603 = vld [vmem:[#allocation6 + $0x688] sm:$0xff]
    %v604 = vld [vmem:[#allocation6 + $0x690] sm:$0xff]
    %v605 = vld [vmem:[#allocation6 + $0x698] sm:$0xff]
    %v606 = vld [vmem:[#allocation6 + $0x6a0] sm:$0xff]
    %v607 = vld [vmem:[#allocation6 + $0x6a8] sm:$0xff]
    %v608 = vld [vmem:[#allocation6 + $0x6b0] sm:$0xff]
    %v609 = vld [vmem:[#allocation6 + $0x6b8] sm:$0xff]
    %v610 = vld [vmem:[#allocation6 + $0x6c0] sm:$0xff]
    %v611 = vld [vmem:[#allocation6 + $0x6c8] sm:$0xff]
    %v612 = vld [vmem:[#allocation6 + $0x6d0] sm:$0xff]
    %v613 = vld [vmem:[#allocation6 + $0x6d8] sm:$0xff]
    %v614 = vld [vmem:[#allocation6 + $0x6e0] sm:$0xff]
    %v615 = vld [vmem:[#allocation6 + $0x6e8] sm:$0xff]
    %v616 = vld [vmem:[#allocation6 + $0x6f0] sm:$0xff]
    %v617 = vld [vmem:[#allocation6 + $0x6f8] sm:$0xff]
    %v618 = vld [vmem:[#allocation6 + $0x700] sm:$0xff]
    %v619 = vld [vmem:[#allocation6 + $0x708] sm:$0xff]
    %v620 = vld [vmem:[#allocation6 + $0x710] sm:$0xff]
    %v621 = vld [vmem:[#allocation6 + $0x718] sm:$0xff]
    %v622 = vld [vmem:[#allocation6 + $0x720] sm:$0xff]
    %v623 = vld [vmem:[#allocation6 + $0x728] sm:$0xff]
    %v624 = vld [vmem:[#allocation6 + $0x730] sm:$0xff]
    %v625 = vld [vmem:[#allocation6 + $0x738] sm:$0xff]
    %v626 = vld [vmem:[#allocation6 + $0x740] sm:$0xff]
    %v627 = vld [vmem:[#allocation6 + $0x748] sm:$0xff]
    %v628 = vld [vmem:[#allocation6 + $0x750] sm:$0xff]
    %v629 = vld [vmem:[#allocation6 + $0x758] sm:$0xff]
    %v630 = vld [vmem:[#allocation6 + $0x760] sm:$0xff]
    %v631 = vld [vmem:[#allocation6 + $0x768] sm:$0xff]
    %v632 = vld [vmem:[#allocation6 + $0x770] sm:$0xff]
    %v633 = vld [vmem:[#allocation6 + $0x778] sm:$0xff]
    %v634 = vld [vmem:[#allocation6 + $0x780] sm:$0xff]
    %v635 = vld [vmem:[#allocation6 + $0x788] sm:$0xff]
    %v636 = vld [vmem:[#allocation6 + $0x790] sm:$0xff]
    %v637 = vld [vmem:[#allocation6 + $0x798] sm:$0xff]
    %v638 = vld [vmem:[#allocation6 + $0x7a0] sm:$0xff]
    %v639 = vld [vmem:[#allocation6 + $0x7a8] sm:$0xff]
    %v640 = vld [vmem:[#allocation6 + $0x7b0] sm:$0xff]
    %v641 = vld [vmem:[#allocation6 + $0x7b8] sm:$0xff]
    %v642 = vld [vmem:[#allocation6 + $0x7c0] sm:$0xff]
    %v643 = vld [vmem:[#allocation6 + $0x7c8] sm:$0xff]
    %v644 = vld [vmem:[#allocation6 + $0x7d0] sm:$0xff]
    %v645 = vld [vmem:[#allocation6 + $0x7d8] sm:$0xff]
    %v646 = vld [vmem:[#allocation6 + $0x7e0] sm:$0xff]
    %v647 = vld [vmem:[#allocation6 + $0x7e8] sm:$0xff]
    %v648 = vld [vmem:[#allocation6 + $0x7f0] sm:$0xff]
    %v649 = vld [vmem:[#allocation6 + $0x7f8] sm:$0xff]
    %v650 = vld [vmem:[#allocation6 + $0x800] sm:$0xff]
    %v651 = vld [vmem:[#allocation6 + $0x808] sm:$0xff]
    %v652 = vld [vmem:[#allocation6 + $0x810] sm:$0xff]
    %v653 = vld [vmem:[#allocation6 + $0x818] sm:$0xff]
    %v654 = vld [vmem:[#allocation6 + $0x820] sm:$0xff]
    %v655 = vld [vmem:[#allocation6 + $0x828] sm:$0xff]
    %v656 = vld [vmem:[#allocation6 + $0x830] sm:$0xff]
    %v657 = vld [vmem:[#allocation6 + $0x838] sm:$0xff]
    %v658 = vld [vmem:[#allocation6 + $0x840] sm:$0xff]
    %v659 = vld [vmem:[#allocation6 + $0x848] sm:$0xff]
    %v660 = vld [vmem:[#allocation6 + $0x850] sm:$0xff]
    %v661 = vld [vmem:[#allocation6 + $0x858] sm:$0xff]
    %v662 = vld [vmem:[#allocation6 + $0x860] sm:$0xff]
    %v663 = vld [vmem:[#allocation6 + $0x868] sm:$0xff]
    %v664 = vld [vmem:[#allocation6 + $0x870] sm:$0xff]
    %v665 = vld [vmem:[#allocation6 + $0x878] sm:$0xff]
    %v666 = vld [vmem:[#allocation6 + $0x880] sm:$0xff]
    %v667 = vld [vmem:[#allocation6 + $0x888] sm:$0xff]
    %v668 = vld [vmem:[#allocation6 + $0x890] sm:$0xff]
    %v669 = vld [vmem:[#allocation6 + $0x898] sm:$0xff]
    %v670 = vld [vmem:[#allocation6 + $0x8a0] sm:$0xff]
    %v671 = vld [vmem:[#allocation6 + $0x8a8] sm:$0xff]
    %v672 = vld [vmem:[#allocation6 + $0x8b0] sm:$0xff]
    %v673 = vld [vmem:[#allocation6 + $0x8b8] sm:$0xff]
    %v674 = vld [vmem:[#allocation6 + $0x8c0] sm:$0xff]
    %v675 = vld [vmem:[#allocation6 + $0x8c8] sm:$0xff]
    %v676 = vld [vmem:[#allocation6 + $0x8d0] sm:$0xff]
    %v677 = vld [vmem:[#allocation6 + $0x8d8] sm:$0xff]
    %v678 = vld [vmem:[#allocation6 + $0x8e0] sm:$0xff]
    %v679 = vld [vmem:[#allocation6 + $0x8e8] sm:$0xff]
    %v680 = vld [vmem:[#allocation6 + $0x8f0] sm:$0xff]
    %v681 = vld [vmem:[#allocation6 + $0x8f8] sm:$0xff]
    %v682 = vld [vmem:[#allocation6 + $0x900] sm:$0xff]
    %v683 = vld [vmem:[#allocation6 + $0x908] sm:$0xff]
    %v684 = vld [vmem:[#allocation6 + $0x910] sm:$0xff]
    %v685 = vld [vmem:[#allocation6 + $0x918] sm:$0xff]
    %v686 = vld [vmem:[#allocation6 + $0x920] sm:$0xff]
    %v687 = vld [vmem:[#allocation6 + $0x928] sm:$0xff]
    %v688 = vld [vmem:[#allocation6 + $0x930] sm:$0xff]
    %v689 = vld [vmem:[#allocation6 + $0x938] sm:$0xff]
    %v690 = vld [vmem:[#allocation6 + $0x940] sm:$0xff]
    %v691 = vld [vmem:[#allocation6 + $0x948] sm:$0xff]
    %v692 = vld [vmem:[#allocation6 + $0x950] sm:$0xff]
    %v693 = vld [vmem:[#allocation6 + $0x958] sm:$0xff]
    %v694 = vld [vmem:[#allocation6 + $0x960] sm:$0xff]
    %v695 = vld [vmem:[#allocation6 + $0x968] sm:$0xff]
    %v696 = vld [vmem:[#allocation6 + $0x970] sm:$0xff]
    %v697 = vld [vmem:[#allocation6 + $0x978] sm:$0xff]
    %v698 = vld [vmem:[#allocation6 + $0x980] sm:$0xff]
    %v699 = vld [vmem:[#allocation6 + $0x988] sm:$0xff]
    %v700 = vld [vmem:[#allocation6 + $0x990] sm:$0xff]
    %v701 = vld [vmem:[#allocation6 + $0x998] sm:$0xff]
    %v702 = vld [vmem:[#allocation6 + $0x9a0] sm:$0xff]
    %v703 = vld [vmem:[#allocation6 + $0x9a8] sm:$0xff]
    %v704 = vld [vmem:[#allocation6 + $0x9b0] sm:$0xff]
    %v705 = vld [vmem:[#allocation6 + $0x9b8] sm:$0xff]
    %v706 = vld [vmem:[#allocation6 + $0x9c0] sm:$0xff]
    %v707 = vld [vmem:[#allocation6 + $0x9c8] sm:$0xff]
    %v708 = vld [vmem:[#allocation6 + $0x9d0] sm:$0xff]
    %v709 = vld [vmem:[#allocation6 + $0x9d8] sm:$0xff]
    %v710 = vld [vmem:[#allocation6 + $0x9e0] sm:$0xff]
    %v711 = vld [vmem:[#allocation6 + $0x9e8] sm:$0xff]
    %v712 = vld [vmem:[#allocation6 + $0x9f0] sm:$0xff]
    %v713 = vld [vmem:[#allocation6 + $0x9f8] sm:$0xff]
    %v714 = vld [vmem:[#allocation6 + $0xa00] sm:$0xff]
    %v715 = vld [vmem:[#allocation6 + $0xa08] sm:$0xff]
    %v716 = vld [vmem:[#allocation6 + $0xa10] sm:$0xff]
    %v717 = vld [vmem:[#allocation6 + $0xa18] sm:$0xff]
    %v718 = vld [vmem:[#allocation6 + $0xa20] sm:$0xff]
    %v719 = vld [vmem:[#allocation6 + $0xa28] sm:$0xff]
    %v720 = vld [vmem:[#allocation6 + $0xa30] sm:$0xff]
    %v721 = vld [vmem:[#allocation6 + $0xa38] sm:$0xff]
    %v722 = vld [vmem:[#allocation6 + $0xa40] sm:$0xff]
    %v723 = vld [vmem:[#allocation6 + $0xa48] sm:$0xff]
    %v724 = vld [vmem:[#allocation6 + $0xa50] sm:$0xff]
    %v725 = vld [vmem:[#allocation6 + $0xa58] sm:$0xff]
    %v726 = vld [vmem:[#allocation6 + $0xa60] sm:$0xff]
    %v727 = vld [vmem:[#allocation6 + $0xa68] sm:$0xff]
    %v728 = vld [vmem:[#allocation6 + $0xa70] sm:$0xff]
    %v729 = vld [vmem:[#allocation6 + $0xa78] sm:$0xff]
    %v730 = vld [vmem:[#allocation6 + $0xa80] sm:$0xff]
    %v731 = vld [vmem:[#allocation6 + $0xa88] sm:$0xff]
    %v732 = vld [vmem:[#allocation6 + $0xa90] sm:$0xff]
    %v733 = vld [vmem:[#allocation6 + $0xa98] sm:$0xff]
    %v734 = vld [vmem:[#allocation6 + $0xaa0] sm:$0xff]
    %v735 = vld [vmem:[#allocation6 + $0xaa8] sm:$0xff]
    %v736 = vld [vmem:[#allocation6 + $0xab0] sm:$0xff]
    %v737 = vld [vmem:[#allocation6 + $0xab8] sm:$0xff]
    %v738 = vld [vmem:[#allocation6 + $0xac0] sm:$0xff]
    %v739 = vld [vmem:[#allocation6 + $0xac8] sm:$0xff]
    %v740 = vld [vmem:[#allocation6 + $0xad0] sm:$0xff]
    %v741 = vld [vmem:[#allocation6 + $0xad8] sm:$0xff]
    %v742 = vld [vmem:[#allocation6 + $0xae0] sm:$0xff]
    %v743 = vld [vmem:[#allocation6 + $0xae8] sm:$0xff]
    %v744 = vld [vmem:[#allocation6 + $0xaf0] sm:$0xff]
    %v745 = vld [vmem:[#allocation6 + $0xaf8] sm:$0xff]
    %v746 = vld [vmem:[#allocation6 + $0xb00] sm:$0xff]
    %v747 = vld [vmem:[#allocation6 + $0xb08] sm:$0xff]
    %v748 = vld [vmem:[#allocation6 + $0xb10] sm:$0xff]
    %v749 = vld [vmem:[#allocation6 + $0xb18] sm:$0xff]
    %v750 = vld [vmem:[#allocation6 + $0xb20] sm:$0xff]
    %v751 = vld [vmem:[#allocation6 + $0xb28] sm:$0xff]
    %v752 = vld [vmem:[#allocation6 + $0xb30] sm:$0xff]
    %v753 = vld [vmem:[#allocation6 + $0xb38] sm:$0xff]
    %v754 = vld [vmem:[#allocation6 + $0xb40] sm:$0xff]
    %v755 = vld [vmem:[#allocation6 + $0xb48] sm:$0xff]
    %v756 = vld [vmem:[#allocation6 + $0xb50] sm:$0xff]
    %v757 = vld [vmem:[#allocation6 + $0xb58] sm:$0xff]
    %v758 = vld [vmem:[#allocation6 + $0xb60] sm:$0xff]
    %v759 = vld [vmem:[#allocation6 + $0xb68] sm:$0xff]
    %v760 = vld [vmem:[#allocation6 + $0xb70] sm:$0xff]
    %v761 = vld [vmem:[#allocation6 + $0xb78] sm:$0xff]
    %v762 = vld [vmem:[#allocation6 + $0xb80] sm:$0xff]
    %v763 = vld [vmem:[#allocation6 + $0xb88] sm:$0xff]
    %v764 = vld [vmem:[#allocation6 + $0xb90] sm:$0xff]
    %v765 = vld [vmem:[#allocation6 + $0xb98] sm:$0xff]
    %v766 = vld [vmem:[#allocation6 + $0xba0] sm:$0xff]
    %v767 = vld [vmem:[#allocation6 + $0xba8] sm:$0xff]
    %v768 = vld [vmem:[#allocation6 + $0xbb0] sm:$0xff]
    %v769 = vld [vmem:[#allocation6 + $0xbb8] sm:$0xff]
    %v770 = vld [vmem:[#allocation6 + $0xbc0] sm:$0xff]
    %v771 = vld [vmem:[#allocation6 + $0xbc8] sm:$0xff]
    %v772 = vld [vmem:[#allocation6 + $0xbd0] sm:$0xff]
    %v773 = vld [vmem:[#allocation6 + $0xbd8] sm:$0xff]
    %v774 = vld [vmem:[#allocation6 + $0xbe0] sm:$0xff]
    %v775 = vld [vmem:[#allocation6 + $0xbe8] sm:$0xff]
    %v776 = vld [vmem:[#allocation6 + $0xbf0] sm:$0xff]
    %v777 = vld [vmem:[#allocation6 + $0xbf8] sm:$0xff]
    %v778 = vld [vmem:[#allocation6 + $0xc00] sm:$0xff]
    %v779 = vld [vmem:[#allocation6 + $0xc08] sm:$0xff]
    %v780 = vld [vmem:[#allocation6 + $0xc10] sm:$0xff]
    %v781 = vld [vmem:[#allocation6 + $0xc18] sm:$0xff]
    %v782 = vld [vmem:[#allocation6 + $0xc20] sm:$0xff]
    %v783 = vld [vmem:[#allocation6 + $0xc28] sm:$0xff]
    %v784 = vld [vmem:[#allocation6 + $0xc30] sm:$0xff]
    %v785 = vld [vmem:[#allocation6 + $0xc38] sm:$0xff]
    %v786 = vld [vmem:[#allocation6 + $0xc40] sm:$0xff]
    %v787 = vld [vmem:[#allocation6 + $0xc48] sm:$0xff]
    %v788 = vld [vmem:[#allocation6 + $0xc50] sm:$0xff]
    %v789 = vld [vmem:[#allocation6 + $0xc58] sm:$0xff]
    %v790 = vld [vmem:[#allocation6 + $0xc60] sm:$0xff]
    %v791 = vld [vmem:[#allocation6 + $0xc68] sm:$0xff]
    %v792 = vld [vmem:[#allocation6 + $0xc70] sm:$0xff]
    %v793 = vld [vmem:[#allocation6 + $0xc78] sm:$0xff]
    %v794 = vld [vmem:[#allocation6 + $0xc80] sm:$0xff]
    %v795 = vld [vmem:[#allocation6 + $0xc88] sm:$0xff]
    %v796 = vld [vmem:[#allocation6 + $0xc90] sm:$0xff]
    %v797 = vld [vmem:[#allocation6 + $0xc98] sm:$0xff]
    %v798 = vld [vmem:[#allocation6 + $0xca0] sm:$0xff]
    %v799 = vld [vmem:[#allocation6 + $0xca8] sm:$0xff]
    %v800 = vld [vmem:[#allocation6 + $0xcb0] sm:$0xff]
    %v801 = vld [vmem:[#allocation6 + $0xcb8] sm:$0xff]
    %v802 = vld [vmem:[#allocation6 + $0xcc0] sm:$0xff]
    %v803 = vld [vmem:[#allocation6 + $0xcc8] sm:$0xff]
    %v804 = vld [vmem:[#allocation6 + $0xcd0] sm:$0xff]
    %v805 = vld [vmem:[#allocation6 + $0xcd8] sm:$0xff]
    %v806 = vld [vmem:[#allocation6 + $0xce0] sm:$0xff]
    %v807 = vld [vmem:[#allocation6 + $0xce8] sm:$0xff]
    %v808 = vld [vmem:[#allocation6 + $0xcf0] sm:$0xff]
    %v809 = vld [vmem:[#allocation6 + $0xcf8] sm:$0xff]
    %v810 = vld [vmem:[#allocation6 + $0xd00] sm:$0xff]
    %v811 = vld [vmem:[#allocation6 + $0xd08] sm:$0xff]
    %v812 = vld [vmem:[#allocation6 + $0xd10] sm:$0xff]
    %v813 = vld [vmem:[#allocation6 + $0xd18] sm:$0xff]
    %v814 = vld [vmem:[#allocation6 + $0xd20] sm:$0xff]
    %v815 = vld [vmem:[#allocation6 + $0xd28] sm:$0xff]
    %v816 = vld [vmem:[#allocation6 + $0xd30] sm:$0xff]
    %v817 = vld [vmem:[#allocation6 + $0xd38] sm:$0xff]
    %v818 = vld [vmem:[#allocation6 + $0xd40] sm:$0xff]
    %v819 = vld [vmem:[#allocation6 + $0xd48] sm:$0xff]
    %v820 = vld [vmem:[#allocation6 + $0xd50] sm:$0xff]
    %v821 = vld [vmem:[#allocation6 + $0xd58] sm:$0xff]
    %v822 = vld [vmem:[#allocation6 + $0xd60] sm:$0xff]
    %v823 = vld [vmem:[#allocation6 + $0xd68] sm:$0xff]
    %v824 = vld [vmem:[#allocation6 + $0xd70] sm:$0xff]
    %v825 = vld [vmem:[#allocation6 + $0xd78] sm:$0xff]
    %v826 = vld [vmem:[#allocation6 + $0xd80] sm:$0xff]
    %v827 = vld [vmem:[#allocation6 + $0xd88] sm:$0xff]
    %v828 = vld [vmem:[#allocation6 + $0xd90] sm:$0xff]
    %v829 = vld [vmem:[#allocation6 + $0xd98] sm:$0xff]
    %v830 = vld [vmem:[#allocation6 + $0xda0] sm:$0xff]
    %v831 = vld [vmem:[#allocation6 + $0xda8] sm:$0xff]
    %v832 = vld [vmem:[#allocation6 + $0xdb0] sm:$0xff]
    %v833 = vld [vmem:[#allocation6 + $0xdb8] sm:$0xff]
    %v834 = vld [vmem:[#allocation6 + $0xdc0] sm:$0xff]
    %v835 = vld [vmem:[#allocation6 + $0xdc8] sm:$0xff]
    %v836 = vld [vmem:[#allocation6 + $0xdd0] sm:$0xff]
    %v837 = vld [vmem:[#allocation6 + $0xdd8] sm:$0xff]
    %v838 = vld [vmem:[#allocation6 + $0xde0] sm:$0xff]
    %v839 = vld [vmem:[#allocation6 + $0xde8] sm:$0xff]
    %v840 = vld [vmem:[#allocation6 + $0xdf0] sm:$0xff]
    %v841 = vld [vmem:[#allocation6 + $0xdf8] sm:$0xff]
    %v842 = vld [vmem:[#allocation6 + $0xe00] sm:$0xff]
    %v843 = vld [vmem:[#allocation6 + $0xe08] sm:$0xff]
    %v844 = vld [vmem:[#allocation6 + $0xe10] sm:$0xff]
    %v845 = vld [vmem:[#allocation6 + $0xe18] sm:$0xff]
    %v846 = vld [vmem:[#allocation6 + $0xe20] sm:$0xff]
    %v847 = vld [vmem:[#allocation6 + $0xe28] sm:$0xff]
    %v848 = vld [vmem:[#allocation6 + $0xe30] sm:$0xff]
    %v849 = vld [vmem:[#allocation6 + $0xe38] sm:$0xff]
    %v850 = vld [vmem:[#allocation6 + $0xe40] sm:$0xff]
    %v851 = vld [vmem:[#allocation6 + $0xe48] sm:$0xff]
    %v852 = vld [vmem:[#allocation6 + $0xe50] sm:$0xff]
    %v853 = vld [vmem:[#allocation6 + $0xe58] sm:$0xff]
    %v854 = vld [vmem:[#allocation6 + $0xe60] sm:$0xff]
    %v855 = vld [vmem:[#allocation6 + $0xe68] sm:$0xff]
    %v856 = vld [vmem:[#allocation6 + $0xe70] sm:$0xff]
    %v857 = vld [vmem:[#allocation6 + $0xe78] sm:$0xff]
    %v858 = vld [vmem:[#allocation6 + $0xe80] sm:$0xff]
    %v859 = vld [vmem:[#allocation6 + $0xe88] sm:$0xff]
    %v860 = vld [vmem:[#allocation6 + $0xe90] sm:$0xff]
    %v861 = vld [vmem:[#allocation6 + $0xe98] sm:$0xff]
    %v862 = vld [vmem:[#allocation6 + $0xea0] sm:$0xff]
    %v863 = vld [vmem:[#allocation6 + $0xea8] sm:$0xff]
    %v864 = vld [vmem:[#allocation6 + $0xeb0] sm:$0xff]
    %v865 = vld [vmem:[#allocation6 + $0xeb8] sm:$0xff]
    %v866 = vld [vmem:[#allocation6 + $0xec0] sm:$0xff]
    %v867 = vld [vmem:[#allocation6 + $0xec8] sm:$0xff]
    %v868 = vld [vmem:[#allocation6 + $0xed0] sm:$0xff]
    %v869 = vld [vmem:[#allocation6 + $0xed8] sm:$0xff]
    %v870 = vld [vmem:[#allocation6 + $0xee0] sm:$0xff]
    %v871 = vld [vmem:[#allocation6 + $0xee8] sm:$0xff]
    %v872 = vld [vmem:[#allocation6 + $0xef0] sm:$0xff]
    %v873 = vld [vmem:[#allocation6 + $0xef8] sm:$0xff]
    %v874 = vld [vmem:[#allocation6 + $0xf00] sm:$0xff]
    %v875 = vld [vmem:[#allocation6 + $0xf08] sm:$0xff]
    %v876 = vld [vmem:[#allocation6 + $0xf10] sm:$0xff]
    %v877 = vld [vmem:[#allocation6 + $0xf18] sm:$0xff]
    %v878 = vld [vmem:[#allocation6 + $0xf20] sm:$0xff]
    %v879 = vld [vmem:[#allocation6 + $0xf28] sm:$0xff]
    %v880 = vld [vmem:[#allocation6 + $0xf30] sm:$0xff]
    %v881 = vld [vmem:[#allocation6 + $0xf38] sm:$0xff]
    %v882 = vld [vmem:[#allocation6 + $0xf40] sm:$0xff]
    %v883 = vld [vmem:[#allocation6 + $0xf48] sm:$0xff]
    %v884 = vld [vmem:[#allocation6 + $0xf50] sm:$0xff]
    %v885 = vld [vmem:[#allocation6 + $0xf58] sm:$0xff]
    %v886 = vld [vmem:[#allocation6 + $0xf60] sm:$0xff]
    %v887 = vld [vmem:[#allocation6 + $0xf68] sm:$0xff]
    %v888 = vld [vmem:[#allocation6 + $0xf70] sm:$0xff]
    %v889 = vld [vmem:[#allocation6 + $0xf78] sm:$0xff]
    %v890 = vld [vmem:[#allocation6 + $0xf80] sm:$0xff]
    %v891 = vld [vmem:[#allocation6 + $0xf88] sm:$0xff]
    %v892 = vld [vmem:[#allocation6 + $0xf90] sm:$0xff]
    %v893 = vld [vmem:[#allocation6 + $0xf98] sm:$0xff]
    %v894 = vld [vmem:[#allocation6 + $0xfa0] sm:$0xff]
    %v895 = vld [vmem:[#allocation6 + $0xfa8] sm:$0xff]
    %v896 = vld [vmem:[#allocation6 + $0xfb0] sm:$0xff]
    %v897 = vld [vmem:[#allocation6 + $0xfb8] sm:$0xff]
    %v898 = vld [vmem:[#allocation6 + $0xfc0] sm:$0xff]
    %v899 = vld [vmem:[#allocation6 + $0xfc8] sm:$0xff]
    %v900 = vld [vmem:[#allocation6 + $0xfd0] sm:$0xff]
    %v901 = vld [vmem:[#allocation6 + $0xfd8] sm:$0xff]
    %v902 = vld [vmem:[#allocation6 + $0xfe0] sm:$0xff]
    %v903 = vld [vmem:[#allocation6 + $0xfe8] sm:$0xff]
    %v904 = vld [vmem:[#allocation6 + $0xff0] sm:$0xff]
    %v905 = vld [vmem:[#allocation6 + $0xff8] sm:$0xff]
    %v906 = vld [vmem:[#allocation6 + $0x1000] sm:$0xff]
    %v907 = vld [vmem:[#allocation6 + $0x1008] sm:$0xff]
    %v908 = vld [vmem:[#allocation6 + $0x1010] sm:$0xff]
    %v909 = vld [vmem:[#allocation6 + $0x1018] sm:$0xff]
    %v910 = vld [vmem:[#allocation6 + $0x1020] sm:$0xff]
    %v911 = vld [vmem:[#allocation6 + $0x1028] sm:$0xff]
    %v912 = vld [vmem:[#allocation6 + $0x1030] sm:$0xff]
    %v913 = vld [vmem:[#allocation6 + $0x1038] sm:$0xff]
    %v914 = vld [vmem:[#allocation6 + $0x1040] sm:$0xff]
    %v915 = vld [vmem:[#allocation6 + $0x1048] sm:$0xff]
    %v916 = vld [vmem:[#allocation6 + $0x1050] sm:$0xff]
    %v917 = vld [vmem:[#allocation6 + $0x1058] sm:$0xff]
    %v918 = vld [vmem:[#allocation6 + $0x1060] sm:$0xff]
    %v919 = vld [vmem:[#allocation6 + $0x1068] sm:$0xff]
    %v920 = vld [vmem:[#allocation6 + $0x1070] sm:$0xff]
    %v921 = vld [vmem:[#allocation6 + $0x1078] sm:$0xff]
    %v922 = vld [vmem:[#allocation6 + $0x1080] sm:$0xff]
    %v923 = vld [vmem:[#allocation6 + $0x1088] sm:$0xff]
    %v924 = vld [vmem:[#allocation6 + $0x1090] sm:$0xff]
    %v925 = vld [vmem:[#allocation6 + $0x1098] sm:$0xff]
    %v926 = vld [vmem:[#allocation6 + $0x10a0] sm:$0xff]
    %v927 = vld [vmem:[#allocation6 + $0x10a8] sm:$0xff]
    %v928 = vld [vmem:[#allocation6 + $0x10b0] sm:$0xff]
    %v929 = vld [vmem:[#allocation6 + $0x10b8] sm:$0xff]
    %v930 = vld [vmem:[#allocation6 + $0x10c0] sm:$0xff]
    %v931 = vld [vmem:[#allocation6 + $0x10c8] sm:$0xff]
    %v932 = vld [vmem:[#allocation6 + $0x10d0] sm:$0xff]
    %v933 = vld [vmem:[#allocation6 + $0x10d8] sm:$0xff]
    %v934 = vld [vmem:[#allocation6 + $0x10e0] sm:$0xff]
    %v935 = vld [vmem:[#allocation6 + $0x10e8] sm:$0xff]
    %v936 = vld [vmem:[#allocation6 + $0x10f0] sm:$0xff]
    %v937 = vld [vmem:[#allocation6 + $0x10f8] sm:$0xff]
    %v938 = vld [vmem:[#allocation6 + $0x1100] sm:$0xff]
    %v939 = vld [vmem:[#allocation6 + $0x1108] sm:$0xff]
    %v940 = vld [vmem:[#allocation6 + $0x1110] sm:$0xff]
    %v941 = vld [vmem:[#allocation6 + $0x1118] sm:$0xff]
    %v942 = vld [vmem:[#allocation6 + $0x1120] sm:$0xff]
    %v943 = vld [vmem:[#allocation6 + $0x1128] sm:$0xff]
    %v944 = vld [vmem:[#allocation6 + $0x1130] sm:$0xff]
    %v945 = vld [vmem:[#allocation6 + $0x1138] sm:$0xff]
    %v946 = vld [vmem:[#allocation6 + $0x1140] sm:$0xff]
    %v947 = vld [vmem:[#allocation6 + $0x1148] sm:$0xff]
    %v948 = vld [vmem:[#allocation6 + $0x1150] sm:$0xff]
    %v949 = vld [vmem:[#allocation6 + $0x1158] sm:$0xff]
    %v950 = vld [vmem:[#allocation6 + $0x1160] sm:$0xff]
    %v951 = vld [vmem:[#allocation6 + $0x1168] sm:$0xff]
    %v952 = vld [vmem:[#allocation6 + $0x1170] sm:$0xff]
    %v953 = vld [vmem:[#allocation6 + $0x1178] sm:$0xff]
    %v954 = vld [vmem:[#allocation6 + $0x1180] sm:$0xff]
    %v955 = vld [vmem:[#allocation6 + $0x1188] sm:$0xff]
    %v956 = vld [vmem:[#allocation6 + $0x1190] sm:$0xff]
    %v957 = vld [vmem:[#allocation6 + $0x1198] sm:$0xff]
    %v958 = vld [vmem:[#allocation6 + $0x11a0] sm:$0xff]
    %v959 = vld [vmem:[#allocation6 + $0x11a8] sm:$0xff]
    %v960 = vld [vmem:[#allocation6 + $0x11b0] sm:$0xff]
    %v961 = vld [vmem:[#allocation6 + $0x11b8] sm:$0xff]
    %v962 = vld [vmem:[#allocation6 + $0x11c0] sm:$0xff]
    %v963 = vld [vmem:[#allocation6 + $0x11c8] sm:$0xff]
    %v964 = vld [vmem:[#allocation6 + $0x11d0] sm:$0xff]
    %v965 = vld [vmem:[#allocation6 + $0x11d8] sm:$0xff]
    %v966 = vld [vmem:[#allocation6 + $0x11e0] sm:$0xff]
    %v967 = vld [vmem:[#allocation6 + $0x11e8] sm:$0xff]
    %v968 = vld [vmem:[#allocation6 + $0x11f0] sm:$0xff]
    %v969 = vld [vmem:[#allocation6 + $0x11f8] sm:$0xff]
    %v970 = vld [vmem:[#allocation6 + $0x1200] sm:$0xff]
    %v971 = vld [vmem:[#allocation6 + $0x1208] sm:$0xff]
    %v972 = vld [vmem:[#allocation6 + $0x1210] sm:$0xff]
    %v973 = vld [vmem:[#allocation6 + $0x1218] sm:$0xff]
    %v974 = vld [vmem:[#allocation6 + $0x1220] sm:$0xff]
    %v975 = vld [vmem:[#allocation6 + $0x1228] sm:$0xff]
    %v976 = vld [vmem:[#allocation6 + $0x1230] sm:$0xff]
    %v977 = vld [vmem:[#allocation6 + $0x1238] sm:$0xff]
    %v978 = vld [vmem:[#allocation6 + $0x1240] sm:$0xff]
    %v979 = vld [vmem:[#allocation6 + $0x1248] sm:$0xff]
    %v980 = vld [vmem:[#allocation6 + $0x1250] sm:$0xff]
    %v981 = vld [vmem:[#allocation6 + $0x1258] sm:$0xff]
    %v982 = vld [vmem:[#allocation6 + $0x1260] sm:$0xff]
    %v983 = vld [vmem:[#allocation6 + $0x1268] sm:$0xff]
    %v984 = vld [vmem:[#allocation6 + $0x1270] sm:$0xff]
    %v985 = vld [vmem:[#allocation6 + $0x1278] sm:$0xff]
    %v986 = vld [vmem:[#allocation6 + $0x1280] sm:$0xff]
    %v987 = vld [vmem:[#allocation6 + $0x1288] sm:$0xff]
    %v988 = vld [vmem:[#allocation6 + $0x1290] sm:$0xff]
    %v989 = vld [vmem:[#allocation6 + $0x1298] sm:$0xff]
    %v990 = vld [vmem:[#allocation6 + $0x12a0] sm:$0xff]
    %v991 = vld [vmem:[#allocation6 + $0x12a8] sm:$0xff]
    %v992 = vld [vmem:[#allocation6 + $0x12b0] sm:$0xff]
    %v993 = vld [vmem:[#allocation6 + $0x12b8] sm:$0xff]
    %v994 = vld [vmem:[#allocation6 + $0x12c0] sm:$0xff]
    %v995 = vld [vmem:[#allocation6 + $0x12c8] sm:$0xff]
    %v996 = vld [vmem:[#allocation6 + $0x12d0] sm:$0xff]
    %v997 = vld [vmem:[#allocation6 + $0x12d8] sm:$0xff]
    %v998 = vld [vmem:[#allocation6 + $0x12e0] sm:$0xff]
    %v999 = vld [vmem:[#allocation6 + $0x12e8] sm:$0xff]
    %v1000 = vld [vmem:[#allocation6 + $0x12f0] sm:$0xff]
    %v1001 = vld [vmem:[#allocation6 + $0x12f8] sm:$0xff]
    %v1002 = vld [vmem:[#allocation6 + $0x1300] sm:$0xff]
    %v1003 = vld [vmem:[#allocation6 + $0x1308] sm:$0xff]
    %v1004 = vld [vmem:[#allocation6 + $0x1310] sm:$0xff]
    %v1005 = vld [vmem:[#allocation6 + $0x1318] sm:$0xff]
    %v1006 = vld [vmem:[#allocation6 + $0x1320] sm:$0xff]
    %v1007 = vld [vmem:[#allocation6 + $0x1328] sm:$0xff]
    %v1008 = vld [vmem:[#allocation6 + $0x1330] sm:$0xff]
    %v1009 = vld [vmem:[#allocation6 + $0x1338] sm:$0xff]
    %v1010 = vld [vmem:[#allocation6 + $0x1340] sm:$0xff]
    %v1011 = vld [vmem:[#allocation6 + $0x1348] sm:$0xff]
    %v1012 = vld [vmem:[#allocation6 + $0x1350] sm:$0xff]
    %v1013 = vld [vmem:[#allocation6 + $0x1358] sm:$0xff]
    %v1014 = vld [vmem:[#allocation6 + $0x1360] sm:$0xff]
    %v1015 = vld [vmem:[#allocation6 + $0x1368] sm:$0xff]
    %v1016 = vld [vmem:[#allocation6 + $0x1370] sm:$0xff]
    %v1017 = vld [vmem:[#allocation6 + $0x1378] sm:$0xff]
    %v1018 = vld [vmem:[#allocation6 + $0x1380] sm:$0xff]
    %v1019 = vld [vmem:[#allocation6 + $0x1388] sm:$0xff]
    %v1020 = vld [vmem:[#allocation6 + $0x1390] sm:$0xff]
    %v1021 = vld [vmem:[#allocation6 + $0x1398] sm:$0xff]
    %v1022 = vld [vmem:[#allocation6 + $0x13a0] sm:$0xff]
    %v1023 = vld [vmem:[#allocation6 + $0x13a8] sm:$0xff]
    %v1024 = vld [vmem:[#allocation6 + $0x13b0] sm:$0xff]
    %v1025 = vld [vmem:[#allocation6 + $0x13b8] sm:$0xff]
    %v1026 = vld [vmem:[#allocation6 + $0x13c0] sm:$0xff]
    %v1027 = vld [vmem:[#allocation6 + $0x13c8] sm:$0xff]
    %v1028 = vld [vmem:[#allocation6 + $0x13d0] sm:$0xff]
    %v1029 = vld [vmem:[#allocation6 + $0x13d8] sm:$0xff]
    %v1030 = vld [vmem:[#allocation6 + $0x13e0] sm:$0xff]
    %v1031 = vld [vmem:[#allocation6 + $0x13e8] sm:$0xff]
    %v1032 = vld [vmem:[#allocation6 + $0x13f0] sm:$0xff]
    %v1033 = vld [vmem:[#allocation6 + $0x13f8] sm:$0xff]
    %v1034 = vld [vmem:[#allocation6 + $0x1400] sm:$0xff]
    %v1035 = vld [vmem:[#allocation6 + $0x1408] sm:$0xff]
    %v1036 = vld [vmem:[#allocation6 + $0x1410] sm:$0xff]
    %v1037 = vld [vmem:[#allocation6 + $0x1418] sm:$0xff]
    %v1038 = vld [vmem:[#allocation6 + $0x1420] sm:$0xff]
    %v1039 = vld [vmem:[#allocation6 + $0x1428] sm:$0xff]
    %v1040 = vld [vmem:[#allocation6 + $0x1430] sm:$0xff]
    %v1041 = vld [vmem:[#allocation6 + $0x1438] sm:$0xff]
    %v1042 = vld [vmem:[#allocation6 + $0x1440] sm:$0xff]
    %v1043 = vld [vmem:[#allocation6 + $0x1448] sm:$0xff]
    %v1044 = vld [vmem:[#allocation6 + $0x1450] sm:$0xff]
    %v1045 = vld [vmem:[#allocation6 + $0x1458] sm:$0xff]
    %v1046 = vld [vmem:[#allocation6 + $0x1460] sm:$0xff]
    %v1047 = vld [vmem:[#allocation6 + $0x1468] sm:$0xff]
    %v1048 = vld [vmem:[#allocation6 + $0x1470] sm:$0xff]
    %v1049 = vld [vmem:[#allocation6 + $0x1478] sm:$0xff]
    %v1050 = vld [vmem:[#allocation6 + $0x1480] sm:$0xff]
    %v1051 = vld [vmem:[#allocation6 + $0x1488] sm:$0xff]
    %v1052 = vld [vmem:[#allocation6 + $0x1490] sm:$0xff]
    %v1053 = vld [vmem:[#allocation6 + $0x1498] sm:$0xff]
    %v1054 = vld [vmem:[#allocation6 + $0x14a0] sm:$0xff]
    %v1055 = vld [vmem:[#allocation6 + $0x14a8] sm:$0xff]
    %v1056 = vld [vmem:[#allocation6 + $0x14b0] sm:$0xff]
    %v1057 = vld [vmem:[#allocation6 + $0x14b8] sm:$0xff]
    %v1058 = vld [vmem:[#allocation6 + $0x14c0] sm:$0xff]
    %v1059 = vld [vmem:[#allocation6 + $0x14c8] sm:$0xff]
    %v1060 = vld [vmem:[#allocation6 + $0x14d0] sm:$0xff]
    %v1061 = vld [vmem:[#allocation6 + $0x14d8] sm:$0xff]
    %v1062 = vld [vmem:[#allocation6 + $0x14e0] sm:$0xff]
    %v1063 = vld [vmem:[#allocation6 + $0x14e8] sm:$0xff]
    %v1064 = vld [vmem:[#allocation6 + $0x14f0] sm:$0xff]
    %v1065 = vld [vmem:[#allocation6 + $0x14f8] sm:$0xff]
    %v1066 = vld [vmem:[#allocation6 + $0x1500] sm:$0xff]
    %v1067 = vld [vmem:[#allocation6 + $0x1508] sm:$0xff]
    %v1068 = vld [vmem:[#allocation6 + $0x1510] sm:$0xff]
    %v1069 = vld [vmem:[#allocation6 + $0x1518] sm:$0xff]
    %v1070 = vld [vmem:[#allocation6 + $0x1520] sm:$0xff]
    %v1071 = vld [vmem:[#allocation6 + $0x1528] sm:$0xff]
    %v1072 = vld [vmem:[#allocation6 + $0x1530] sm:$0xff]
    %v1073 = vld [vmem:[#allocation6 + $0x1538] sm:$0xff]
    %v1074 = vld [vmem:[#allocation6 + $0x1540] sm:$0xff]
    %v1075 = vld [vmem:[#allocation6 + $0x1548] sm:$0xff]
    %v1076 = vld [vmem:[#allocation6 + $0x1550] sm:$0xff]
    %v1077 = vld [vmem:[#allocation6 + $0x1558] sm:$0xff]
    %v1078 = vld [vmem:[#allocation6 + $0x1560] sm:$0xff]
    %v1079 = vld [vmem:[#allocation6 + $0x1568] sm:$0xff]
    %v1080 = vld [vmem:[#allocation6 + $0x1570] sm:$0xff]
    %v1081 = vld [vmem:[#allocation6 + $0x1578] sm:$0xff]
    %v1082 = vld [vmem:[#allocation6 + $0x1580] sm:$0xff]
    %v1083 = vld [vmem:[#allocation6 + $0x1588] sm:$0xff]
    %v1084 = vld [vmem:[#allocation6 + $0x1590] sm:$0xff]
    %v1085 = vld [vmem:[#allocation6 + $0x1598] sm:$0xff]
    %v1086 = vld [vmem:[#allocation6 + $0x15a0] sm:$0xff]
    %v1087 = vld [vmem:[#allocation6 + $0x15a8] sm:$0xff]
    %v1088 = vld [vmem:[#allocation6 + $0x15b0] sm:$0xff]
    %v1089 = vld [vmem:[#allocation6 + $0x15b8] sm:$0xff]
    %v1090 = vld [vmem:[#allocation6 + $0x15c0] sm:$0xff]
    %v1091 = vld [vmem:[#allocation6 + $0x15c8] sm:$0xff]
    %v1092 = vld [vmem:[#allocation6 + $0x15d0] sm:$0xff]
    %v1093 = vld [vmem:[#allocation6 + $0x15d8] sm:$0xff]
    %v1094 = vld [vmem:[#allocation6 + $0x15e0] sm:$0xff]
    %v1095 = vld [vmem:[#allocation6 + $0x15e8] sm:$0xff]
    %v1096 = vld [vmem:[#allocation6 + $0x15f0] sm:$0xff]
    %v1097 = vld [vmem:[#allocation6 + $0x15f8] sm:$0xff]
    %v1098 = vld [vmem:[#allocation6 + $0x1600] sm:$0xff]
    %v1099 = vld [vmem:[#allocation6 + $0x1608] sm:$0xff]
    %v1100 = vld [vmem:[#allocation6 + $0x1610] sm:$0xff]
    %v1101 = vld [vmem:[#allocation6 + $0x1618] sm:$0xff]
    %v1102 = vld [vmem:[#allocation6 + $0x1620] sm:$0xff]
    %v1103 = vld [vmem:[#allocation6 + $0x1628] sm:$0xff]
    %v1104 = vld [vmem:[#allocation6 + $0x1630] sm:$0xff]
    %v1105 = vld [vmem:[#allocation6 + $0x1638] sm:$0xff]
    %v1106 = vld [vmem:[#allocation6 + $0x1640] sm:$0xff]
    %v1107 = vld [vmem:[#allocation6 + $0x1648] sm:$0xff]
    %v1108 = vld [vmem:[#allocation6 + $0x1650] sm:$0xff]
    %v1109 = vld [vmem:[#allocation6 + $0x1658] sm:$0xff]
    %v1110 = vld [vmem:[#allocation6 + $0x1660] sm:$0xff]
    %v1111 = vld [vmem:[#allocation6 + $0x1668] sm:$0xff]
    %v1112 = vld [vmem:[#allocation6 + $0x1670] sm:$0xff]
    %v1113 = vld [vmem:[#allocation6 + $0x1678] sm:$0xff]
    %v1114 = vld [vmem:[#allocation6 + $0x1680] sm:$0xff]
    %v1115 = vld [vmem:[#allocation6 + $0x1688] sm:$0xff]
    %v1116 = vld [vmem:[#allocation6 + $0x1690] sm:$0xff]
    %v1117 = vld [vmem:[#allocation6 + $0x1698] sm:$0xff]
    %v1118 = vld [vmem:[#allocation6 + $0x16a0] sm:$0xff]
    %v1119 = vld [vmem:[#allocation6 + $0x16a8] sm:$0xff]
    %v1120 = vld [vmem:[#allocation6 + $0x16b0] sm:$0xff]
    %v1121 = vld [vmem:[#allocation6 + $0x16b8] sm:$0xff]
    %v1122 = vld [vmem:[#allocation6 + $0x16c0] sm:$0xff]
    %v1123 = vld [vmem:[#allocation6 + $0x16c8] sm:$0xff]
    %v1124 = vld [vmem:[#allocation6 + $0x16d0] sm:$0xff]
    %v1125 = vld [vmem:[#allocation6 + $0x16d8] sm:$0xff]
    %v1126 = vld [vmem:[#allocation6 + $0x16e0] sm:$0xff]
    %v1127 = vld [vmem:[#allocation6 + $0x16e8] sm:$0xff]
    %v1128 = vld [vmem:[#allocation6 + $0x16f0] sm:$0xff]
    %v1129 = vld [vmem:[#allocation6 + $0x16f8] sm:$0xff]
    %v1130 = vld [vmem:[#allocation6 + $0x1700] sm:$0xff]
    %v1131 = vld [vmem:[#allocation6 + $0x1708] sm:$0xff]
    %v1132 = vld [vmem:[#allocation6 + $0x1710] sm:$0xff]
    %v1133 = vld [vmem:[#allocation6 + $0x1718] sm:$0xff]
    %v1134 = vld [vmem:[#allocation6 + $0x1720] sm:$0xff]
    %v1135 = vld [vmem:[#allocation6 + $0x1728] sm:$0xff]
    %v1136 = vld [vmem:[#allocation6 + $0x1730] sm:$0xff]
    %v1137 = vld [vmem:[#allocation6 + $0x1738] sm:$0xff]
    %v1138 = vld [vmem:[#allocation6 + $0x1740] sm:$0xff]
    %v1139 = vld [vmem:[#allocation6 + $0x1748] sm:$0xff]
    %v1140 = vld [vmem:[#allocation6 + $0x1750] sm:$0xff]
    %v1141 = vld [vmem:[#allocation6 + $0x1758] sm:$0xff]
    %v1142 = vld [vmem:[#allocation6 + $0x1760] sm:$0xff]
    %v1143 = vld [vmem:[#allocation6 + $0x1768] sm:$0xff]
    %v1144 = vld [vmem:[#allocation6 + $0x1770] sm:$0xff]
    %v1145 = vld [vmem:[#allocation6 + $0x1778] sm:$0xff]
    %v1146 = vld [vmem:[#allocation6 + $0x1780] sm:$0xff]
    %v1147 = vld [vmem:[#allocation6 + $0x1788] sm:$0xff]
    %v1148 = vld [vmem:[#allocation6 + $0x1790] sm:$0xff]
    %v1149 = vld [vmem:[#allocation6 + $0x1798] sm:$0xff]
    %v1150 = vld [vmem:[#allocation6 + $0x17a0] sm:$0xff]
    %v1151 = vld [vmem:[#allocation6 + $0x17a8] sm:$0xff]
    %v1152 = vld [vmem:[#allocation6 + $0x17b0] sm:$0xff]
    %v1153 = vld [vmem:[#allocation6 + $0x17b8] sm:$0xff]
    %v1154 = vld [vmem:[#allocation6 + $0x17c0] sm:$0xff]
    %v1155 = vld [vmem:[#allocation6 + $0x17c8] sm:$0xff]
    %v1156 = vld [vmem:[#allocation6 + $0x17d0] sm:$0xff]
    %v1157 = vld [vmem:[#allocation6 + $0x17d8] sm:$0xff]
    %v1158 = vld [vmem:[#allocation6 + $0x17e0] sm:$0xff]
    %v1159 = vld [vmem:[#allocation6 + $0x17e8] sm:$0xff]
    %v1160 = vld [vmem:[#allocation6 + $0x17f0] sm:$0xff]
    %v1161 = vld [vmem:[#allocation6 + $0x17f8] sm:$0xff]
    %v1162 = vld [vmem:[#allocation6 + $0x1800] sm:$0xff]
    %v1163 = vld [vmem:[#allocation6 + $0x1808] sm:$0xff]
    %v1164 = vld [vmem:[#allocation6 + $0x1810] sm:$0xff]
    %v1165 = vld [vmem:[#allocation6 + $0x1818] sm:$0xff]
    %v1166 = vld [vmem:[#allocation6 + $0x1820] sm:$0xff]
    %v1167 = vld [vmem:[#allocation6 + $0x1828] sm:$0xff]
    %v1168 = vld [vmem:[#allocation6 + $0x1830] sm:$0xff]
    %v1169 = vld [vmem:[#allocation6 + $0x1838] sm:$0xff]
    %v1170 = vld [vmem:[#allocation6 + $0x1840] sm:$0xff]
    %v1171 = vld [vmem:[#allocation6 + $0x1848] sm:$0xff]
    %v1172 = vld [vmem:[#allocation6 + $0x1850] sm:$0xff]
    %v1173 = vld [vmem:[#allocation6 + $0x1858] sm:$0xff]
    %v1174 = vld [vmem:[#allocation6 + $0x1860] sm:$0xff]
    %v1175 = vld [vmem:[#allocation6 + $0x1868] sm:$0xff]
    %v1176 = vld [vmem:[#allocation6 + $0x1870] sm:$0xff]
    %v1177 = vld [vmem:[#allocation6 + $0x1878] sm:$0xff]
    %v1178 = vld [vmem:[#allocation6 + $0x1880] sm:$0xff]
    %v1179 = vld [vmem:[#allocation6 + $0x1888] sm:$0xff]
    %v1180 = vld [vmem:[#allocation6 + $0x1890] sm:$0xff]
    %v1181 = vld [vmem:[#allocation6 + $0x1898] sm:$0xff]
    %v1182 = vld [vmem:[#allocation6 + $0x18a0] sm:$0xff]
    %v1183 = vld [vmem:[#allocation6 + $0x18a8] sm:$0xff]
    %v1184 = vld [vmem:[#allocation6 + $0x18b0] sm:$0xff]
    %v1185 = vld [vmem:[#allocation6 + $0x18b8] sm:$0xff]
    %v1186 = vld [vmem:[#allocation6 + $0x18c0] sm:$0xff]
    %v1187 = vld [vmem:[#allocation6 + $0x18c8] sm:$0xff]
    %v1188 = vld [vmem:[#allocation6 + $0x18d0] sm:$0xff]
    %v1189 = vld [vmem:[#allocation6 + $0x18d8] sm:$0xff]
    %v1190 = vld [vmem:[#allocation6 + $0x18e0] sm:$0xff]
    %v1191 = vld [vmem:[#allocation6 + $0x18e8] sm:$0xff]
    %v1192 = vld [vmem:[#allocation6 + $0x18f0] sm:$0xff]
    %v1193 = vld [vmem:[#allocation6 + $0x18f8] sm:$0xff]
    %v1194 = vld [vmem:[#allocation6 + $0x1900] sm:$0xff]
    %v1195 = vld [vmem:[#allocation6 + $0x1908] sm:$0xff]
    %v1196 = vld [vmem:[#allocation6 + $0x1910] sm:$0xff]
    %v1197 = vld [vmem:[#allocation6 + $0x1918] sm:$0xff]
    %v1198 = vld [vmem:[#allocation6 + $0x1920] sm:$0xff]
    %v1199 = vld [vmem:[#allocation6 + $0x1928] sm:$0xff]
    %v1200 = vld [vmem:[#allocation6 + $0x1930] sm:$0xff]
    %v1201 = vld [vmem:[#allocation6 + $0x1938] sm:$0xff]
    %v1202 = vld [vmem:[#allocation6 + $0x1940] sm:$0xff]
    %v1203 = vld [vmem:[#allocation6 + $0x1948] sm:$0xff]
    %v1204 = vld [vmem:[#allocation6 + $0x1950] sm:$0xff]
    %v1205 = vld [vmem:[#allocation6 + $0x1958] sm:$0xff]
    %v1206 = vld [vmem:[#allocation6 + $0x1960] sm:$0xff]
    %v1207 = vld [vmem:[#allocation6 + $0x1968] sm:$0xff]
    %v1208 = vld [vmem:[#allocation6 + $0x1970] sm:$0xff]
    %v1209 = vld [vmem:[#allocation6 + $0x1978] sm:$0xff]
    %v1210 = vld [vmem:[#allocation6 + $0x1980] sm:$0xff]
    %v1211 = vld [vmem:[#allocation6 + $0x1988] sm:$0xff]
    %v1212 = vld [vmem:[#allocation6 + $0x1990] sm:$0xff]
    %v1213 = vld [vmem:[#allocation6 + $0x1998] sm:$0xff]
    %v1214 = vld [vmem:[#allocation6 + $0x19a0] sm:$0xff]
    %v1215 = vld [vmem:[#allocation6 + $0x19a8] sm:$0xff]
    %v1216 = vld [vmem:[#allocation6 + $0x19b0] sm:$0xff]
    %v1217 = vld [vmem:[#allocation6 + $0x19b8] sm:$0xff]
    %v1218 = vld [vmem:[#allocation6 + $0x19c0] sm:$0xff]
    %v1219 = vld [vmem:[#allocation6 + $0x19c8] sm:$0xff]
    %v1220 = vld [vmem:[#allocation6 + $0x19d0] sm:$0xff]
    %v1221 = vld [vmem:[#allocation6 + $0x19d8] sm:$0xff]
    %v1222 = vld [vmem:[#allocation6 + $0x19e0] sm:$0xff]
    %v1223 = vld [vmem:[#allocation6 + $0x19e8] sm:$0xff]
    %v1224 = vld [vmem:[#allocation6 + $0x19f0] sm:$0xff]
    %v1225 = vld [vmem:[#allocation6 + $0x19f8] sm:$0xff]
    %v1226 = vld [vmem:[#allocation6 + $0x1a00] sm:$0xff]
    %v1227 = vld [vmem:[#allocation6 + $0x1a08] sm:$0xff]
    %v1228 = vld [vmem:[#allocation6 + $0x1a10] sm:$0xff]
    %v1229 = vld [vmem:[#allocation6 + $0x1a18] sm:$0xff]
    %v1230 = vld [vmem:[#allocation6 + $0x1a20] sm:$0xff]
    %v1231 = vld [vmem:[#allocation6 + $0x1a28] sm:$0xff]
    %v1232 = vld [vmem:[#allocation6 + $0x1a30] sm:$0xff]
    %v1233 = vld [vmem:[#allocation6 + $0x1a38] sm:$0xff]
    %v1234 = vld [vmem:[#allocation6 + $0x1a40] sm:$0xff]
    %v1235 = vld [vmem:[#allocation6 + $0x1a48] sm:$0xff]
    %v1236 = vld [vmem:[#allocation6 + $0x1a50] sm:$0xff]
    %v1237 = vld [vmem:[#allocation6 + $0x1a58] sm:$0xff]
    %v1238 = vld [vmem:[#allocation6 + $0x1a60] sm:$0xff]
    %v1239 = vld [vmem:[#allocation6 + $0x1a68] sm:$0xff]
    %v1240 = vld [vmem:[#allocation6 + $0x1a70] sm:$0xff]
    %v1241 = vld [vmem:[#allocation6 + $0x1a78] sm:$0xff]
    %v1242 = vld [vmem:[#allocation6 + $0x1a80] sm:$0xff]
    %v1243 = vld [vmem:[#allocation6 + $0x1a88] sm:$0xff]
    %v1244 = vld [vmem:[#allocation6 + $0x1a90] sm:$0xff]
    %v1245 = vld [vmem:[#allocation6 + $0x1a98] sm:$0xff]
    %v1246 = vld [vmem:[#allocation6 + $0x1aa0] sm:$0xff]
    %v1247 = vld [vmem:[#allocation6 + $0x1aa8] sm:$0xff]
    %v1248 = vld [vmem:[#allocation6 + $0x1ab0] sm:$0xff]
    %v1249 = vld [vmem:[#allocation6 + $0x1ab8] sm:$0xff]
    %v1250 = vld [vmem:[#allocation6 + $0x1ac0] sm:$0xff]
    %v1251 = vld [vmem:[#allocation6 + $0x1ac8] sm:$0xff]
    %v1252 = vld [vmem:[#allocation6 + $0x1ad0] sm:$0xff]
    %v1253 = vld [vmem:[#allocation6 + $0x1ad8] sm:$0xff]
    %v1254 = vld [vmem:[#allocation6 + $0x1ae0] sm:$0xff]
    %v1255 = vld [vmem:[#allocation6 + $0x1ae8] sm:$0xff]
    %v1256 = vld [vmem:[#allocation6 + $0x1af0] sm:$0xff]
    %v1257 = vld [vmem:[#allocation6 + $0x1af8] sm:$0xff]
    %v1258 = vld [vmem:[#allocation6 + $0x1b00] sm:$0xff]
    %v1259 = vld [vmem:[#allocation6 + $0x1b08] sm:$0xff]
    %v1260 = vld [vmem:[#allocation6 + $0x1b10] sm:$0xff]
    %v1261 = vld [vmem:[#allocation6 + $0x1b18] sm:$0xff]
    %v1262 = vld [vmem:[#allocation6 + $0x1b20] sm:$0xff]
    %v1263 = vld [vmem:[#allocation6 + $0x1b28] sm:$0xff]
    %v1264 = vld [vmem:[#allocation6 + $0x1b30] sm:$0xff]
    %v1265 = vld [vmem:[#allocation6 + $0x1b38] sm:$0xff]
    %v1266 = vld [vmem:[#allocation6 + $0x1b40] sm:$0xff]
    %v1267 = vld [vmem:[#allocation6 + $0x1b48] sm:$0xff]
    %v1268 = vld [vmem:[#allocation6 + $0x1b50] sm:$0xff]
    %v1269 = vld [vmem:[#allocation6 + $0x1b58] sm:$0xff]
    %v1270 = vld [vmem:[#allocation6 + $0x1b60] sm:$0xff]
    %v1271 = vld [vmem:[#allocation6 + $0x1b68] sm:$0xff]
    %v1272 = vld [vmem:[#allocation6 + $0x1b70] sm:$0xff]
    %v1273 = vld [vmem:[#allocation6 + $0x1b78] sm:$0xff]
    %v1274 = vld [vmem:[#allocation6 + $0x1b80] sm:$0xff]
    %v1275 = vld [vmem:[#allocation6 + $0x1b88] sm:$0xff]
    %v1276 = vld [vmem:[#allocation6 + $0x1b90] sm:$0xff]
    %v1277 = vld [vmem:[#allocation6 + $0x1b98] sm:$0xff]
    %v1278 = vld [vmem:[#allocation6 + $0x1ba0] sm:$0xff]
    %v1279 = vld [vmem:[#allocation6 + $0x1ba8] sm:$0xff]
    %v1280 = vld [vmem:[#allocation6 + $0x1bb0] sm:$0xff]
    %v1281 = vld [vmem:[#allocation6 + $0x1bb8] sm:$0xff]
    %v1282 = vld [vmem:[#allocation6 + $0x1bc0] sm:$0xff]
    %v1283 = vld [vmem:[#allocation6 + $0x1bc8] sm:$0xff]
    %v1284 = vld [vmem:[#allocation6 + $0x1bd0] sm:$0xff]
    %v1285 = vld [vmem:[#allocation6 + $0x1bd8] sm:$0xff]
    %v1286 = vld [vmem:[#allocation6 + $0x1be0] sm:$0xff]
    %v1287 = vld [vmem:[#allocation6 + $0x1be8] sm:$0xff]
    %v1288 = vld [vmem:[#allocation6 + $0x1bf0] sm:$0xff]
    %v1289 = vld [vmem:[#allocation6 + $0x1bf8] sm:$0xff]
    %v1290 = vld [vmem:[#allocation6 + $0x1c00] sm:$0xff]
    %v1291 = vld [vmem:[#allocation6 + $0x1c08] sm:$0xff]
    %v1292 = vld [vmem:[#allocation6 + $0x1c10] sm:$0xff]
    %v1293 = vld [vmem:[#allocation6 + $0x1c18] sm:$0xff]
    %v1294 = vld [vmem:[#allocation6 + $0x1c20] sm:$0xff]
    %v1295 = vld [vmem:[#allocation6 + $0x1c28] sm:$0xff]
    %v1296 = vld [vmem:[#allocation6 + $0x1c30] sm:$0xff]
    %v1297 = vld [vmem:[#allocation6 + $0x1c38] sm:$0xff]
    %v1298 = vld [vmem:[#allocation6 + $0x1c40] sm:$0xff]
    %v1299 = vld [vmem:[#allocation6 + $0x1c48] sm:$0xff]
    %v1300 = vld [vmem:[#allocation6 + $0x1c50] sm:$0xff]
    %v1301 = vld [vmem:[#allocation6 + $0x1c58] sm:$0xff]
    %v1302 = vld [vmem:[#allocation6 + $0x1c60] sm:$0xff]
    %v1303 = vld [vmem:[#allocation6 + $0x1c68] sm:$0xff]
    %v1304 = vld [vmem:[#allocation6 + $0x1c70] sm:$0xff]
    %v1305 = vld [vmem:[#allocation6 + $0x1c78] sm:$0xff]
    %v1306 = vld [vmem:[#allocation6 + $0x1c80] sm:$0xff]
    %v1307 = vld [vmem:[#allocation6 + $0x1c88] sm:$0xff]
    %v1308 = vld [vmem:[#allocation6 + $0x1c90] sm:$0xff]
    %v1309 = vld [vmem:[#allocation6 + $0x1c98] sm:$0xff]
    %v1310 = vld [vmem:[#allocation6 + $0x1ca0] sm:$0xff]
    %v1311 = vld [vmem:[#allocation6 + $0x1ca8] sm:$0xff]
    %v1312 = vld [vmem:[#allocation6 + $0x1cb0] sm:$0xff]
    %v1313 = vld [vmem:[#allocation6 + $0x1cb8] sm:$0xff]
    %v1314 = vld [vmem:[#allocation6 + $0x1cc0] sm:$0xff]
    %v1315 = vld [vmem:[#allocation6 + $0x1cc8] sm:$0xff]
    %v1316 = vld [vmem:[#allocation6 + $0x1cd0] sm:$0xff]
    %v1317 = vld [vmem:[#allocation6 + $0x1cd8] sm:$0xff]
    %v1318 = vld [vmem:[#allocation6 + $0x1ce0] sm:$0xff]
    %v1319 = vld [vmem:[#allocation6 + $0x1ce8] sm:$0xff]
    %v1320 = vld [vmem:[#allocation6 + $0x1cf0] sm:$0xff]
    %v1321 = vld [vmem:[#allocation6 + $0x1cf8] sm:$0xff]
    %v1322 = vld [vmem:[#allocation6 + $0x1d00] sm:$0xff]
    %v1323 = vld [vmem:[#allocation6 + $0x1d08] sm:$0xff]
    %v1324 = vld [vmem:[#allocation6 + $0x1d10] sm:$0xff]
    %v1325 = vld [vmem:[#allocation6 + $0x1d18] sm:$0xff]
    %v1326 = vld [vmem:[#allocation6 + $0x1d20] sm:$0xff]
    %v1327 = vld [vmem:[#allocation6 + $0x1d28] sm:$0xff]
    %v1328 = vld [vmem:[#allocation6 + $0x1d30] sm:$0xff]
    %v1329 = vld [vmem:[#allocation6 + $0x1d38] sm:$0xff]
    %v1330 = vld [vmem:[#allocation6 + $0x1d40] sm:$0xff]
    %v1331 = vld [vmem:[#allocation6 + $0x1d48] sm:$0xff]
    %v1332 = vld [vmem:[#allocation6 + $0x1d50] sm:$0xff]
    %v1333 = vld [vmem:[#allocation6 + $0x1d58] sm:$0xff]
    %v1334 = vld [vmem:[#allocation6 + $0x1d60] sm:$0xff]
    %v1335 = vld [vmem:[#allocation6 + $0x1d68] sm:$0xff]
    %v1336 = vld [vmem:[#allocation6 + $0x1d70] sm:$0xff]
    %v1337 = vld [vmem:[#allocation6 + $0x1d78] sm:$0xff]
    %v1338 = vld [vmem:[#allocation6 + $0x1d80] sm:$0xff]
    %v1339 = vld [vmem:[#allocation6 + $0x1d88] sm:$0xff]
    %v1340 = vld [vmem:[#allocation6 + $0x1d90] sm:$0xff]
    %v1341 = vld [vmem:[#allocation6 + $0x1d98] sm:$0xff]
    %v1342 = vld [vmem:[#allocation6 + $0x1da0] sm:$0xff]
    %v1343 = vld [vmem:[#allocation6 + $0x1da8] sm:$0xff]
    %v1344 = vld [vmem:[#allocation6 + $0x1db0] sm:$0xff]
    %v1345 = vld [vmem:[#allocation6 + $0x1db8] sm:$0xff]
    %v1346 = vld [vmem:[#allocation6 + $0x1dc0] sm:$0xff]
    %v1347 = vld [vmem:[#allocation6 + $0x1dc8] sm:$0xff]
    %v1348 = vld [vmem:[#allocation6 + $0x1dd0] sm:$0xff]
    %v1349 = vld [vmem:[#allocation6 + $0x1dd8] sm:$0xff]
    %v1350 = vld [vmem:[#allocation6 + $0x1de0] sm:$0xff]
    %v1351 = vld [vmem:[#allocation6 + $0x1de8] sm:$0xff]
    %v1352 = vld [vmem:[#allocation6 + $0x1df0] sm:$0xff]
    %v1353 = vld [vmem:[#allocation6 + $0x1df8] sm:$0xff]
    %v1354 = vld [vmem:[#allocation6 + $0x1e00] sm:$0xff]
    %v1355 = vld [vmem:[#allocation6 + $0x1e08] sm:$0xff]
    %v1356 = vld [vmem:[#allocation6 + $0x1e10] sm:$0xff]
    %v1357 = vld [vmem:[#allocation6 + $0x1e18] sm:$0xff]
    %v1358 = vld [vmem:[#allocation6 + $0x1e20] sm:$0xff]
    %v1359 = vld [vmem:[#allocation6 + $0x1e28] sm:$0xff]
    %v1360 = vld [vmem:[#allocation6 + $0x1e30] sm:$0xff]
    %v1361 = vld [vmem:[#allocation6 + $0x1e38] sm:$0xff]
    %v1362 = vld [vmem:[#allocation6 + $0x1e40] sm:$0xff]
    %v1363 = vld [vmem:[#allocation6 + $0x1e48] sm:$0xff]
    %v1364 = vld [vmem:[#allocation6 + $0x1e50] sm:$0xff]
    %v1365 = vld [vmem:[#allocation6 + $0x1e58] sm:$0xff]
    %v1366 = vld [vmem:[#allocation6 + $0x1e60] sm:$0xff]
    %v1367 = vld [vmem:[#allocation6 + $0x1e68] sm:$0xff]
    %v1368 = vld [vmem:[#allocation6 + $0x1e70] sm:$0xff]
    %v1369 = vld [vmem:[#allocation6 + $0x1e78] sm:$0xff]
    %v1370 = vld [vmem:[#allocation6 + $0x1e80] sm:$0xff]
    %v1371 = vld [vmem:[#allocation6 + $0x1e88] sm:$0xff]
    %v1372 = vld [vmem:[#allocation6 + $0x1e90] sm:$0xff]
    %v1373 = vld [vmem:[#allocation6 + $0x1e98] sm:$0xff]
    %v1374 = vld [vmem:[#allocation6 + $0x1ea0] sm:$0xff]
    %v1375 = vld [vmem:[#allocation6 + $0x1ea8] sm:$0xff]
    %v1376 = vld [vmem:[#allocation6 + $0x1eb0] sm:$0xff]
    %v1377 = vld [vmem:[#allocation6 + $0x1eb8] sm:$0xff]
    %v1378 = vld [vmem:[#allocation6 + $0x1ec0] sm:$0xff]
    %v1379 = vld [vmem:[#allocation6 + $0x1ec8] sm:$0xff]
    %v1380 = vld [vmem:[#allocation6 + $0x1ed0] sm:$0xff]
    %v1381 = vld [vmem:[#allocation6 + $0x1ed8] sm:$0xff]
    %v1382 = vld [vmem:[#allocation6 + $0x1ee0] sm:$0xff]
    %v1383 = vld [vmem:[#allocation6 + $0x1ee8] sm:$0xff]
    %v1384 = vld [vmem:[#allocation6 + $0x1ef0] sm:$0xff]
    %v1385 = vld [vmem:[#allocation6 + $0x1ef8] sm:$0xff]
    %v1386 = vld [vmem:[#allocation6 + $0x1f00] sm:$0xff]
    %v1387 = vld [vmem:[#allocation6 + $0x1f08] sm:$0xff]
    %v1388 = vld [vmem:[#allocation6 + $0x1f10] sm:$0xff]
    %v1389 = vld [vmem:[#allocation6 + $0x1f18] sm:$0xff]
    %v1390 = vld [vmem:[#allocation6 + $0x1f20] sm:$0xff]
    %v1391 = vld [vmem:[#allocation6 + $0x1f28] sm:$0xff]
    %v1392 = vld [vmem:[#allocation6 + $0x1f30] sm:$0xff]
    %v1393 = vld [vmem:[#allocation6 + $0x1f38] sm:$0xff]
    %v1394 = vld [vmem:[#allocation6 + $0x1f40] sm:$0xff]
    %v1395 = vld [vmem:[#allocation6 + $0x1f48] sm:$0xff]
    %v1396 = vld [vmem:[#allocation6 + $0x1f50] sm:$0xff]
    %v1397 = vld [vmem:[#allocation6 + $0x1f58] sm:$0xff]
    %v1398 = vld [vmem:[#allocation6 + $0x1f60] sm:$0xff]
    %v1399 = vld [vmem:[#allocation6 + $0x1f68] sm:$0xff]
    %v1400 = vld [vmem:[#allocation6 + $0x1f70] sm:$0xff]
    %v1401 = vld [vmem:[#allocation6 + $0x1f78] sm:$0xff]
    %v1402 = vld [vmem:[#allocation6 + $0x1f80] sm:$0xff]
    %v1403 = vld [vmem:[#allocation6 + $0x1f88] sm:$0xff]
    %v1404 = vld [vmem:[#allocation6 + $0x1f90] sm:$0xff]
    %v1405 = vld [vmem:[#allocation6 + $0x1f98] sm:$0xff]
    %v1406 = vld [vmem:[#allocation6 + $0x1fa0] sm:$0xff]
    %v1407 = vld [vmem:[#allocation6 + $0x1fa8] sm:$0xff]
    %v1408 = vld [vmem:[#allocation6 + $0x1fb0] sm:$0xff]
    %v1409 = vld [vmem:[#allocation6 + $0x1fb8] sm:$0xff]
    %v1410 = vld [vmem:[#allocation6 + $0x1fc0] sm:$0xff]
    %v1411 = vld [vmem:[#allocation6 + $0x1fc8] sm:$0xff]
    %v1412 = vld [vmem:[#allocation6 + $0x1fd0] sm:$0xff]
    %v1413 = vld [vmem:[#allocation6 + $0x1fd8] sm:$0xff]
    %v1414 = vld [vmem:[#allocation6 + $0x1fe0] sm:$0xff]
    %v1415 = vld [vmem:[#allocation6 + $0x1fe8] sm:$0xff]
    %v1416 = vld [vmem:[#allocation6 + $0x1ff0] sm:$0xff]
    %v1417 = vld [vmem:[#allocation6 + $0x1ff8] sm:$0xff]
    %v1418 = vld [vmem:[#allocation7] sm:$0xff]
    %v1420 = vperm.slane %v1418, 0
    %v1421 = vperm.slane %v1418, 1
    %v1422 = vperm.slane %v1418, 2
    %v1423 = vperm.slane %v1418, 3
    %v1424 = vperm.slane %v1418, 4
    %v1425 = vperm.slane %v1418, 5
    %v1426 = vperm.slane %v1418, 6
    %v1427 = vperm.slane %v1418, 7
    %1436 = vmatpush.msra.mxu0 %v514
    %1437 = vmatpush.msra.mxu0 %v506
    %1438 = vmatpush.msra.mxu0 %v498
    %1439 = vmatpush.msra.mxu0 %v490
    %1440 = vmatpush.msra.mxu0 %v482
    %1441 = vmatpush.msra.mxu0 %v474
    %1442 = vmatpush.msra.mxu0 %v466
    %1443 = vmatpush.msra.mxu0 %v458
    %1444 = vmatpush.msra.mxu0 %v450
    %1445 = vmatpush.msra.mxu0 %v442
    %1446 = vmatpush.msra.mxu0 %v434
    %1447 = vmatpush.msra.mxu0 %v426
    %1448 = vmatpush.msra.mxu0 %v418
    %1449 = vmatpush.msra.mxu0 %v410
    %1450 = vmatpush.msra.mxu0 %v402
    %1451 = vmatpush.msra.mxu0 %v394
    %1452 = vmatmul.f32.gmra.mxu0 %v386
    %v1453 = vpop.f32.mrf.mxu0
    %v1454 = vadd.f32 %v1420, %v1453
    %1455 = vdwg.mxu0
    %1456 = vmatpush.msra.mxu0 %v642
    %1457 = vmatpush.msra.mxu0 %v634
    %1458 = vmatpush.msra.mxu0 %v626
    %1459 = vmatpush.msra.mxu0 %v618
    %1460 = vmatpush.msra.mxu0 %v610
    %1461 = vmatpush.msra.mxu0 %v602
    %1462 = vmatpush.msra.mxu0 %v594
    %1463 = vmatpush.msra.mxu0 %v586
    %1464 = vmatpush.msra.mxu0 %v578
    %1465 = vmatpush.msra.mxu0 %v570
    %1466 = vmatpush.msra.mxu0 %v562
    %1467 = vmatpush.msra.mxu0 %v554
    %1468 = vmatpush.msra.mxu0 %v546
    %1469 = vmatpush.msra.mxu0 %v538
    %1470 = vmatpush.msra.mxu0 %v530
    %1471 = vmatpush.msra.mxu0 %v522
    %1472 = vmatmul.f32.gmra.mxu0 %v387
    %v1473 = vpop.f32.mrf.mxu0
    %v1474 = vadd.f32 %v1454, %v1473
    %1475 = vdwg.mxu0
    %1476 = vmatpush.msra.mxu0 %v770
    %1477 = vmatpush.msra.mxu0 %v762
    %1478 = vmatpush.msra.mxu0 %v754
    %1479 = vmatpush.msra.mxu0 %v746
    %1480 = vmatpush.msra.mxu0 %v738
    %1481 = vmatpush.msra.mxu0 %v730
    %1482 = vmatpush.msra.mxu0 %v722
    %1483 = vmatpush.msra.mxu0 %v714
    %1484 = vmatpush.msra.mxu0 %v706
    %1485 = vmatpush.msra.mxu0 %v698
    %1486 = vmatpush.msra.mxu0 %v690
    %1487 = vmatpush.msra.mxu0 %v682
    %1488 = vmatpush.msra.mxu0 %v674
    %1489 = vmatpush.msra.mxu0 %v666
    %1490 = vmatpush.msra.mxu0 %v658
    %1491 = vmatpush.msra.mxu0 %v650
    %1492 = vmatmul.f32.gmra.mxu0 %v388
    %v1493 = vpop.f32.mrf.mxu0
    %v1494 = vadd.f32 %v1474, %v1493
    %1495 = vdwg.mxu0
    %1496 = vmatpush.msra.mxu0 %v898
    %1497 = vmatpush.msra.mxu0 %v890
    %1498 = vmatpush.msra.mxu0 %v882
    %1499 = vmatpush.msra.mxu0 %v874
    %1500 = vmatpush.msra.mxu0 %v866
    %1501 = vmatpush.msra.mxu0 %v858
    %1502 = vmatpush.msra.mxu0 %v850
    %1503 = vmatpush.msra.mxu0 %v842
    %1504 = vmatpush.msra.mxu0 %v834
    %1505 = vmatpush.msra.mxu0 %v826
    %1506 = vmatpush.msra.mxu0 %v818
    %1507 = vmatpush.msra.mxu0 %v810
    %1508 = vmatpush.msra.mxu0 %v802
    %1509 = vmatpush.msra.mxu0 %v794
    %1510 = vmatpush.msra.mxu0 %v786
    %1511 = vmatpush.msra.mxu0 %v778
    %1512 = vmatmul.f32.gmra.mxu0 %v389
    %v1513 = vpop.f32.mrf.mxu0
    %v1514 = vadd.f32 %v1494, %v1513
    %1515 = vdwg.mxu0
    %1516 = vmatpush.msra.mxu0 %v1026
    %1517 = vmatpush.msra.mxu0 %v1018
    %1518 = vmatpush.msra.mxu0 %v1010
    %1519 = vmatpush.msra.mxu0 %v1002
    %1520 = vmatpush.msra.mxu0 %v994
    %1521 = vmatpush.msra.mxu0 %v986
    %1522 = vmatpush.msra.mxu0 %v978
    %1523 = vmatpush.msra.mxu0 %v970
    %1524 = vmatpush.msra.mxu0 %v962
    %1525 = vmatpush.msra.mxu0 %v954
    %1526 = vmatpush.msra.mxu0 %v946
    %1527 = vmatpush.msra.mxu0 %v938
    %1528 = vmatpush.msra.mxu0 %v930
    %1529 = vmatpush.msra.mxu0 %v922
    %1530 = vmatpush.msra.mxu0 %v914
    %1531 = vmatpush.msra.mxu0 %v906
    %1532 = vmatmul.f32.gmra.mxu0 %v390
    %v1533 = vpop.f32.mrf.mxu0
    %v1534 = vadd.f32 %v1514, %v1533
    %1535 = vdwg.mxu0
    %1536 = vmatpush.msra.mxu0 %v1154
    %1537 = vmatpush.msra.mxu0 %v1146
    %1538 = vmatpush.msra.mxu0 %v1138
    %1539 = vmatpush.msra.mxu0 %v1130
    %1540 = vmatpush.msra.mxu0 %v1122
    %1541 = vmatpush.msra.mxu0 %v1114
    %1542 = vmatpush.msra.mxu0 %v1106
    %1543 = vmatpush.msra.mxu0 %v1098
    %1544 = vmatpush.msra.mxu0 %v1090
    %1545 = vmatpush.msra.mxu0 %v1082
    %1546 = vmatpush.msra.mxu0 %v1074
    %1547 = vmatpush.msra.mxu0 %v1066
    %1548 = vmatpush.msra.mxu0 %v1058
    %1549 = vmatpush.msra.mxu0 %v1050
    %1550 = vmatpush.msra.mxu0 %v1042
    %1551 = vmatpush.msra.mxu0 %v1034
    %1552 = vmatmul.f32.gmra.mxu0 %v391
    %v1553 = vpop.f32.mrf.mxu0
    %v1554 = vadd.f32 %v1534, %v1553
    %1555 = vdwg.mxu0
    %1556 = vmatpush.msra.mxu0 %v1282
    %1557 = vmatpush.msra.mxu0 %v1274
    %1558 = vmatpush.msra.mxu0 %v1266
    %1559 = vmatpush.msra.mxu0 %v1258
    %1560 = vmatpush.msra.mxu0 %v1250
    %1561 = vmatpush.msra.mxu0 %v1242
    %1562 = vmatpush.msra.mxu0 %v1234
    %1563 = vmatpush.msra.mxu0 %v1226
    %1564 = vmatpush.msra.mxu0 %v1218
    %1565 = vmatpush.msra.mxu0 %v1210
    %1566 = vmatpush.msra.mxu0 %v1202
    %1567 = vmatpush.msra.mxu0 %v1194
    %1568 = vmatpush.msra.mxu0 %v1186
    %1569 = vmatpush.msra.mxu0 %v1178
    %1570 = vmatpush.msra.mxu0 %v1170
    %1571 = vmatpush.msra.mxu0 %v1162
    %1572 = vmatmul.f32.gmra.mxu0 %v392
    %v1573 = vpop.f32.mrf.mxu0
    %v1574 = vadd.f32 %v1554, %v1573
    %1575 = vdwg.mxu0
    %1576 = vmatpush.msra.mxu0 %v1410
    %1577 = vmatpush.msra.mxu0 %v1402
    %1578 = vmatpush.msra.mxu0 %v1394
    %1579 = vmatpush.msra.mxu0 %v1386
    %1580 = vmatpush.msra.mxu0 %v1378
    %1581 = vmatpush.msra.mxu0 %v1370
    %1582 = vmatpush.msra.mxu0 %v1362
    %1583 = vmatpush.msra.mxu0 %v1354
    %1584 = vmatpush.msra.mxu0 %v1346
    %1585 = vmatpush.msra.mxu0 %v1338
    %1586 = vmatpush.msra.mxu0 %v1330
    %1587 = vmatpush.msra.mxu0 %v1322
    %1588 = vmatpush.msra.mxu0 %v1314
    %1589 = vmatpush.msra.mxu0 %v1306
    %1590 = vmatpush.msra.mxu0 %v1298
    %1591 = vmatpush.msra.mxu0 %v1290
    %1592 = vmatmul.f32.gmra.mxu0 %v393
    %v1593 = vpop.f32.mrf.mxu0
    %v1594 = vadd.f32 %v1574, %v1593
    %1595 = vdwg.mxu0
    %1596 = vmatpush.msra.mxu0 %v515
    %1597 = vmatpush.msra.mxu0 %v507
    %1598 = vmatpush.msra.mxu0 %v499
    %1599 = vmatpush.msra.mxu0 %v491
    %1600 = vmatpush.msra.mxu0 %v483
    %1601 = vmatpush.msra.mxu0 %v475
    %1602 = vmatpush.msra.mxu0 %v467
    %1603 = vmatpush.msra.mxu0 %v459
    %1604 = vmatpush.msra.mxu0 %v451
    %1605 = vmatpush.msra.mxu0 %v443
    %1606 = vmatpush.msra.mxu0 %v435
    %1607 = vmatpush.msra.mxu0 %v427
    %1608 = vmatpush.msra.mxu0 %v419
    %1609 = vmatpush.msra.mxu0 %v411
    %1610 = vmatpush.msra.mxu0 %v403
    %1611 = vmatpush.msra.mxu0 %v395
    %1612 = vmatmul.f32.gmra.mxu0 %v386
    %v1613 = vpop.f32.mrf.mxu0
    %v1614 = vadd.f32 %v1421, %v1613
    %1615 = vdwg.mxu0
    %1616 = vmatpush.msra.mxu0 %v643
    %1617 = vmatpush.msra.mxu0 %v635
    %1618 = vmatpush.msra.mxu0 %v627
    %1619 = vmatpush.msra.mxu0 %v619
    %1620 = vmatpush.msra.mxu0 %v611
    %1621 = vmatpush.msra.mxu0 %v603
    %1622 = vmatpush.msra.mxu0 %v595
    %1623 = vmatpush.msra.mxu0 %v587
    %1624 = vmatpush.msra.mxu0 %v579
    %1625 = vmatpush.msra.mxu0 %v571
    %1626 = vmatpush.msra.mxu0 %v563
    %1627 = vmatpush.msra.mxu0 %v555
    %1628 = vmatpush.msra.mxu0 %v547
    %1629 = vmatpush.msra.mxu0 %v539
    %1630 = vmatpush.msra.mxu0 %v531
    %1631 = vmatpush.msra.mxu0 %v523
    %1632 = vmatmul.f32.gmra.mxu0 %v387
    %v1633 = vpop.f32.mrf.mxu0
    %v1634 = vadd.f32 %v1614, %v1633
    %1635 = vdwg.mxu0
    %1636 = vmatpush.msra.mxu0 %v771
    %1637 = vmatpush.msra.mxu0 %v763
    %1638 = vmatpush.msra.mxu0 %v755
    %1639 = vmatpush.msra.mxu0 %v747
    %1640 = vmatpush.msra.mxu0 %v739
    %1641 = vmatpush.msra.mxu0 %v731
    %1642 = vmatpush.msra.mxu0 %v723
    %1643 = vmatpush.msra.mxu0 %v715
    %1644 = vmatpush.msra.mxu0 %v707
    %1645 = vmatpush.msra.mxu0 %v699
    %1646 = vmatpush.msra.mxu0 %v691
    %1647 = vmatpush.msra.mxu0 %v683
    %1648 = vmatpush.msra.mxu0 %v675
    %1649 = vmatpush.msra.mxu0 %v667
    %1650 = vmatpush.msra.mxu0 %v659
    %1651 = vmatpush.msra.mxu0 %v651
    %1652 = vmatmul.f32.gmra.mxu0 %v388
    %v1653 = vpop.f32.mrf.mxu0
    %v1654 = vadd.f32 %v1634, %v1653
    %1655 = vdwg.mxu0
    %1656 = vmatpush.msra.mxu0 %v899
    %1657 = vmatpush.msra.mxu0 %v891
    %1658 = vmatpush.msra.mxu0 %v883
    %1659 = vmatpush.msra.mxu0 %v875
    %1660 = vmatpush.msra.mxu0 %v867
    %1661 = vmatpush.msra.mxu0 %v859
    %1662 = vmatpush.msra.mxu0 %v851
    %1663 = vmatpush.msra.mxu0 %v843
    %1664 = vmatpush.msra.mxu0 %v835
    %1665 = vmatpush.msra.mxu0 %v827
    %1666 = vmatpush.msra.mxu0 %v819
    %1667 = vmatpush.msra.mxu0 %v811
    %1668 = vmatpush.msra.mxu0 %v803
    %1669 = vmatpush.msra.mxu0 %v795
    %1670 = vmatpush.msra.mxu0 %v787
    %1671 = vmatpush.msra.mxu0 %v779
    %1672 = vmatmul.f32.gmra.mxu0 %v389
    %v1673 = vpop.f32.mrf.mxu0
    %v1674 = vadd.f32 %v1654, %v1673
    %1675 = vdwg.mxu0
    %1676 = vmatpush.msra.mxu0 %v1027
    %1677 = vmatpush.msra.mxu0 %v1019
    %1678 = vmatpush.msra.mxu0 %v1011
    %1679 = vmatpush.msra.mxu0 %v1003
    %1680 = vmatpush.msra.mxu0 %v995
    %1681 = vmatpush.msra.mxu0 %v987
    %1682 = vmatpush.msra.mxu0 %v979
    %1683 = vmatpush.msra.mxu0 %v971
    %1684 = vmatpush.msra.mxu0 %v963
    %1685 = vmatpush.msra.mxu0 %v955
    %1686 = vmatpush.msra.mxu0 %v947
    %1687 = vmatpush.msra.mxu0 %v939
    %1688 = vmatpush.msra.mxu0 %v931
    %1689 = vmatpush.msra.mxu0 %v923
    %1690 = vmatpush.msra.mxu0 %v915
    %1691 = vmatpush.msra.mxu0 %v907
    %1692 = vmatmul.f32.gmra.mxu0 %v390
    %v1693 = vpop.f32.mrf.mxu0
    %v1694 = vadd.f32 %v1674, %v1693
    %1695 = vdwg.mxu0
    %1696 = vmatpush.msra.mxu0 %v1155
    %1697 = vmatpush.msra.mxu0 %v1147
    %1698 = vmatpush.msra.mxu0 %v1139
    %1699 = vmatpush.msra.mxu0 %v1131
    %1700 = vmatpush.msra.mxu0 %v1123
    %1701 = vmatpush.msra.mxu0 %v1115
    %1702 = vmatpush.msra.mxu0 %v1107
    %1703 = vmatpush.msra.mxu0 %v1099
    %1704 = vmatpush.msra.mxu0 %v1091
    %1705 = vmatpush.msra.mxu0 %v1083
    %1706 = vmatpush.msra.mxu0 %v1075
    %1707 = vmatpush.msra.mxu0 %v1067
    %1708 = vmatpush.msra.mxu0 %v1059
    %1709 = vmatpush.msra.mxu0 %v1051
    %1710 = vmatpush.msra.mxu0 %v1043
    %1711 = vmatpush.msra.mxu0 %v1035
    %1712 = vmatmul.f32.gmra.mxu0 %v391
    %v1713 = vpop.f32.mrf.mxu0
    %v1714 = vadd.f32 %v1694, %v1713
    %1715 = vdwg.mxu0
    %1716 = vmatpush.msra.mxu0 %v1283
    %1717 = vmatpush.msra.mxu0 %v1275
    %1718 = vmatpush.msra.mxu0 %v1267
    %1719 = vmatpush.msra.mxu0 %v1259
    %1720 = vmatpush.msra.mxu0 %v1251
    %1721 = vmatpush.msra.mxu0 %v1243
    %1722 = vmatpush.msra.mxu0 %v1235
    %1723 = vmatpush.msra.mxu0 %v1227
    %1724 = vmatpush.msra.mxu0 %v1219
    %1725 = vmatpush.msra.mxu0 %v1211
    %1726 = vmatpush.msra.mxu0 %v1203
    %1727 = vmatpush.msra.mxu0 %v1195
    %1728 = vmatpush.msra.mxu0 %v1187
    %1729 = vmatpush.msra.mxu0 %v1179
    %1730 = vmatpush.msra.mxu0 %v1171
    %1731 = vmatpush.msra.mxu0 %v1163
    %1732 = vmatmul.f32.gmra.mxu0 %v392
    %v1733 = vpop.f32.mrf.mxu0
    %v1734 = vadd.f32 %v1714, %v1733
    %1735 = vdwg.mxu0
    %1736 = vmatpush.msra.mxu0 %v1411
    %1737 = vmatpush.msra.mxu0 %v1403
    %1738 = vmatpush.msra.mxu0 %v1395
    %1739 = vmatpush.msra.mxu0 %v1387
    %1740 = vmatpush.msra.mxu0 %v1379
    %1741 = vmatpush.msra.mxu0 %v1371
    %1742 = vmatpush.msra.mxu0 %v1363
    %1743 = vmatpush.msra.mxu0 %v1355
    %1744 = vmatpush.msra.mxu0 %v1347
    %1745 = vmatpush.msra.mxu0 %v1339
    %1746 = vmatpush.msra.mxu0 %v1331
    %1747 = vmatpush.msra.mxu0 %v1323
    %1748 = vmatpush.msra.mxu0 %v1315
    %1749 = vmatpush.msra.mxu0 %v1307
    %1750 = vmatpush.msra.mxu0 %v1299
    %1751 = vmatpush.msra.mxu0 %v1291
    %1752 = vmatmul.f32.gmra.mxu0 %v393
    %v1753 = vpop.f32.mrf.mxu0
    %v1754 = vadd.f32 %v1734, %v1753
    %1755 = vdwg.mxu0
    %1756 = vmatpush.msra.mxu0 %v516
    %1757 = vmatpush.msra.mxu0 %v508
    %1758 = vmatpush.msra.mxu0 %v500
    %1759 = vmatpush.msra.mxu0 %v492
    %1760 = vmatpush.msra.mxu0 %v484
    %1761 = vmatpush.msra.mxu0 %v476
    %1762 = vmatpush.msra.mxu0 %v468
    %1763 = vmatpush.msra.mxu0 %v460
    %1764 = vmatpush.msra.mxu0 %v452
    %1765 = vmatpush.msra.mxu0 %v444
    %1766 = vmatpush.msra.mxu0 %v436
    %1767 = vmatpush.msra.mxu0 %v428
    %1768 = vmatpush.msra.mxu0 %v420
    %1769 = vmatpush.msra.mxu0 %v412
    %1770 = vmatpush.msra.mxu0 %v404
    %1771 = vmatpush.msra.mxu0 %v396
    %1772 = vmatmul.f32.gmra.mxu0 %v386
    %v1773 = vpop.f32.mrf.mxu0
    %v1774 = vadd.f32 %v1422, %v1773
    %1775 = vdwg.mxu0
    %1776 = vmatpush.msra.mxu0 %v644
    %1777 = vmatpush.msra.mxu0 %v636
    %1778 = vmatpush.msra.mxu0 %v628
    %1779 = vmatpush.msra.mxu0 %v620
    %1780 = vmatpush.msra.mxu0 %v612
    %1781 = vmatpush.msra.mxu0 %v604
    %1782 = vmatpush.msra.mxu0 %v596
    %1783 = vmatpush.msra.mxu0 %v588
    %1784 = vmatpush.msra.mxu0 %v580
    %1785 = vmatpush.msra.mxu0 %v572
    %1786 = vmatpush.msra.mxu0 %v564
    %1787 = vmatpush.msra.mxu0 %v556
    %1788 = vmatpush.msra.mxu0 %v548
    %1789 = vmatpush.msra.mxu0 %v540
    %1790 = vmatpush.msra.mxu0 %v532
    %1791 = vmatpush.msra.mxu0 %v524
    %1792 = vmatmul.f32.gmra.mxu0 %v387
    %v1793 = vpop.f32.mrf.mxu0
    %v1794 = vadd.f32 %v1774, %v1793
    %1795 = vdwg.mxu0
    %1796 = vmatpush.msra.mxu0 %v772
    %1797 = vmatpush.msra.mxu0 %v764
    %1798 = vmatpush.msra.mxu0 %v756
    %1799 = vmatpush.msra.mxu0 %v748
    %1800 = vmatpush.msra.mxu0 %v740
    %1801 = vmatpush.msra.mxu0 %v732
    %1802 = vmatpush.msra.mxu0 %v724
    %1803 = vmatpush.msra.mxu0 %v716
    %1804 = vmatpush.msra.mxu0 %v708
    %1805 = vmatpush.msra.mxu0 %v700
    %1806 = vmatpush.msra.mxu0 %v692
    %1807 = vmatpush.msra.mxu0 %v684
    %1808 = vmatpush.msra.mxu0 %v676
    %1809 = vmatpush.msra.mxu0 %v668
    %1810 = vmatpush.msra.mxu0 %v660
    %1811 = vmatpush.msra.mxu0 %v652
    %1812 = vmatmul.f32.gmra.mxu0 %v388
    %v1813 = vpop.f32.mrf.mxu0
    %v1814 = vadd.f32 %v1794, %v1813
    %1815 = vdwg.mxu0
    %1816 = vmatpush.msra.mxu0 %v900
    %1817 = vmatpush.msra.mxu0 %v892
    %1818 = vmatpush.msra.mxu0 %v884
    %1819 = vmatpush.msra.mxu0 %v876
    %1820 = vmatpush.msra.mxu0 %v868
    %1821 = vmatpush.msra.mxu0 %v860
    %1822 = vmatpush.msra.mxu0 %v852
    %1823 = vmatpush.msra.mxu0 %v844
    %1824 = vmatpush.msra.mxu0 %v836
    %1825 = vmatpush.msra.mxu0 %v828
    %1826 = vmatpush.msra.mxu0 %v820
    %1827 = vmatpush.msra.mxu0 %v812
    %1828 = vmatpush.msra.mxu0 %v804
    %1829 = vmatpush.msra.mxu0 %v796
    %1830 = vmatpush.msra.mxu0 %v788
    %1831 = vmatpush.msra.mxu0 %v780
    %1832 = vmatmul.f32.gmra.mxu0 %v389
    %v1833 = vpop.f32.mrf.mxu0
    %v1834 = vadd.f32 %v1814, %v1833
    %1835 = vdwg.mxu0
    %1836 = vmatpush.msra.mxu0 %v1028
    %1837 = vmatpush.msra.mxu0 %v1020
    %1838 = vmatpush.msra.mxu0 %v1012
    %1839 = vmatpush.msra.mxu0 %v1004
    %1840 = vmatpush.msra.mxu0 %v996
    %1841 = vmatpush.msra.mxu0 %v988
    %1842 = vmatpush.msra.mxu0 %v980
    %1843 = vmatpush.msra.mxu0 %v972
    %1844 = vmatpush.msra.mxu0 %v964
    %1845 = vmatpush.msra.mxu0 %v956
    %1846 = vmatpush.msra.mxu0 %v948
    %1847 = vmatpush.msra.mxu0 %v940
    %1848 = vmatpush.msra.mxu0 %v932
    %1849 = vmatpush.msra.mxu0 %v924
    %1850 = vmatpush.msra.mxu0 %v916
    %1851 = vmatpush.msra.mxu0 %v908
    %1852 = vmatmul.f32.gmra.mxu0 %v390
    %v1853 = vpop.f32.mrf.mxu0
    %v1854 = vadd.f32 %v1834, %v1853
    %1855 = vdwg.mxu0
    %1856 = vmatpush.msra.mxu0 %v1156
    %1857 = vmatpush.msra.mxu0 %v1148
    %1858 = vmatpush.msra.mxu0 %v1140
    %1859 = vmatpush.msra.mxu0 %v1132
    %1860 = vmatpush.msra.mxu0 %v1124
    %1861 = vmatpush.msra.mxu0 %v1116
    %1862 = vmatpush.msra.mxu0 %v1108
    %1863 = vmatpush.msra.mxu0 %v1100
    %1864 = vmatpush.msra.mxu0 %v1092
    %1865 = vmatpush.msra.mxu0 %v1084
    %1866 = vmatpush.msra.mxu0 %v1076
    %1867 = vmatpush.msra.mxu0 %v1068
    %1868 = vmatpush.msra.mxu0 %v1060
    %1869 = vmatpush.msra.mxu0 %v1052
    %1870 = vmatpush.msra.mxu0 %v1044
    %1871 = vmatpush.msra.mxu0 %v1036
    %1872 = vmatmul.f32.gmra.mxu0 %v391
    %v1873 = vpop.f32.mrf.mxu0
    %v1874 = vadd.f32 %v1854, %v1873
    %1875 = vdwg.mxu0
    %1876 = vmatpush.msra.mxu0 %v1284
    %1877 = vmatpush.msra.mxu0 %v1276
    %1878 = vmatpush.msra.mxu0 %v1268
    %1879 = vmatpush.msra.mxu0 %v1260
    %1880 = vmatpush.msra.mxu0 %v1252
    %1881 = vmatpush.msra.mxu0 %v1244
    %1882 = vmatpush.msra.mxu0 %v1236
    %1883 = vmatpush.msra.mxu0 %v1228
    %1884 = vmatpush.msra.mxu0 %v1220
    %1885 = vmatpush.msra.mxu0 %v1212
    %1886 = vmatpush.msra.mxu0 %v1204
    %1887 = vmatpush.msra.mxu0 %v1196
    %1888 = vmatpush.msra.mxu0 %v1188
    %1889 = vmatpush.msra.mxu0 %v1180
    %1890 = vmatpush.msra.mxu0 %v1172
    %1891 = vmatpush.msra.mxu0 %v1164
    %1892 = vmatmul.f32.gmra.mxu0 %v392
    %v1893 = vpop.f32.mrf.mxu0
    %v1894 = vadd.f32 %v1874, %v1893
    %1895 = vdwg.mxu0
    %1896 = vmatpush.msra.mxu0 %v1412
    %1897 = vmatpush.msra.mxu0 %v1404
    %1898 = vmatpush.msra.mxu0 %v1396
    %1899 = vmatpush.msra.mxu0 %v1388
    %1900 = vmatpush.msra.mxu0 %v1380
    %1901 = vmatpush.msra.mxu0 %v1372
    %1902 = vmatpush.msra.mxu0 %v1364
    %1903 = vmatpush.msra.mxu0 %v1356
    %1904 = vmatpush.msra.mxu0 %v1348
    %1905 = vmatpush.msra.mxu0 %v1340
    %1906 = vmatpush.msra.mxu0 %v1332
    %1907 = vmatpush.msra.mxu0 %v1324
    %1908 = vmatpush.msra.mxu0 %v1316
    %1909 = vmatpush.msra.mxu0 %v1308
    %1910 = vmatpush.msra.mxu0 %v1300
    %1911 = vmatpush.msra.mxu0 %v1292
    %1912 = vmatmul.f32.gmra.mxu0 %v393
    %v1913 = vpop.f32.mrf.mxu0
    %v1914 = vadd.f32 %v1894, %v1913
    %1915 = vdwg.mxu0
    %1916 = vmatpush.msra.mxu0 %v517
    %1917 = vmatpush.msra.mxu0 %v509
    %1918 = vmatpush.msra.mxu0 %v501
    %1919 = vmatpush.msra.mxu0 %v493
    %1920 = vmatpush.msra.mxu0 %v485
    %1921 = vmatpush.msra.mxu0 %v477
    %1922 = vmatpush.msra.mxu0 %v469
    %1923 = vmatpush.msra.mxu0 %v461
    %1924 = vmatpush.msra.mxu0 %v453
    %1925 = vmatpush.msra.mxu0 %v445
    %1926 = vmatpush.msra.mxu0 %v437
    %1927 = vmatpush.msra.mxu0 %v429
    %1928 = vmatpush.msra.mxu0 %v421
    %1929 = vmatpush.msra.mxu0 %v413
    %1930 = vmatpush.msra.mxu0 %v405
    %1931 = vmatpush.msra.mxu0 %v397
    %1932 = vmatmul.f32.gmra.mxu0 %v386
    %v1933 = vpop.f32.mrf.mxu0
    %v1934 = vadd.f32 %v1423, %v1933
    %1935 = vdwg.mxu0
    %1936 = vmatpush.msra.mxu0 %v645
    %1937 = vmatpush.msra.mxu0 %v637
    %1938 = vmatpush.msra.mxu0 %v629
    %1939 = vmatpush.msra.mxu0 %v621
    %1940 = vmatpush.msra.mxu0 %v613
    %1941 = vmatpush.msra.mxu0 %v605
    %1942 = vmatpush.msra.mxu0 %v597
    %1943 = vmatpush.msra.mxu0 %v589
    %1944 = vmatpush.msra.mxu0 %v581
    %1945 = vmatpush.msra.mxu0 %v573
    %1946 = vmatpush.msra.mxu0 %v565
    %1947 = vmatpush.msra.mxu0 %v557
    %1948 = vmatpush.msra.mxu0 %v549
    %1949 = vmatpush.msra.mxu0 %v541
    %1950 = vmatpush.msra.mxu0 %v533
    %1951 = vmatpush.msra.mxu0 %v525
    %1952 = vmatmul.f32.gmra.mxu0 %v387
    %v1953 = vpop.f32.mrf.mxu0
    %v1954 = vadd.f32 %v1934, %v1953
    %1955 = vdwg.mxu0
    %1956 = vmatpush.msra.mxu0 %v773
    %1957 = vmatpush.msra.mxu0 %v765
    %1958 = vmatpush.msra.mxu0 %v757
    %1959 = vmatpush.msra.mxu0 %v749
    %1960 = vmatpush.msra.mxu0 %v741
    %1961 = vmatpush.msra.mxu0 %v733
    %1962 = vmatpush.msra.mxu0 %v725
    %1963 = vmatpush.msra.mxu0 %v717
    %1964 = vmatpush.msra.mxu0 %v709
    %1965 = vmatpush.msra.mxu0 %v701
    %1966 = vmatpush.msra.mxu0 %v693
    %1967 = vmatpush.msra.mxu0 %v685
    %1968 = vmatpush.msra.mxu0 %v677
    %1969 = vmatpush.msra.mxu0 %v669
    %1970 = vmatpush.msra.mxu0 %v661
    %1971 = vmatpush.msra.mxu0 %v653
    %1972 = vmatmul.f32.gmra.mxu0 %v388
    %v1973 = vpop.f32.mrf.mxu0
    %v1974 = vadd.f32 %v1954, %v1973
    %1975 = vdwg.mxu0
    %1976 = vmatpush.msra.mxu0 %v901
    %1977 = vmatpush.msra.mxu0 %v893
    %1978 = vmatpush.msra.mxu0 %v885
    %1979 = vmatpush.msra.mxu0 %v877
    %1980 = vmatpush.msra.mxu0 %v869
    %1981 = vmatpush.msra.mxu0 %v861
    %1982 = vmatpush.msra.mxu0 %v853
    %1983 = vmatpush.msra.mxu0 %v845
    %1984 = vmatpush.msra.mxu0 %v837
    %1985 = vmatpush.msra.mxu0 %v829
    %1986 = vmatpush.msra.mxu0 %v821
    %1987 = vmatpush.msra.mxu0 %v813
    %1988 = vmatpush.msra.mxu0 %v805
    %1989 = vmatpush.msra.mxu0 %v797
    %1990 = vmatpush.msra.mxu0 %v789
    %1991 = vmatpush.msra.mxu0 %v781
    %1992 = vmatmul.f32.gmra.mxu0 %v389
    %v1993 = vpop.f32.mrf.mxu0
    %v1994 = vadd.f32 %v1974, %v1993
    %1995 = vdwg.mxu0
    %1996 = vmatpush.msra.mxu0 %v1029
    %1997 = vmatpush.msra.mxu0 %v1021
    %1998 = vmatpush.msra.mxu0 %v1013
    %1999 = vmatpush.msra.mxu0 %v1005
    %2000 = vmatpush.msra.mxu0 %v997
    %2001 = vmatpush.msra.mxu0 %v989
    %2002 = vmatpush.msra.mxu0 %v981
    %2003 = vmatpush.msra.mxu0 %v973
    %2004 = vmatpush.msra.mxu0 %v965
    %2005 = vmatpush.msra.mxu0 %v957
    %2006 = vmatpush.msra.mxu0 %v949
    %2007 = vmatpush.msra.mxu0 %v941
    %2008 = vmatpush.msra.mxu0 %v933
    %2009 = vmatpush.msra.mxu0 %v925
    %2010 = vmatpush.msra.mxu0 %v917
    %2011 = vmatpush.msra.mxu0 %v909
    %2012 = vmatmul.f32.gmra.mxu0 %v390
    %v2013 = vpop.f32.mrf.mxu0
    %v2014 = vadd.f32 %v1994, %v2013
    %2015 = vdwg.mxu0
    %2016 = vmatpush.msra.mxu0 %v1157
    %2017 = vmatpush.msra.mxu0 %v1149
    %2018 = vmatpush.msra.mxu0 %v1141
    %2019 = vmatpush.msra.mxu0 %v1133
    %2020 = vmatpush.msra.mxu0 %v1125
    %2021 = vmatpush.msra.mxu0 %v1117
    %2022 = vmatpush.msra.mxu0 %v1109
    %2023 = vmatpush.msra.mxu0 %v1101
    %2024 = vmatpush.msra.mxu0 %v1093
    %2025 = vmatpush.msra.mxu0 %v1085
    %2026 = vmatpush.msra.mxu0 %v1077
    %2027 = vmatpush.msra.mxu0 %v1069
    %2028 = vmatpush.msra.mxu0 %v1061
    %2029 = vmatpush.msra.mxu0 %v1053
    %2030 = vmatpush.msra.mxu0 %v1045
    %2031 = vmatpush.msra.mxu0 %v1037
    %2032 = vmatmul.f32.gmra.mxu0 %v391
    %v2033 = vpop.f32.mrf.mxu0
    %v2034 = vadd.f32 %v2014, %v2033
    %2035 = vdwg.mxu0
    %2036 = vmatpush.msra.mxu0 %v1285
    %2037 = vmatpush.msra.mxu0 %v1277
    %2038 = vmatpush.msra.mxu0 %v1269
    %2039 = vmatpush.msra.mxu0 %v1261
    %2040 = vmatpush.msra.mxu0 %v1253
    %2041 = vmatpush.msra.mxu0 %v1245
    %2042 = vmatpush.msra.mxu0 %v1237
    %2043 = vmatpush.msra.mxu0 %v1229
    %2044 = vmatpush.msra.mxu0 %v1221
    %2045 = vmatpush.msra.mxu0 %v1213
    %2046 = vmatpush.msra.mxu0 %v1205
    %2047 = vmatpush.msra.mxu0 %v1197
    %2048 = vmatpush.msra.mxu0 %v1189
    %2049 = vmatpush.msra.mxu0 %v1181
    %2050 = vmatpush.msra.mxu0 %v1173
    %2051 = vmatpush.msra.mxu0 %v1165
    %2052 = vmatmul.f32.gmra.mxu0 %v392
    %v2053 = vpop.f32.mrf.mxu0
    %v2054 = vadd.f32 %v2034, %v2053
    %2055 = vdwg.mxu0
    %2056 = vmatpush.msra.mxu0 %v1413
    %2057 = vmatpush.msra.mxu0 %v1405
    %2058 = vmatpush.msra.mxu0 %v1397
    %2059 = vmatpush.msra.mxu0 %v1389
    %2060 = vmatpush.msra.mxu0 %v1381
    %2061 = vmatpush.msra.mxu0 %v1373
    %2062 = vmatpush.msra.mxu0 %v1365
    %2063 = vmatpush.msra.mxu0 %v1357
    %2064 = vmatpush.msra.mxu0 %v1349
    %2065 = vmatpush.msra.mxu0 %v1341
    %2066 = vmatpush.msra.mxu0 %v1333
    %2067 = vmatpush.msra.mxu0 %v1325
    %2068 = vmatpush.msra.mxu0 %v1317
    %2069 = vmatpush.msra.mxu0 %v1309
    %2070 = vmatpush.msra.mxu0 %v1301
    %2071 = vmatpush.msra.mxu0 %v1293
    %2072 = vmatmul.f32.gmra.mxu0 %v393
    %v2073 = vpop.f32.mrf.mxu0
    %v2074 = vadd.f32 %v2054, %v2073
    %2075 = vdwg.mxu0
    %2076 = vmatpush.msra.mxu0 %v518
    %2077 = vmatpush.msra.mxu0 %v510
    %2078 = vmatpush.msra.mxu0 %v502
    %2079 = vmatpush.msra.mxu0 %v494
    %2080 = vmatpush.msra.mxu0 %v486
    %2081 = vmatpush.msra.mxu0 %v478
    %2082 = vmatpush.msra.mxu0 %v470
    %2083 = vmatpush.msra.mxu0 %v462
    %2084 = vmatpush.msra.mxu0 %v454
    %2085 = vmatpush.msra.mxu0 %v446
    %2086 = vmatpush.msra.mxu0 %v438
    %2087 = vmatpush.msra.mxu0 %v430
    %2088 = vmatpush.msra.mxu0 %v422
    %2089 = vmatpush.msra.mxu0 %v414
    %2090 = vmatpush.msra.mxu0 %v406
    %2091 = vmatpush.msra.mxu0 %v398
    %2092 = vmatmul.f32.gmra.mxu0 %v386
    %v2093 = vpop.f32.mrf.mxu0
    %v2094 = vadd.f32 %v1424, %v2093
    %2095 = vdwg.mxu0
    %2096 = vmatpush.msra.mxu0 %v646
    %2097 = vmatpush.msra.mxu0 %v638
    %2098 = vmatpush.msra.mxu0 %v630
    %2099 = vmatpush.msra.mxu0 %v622
    %2100 = vmatpush.msra.mxu0 %v614
    %2101 = vmatpush.msra.mxu0 %v606
    %2102 = vmatpush.msra.mxu0 %v598
    %2103 = vmatpush.msra.mxu0 %v590
    %2104 = vmatpush.msra.mxu0 %v582
    %2105 = vmatpush.msra.mxu0 %v574
    %2106 = vmatpush.msra.mxu0 %v566
    %2107 = vmatpush.msra.mxu0 %v558
    %2108 = vmatpush.msra.mxu0 %v550
    %2109 = vmatpush.msra.mxu0 %v542
    %2110 = vmatpush.msra.mxu0 %v534
    %2111 = vmatpush.msra.mxu0 %v526
    %2112 = vmatmul.f32.gmra.mxu0 %v387
    %v2113 = vpop.f32.mrf.mxu0
    %v2114 = vadd.f32 %v2094, %v2113
    %2115 = vdwg.mxu0
    %2116 = vmatpush.msra.mxu0 %v774
    %2117 = vmatpush.msra.mxu0 %v766
    %2118 = vmatpush.msra.mxu0 %v758
    %2119 = vmatpush.msra.mxu0 %v750
    %2120 = vmatpush.msra.mxu0 %v742
    %2121 = vmatpush.msra.mxu0 %v734
    %2122 = vmatpush.msra.mxu0 %v726
    %2123 = vmatpush.msra.mxu0 %v718
    %2124 = vmatpush.msra.mxu0 %v710
    %2125 = vmatpush.msra.mxu0 %v702
    %2126 = vmatpush.msra.mxu0 %v694
    %2127 = vmatpush.msra.mxu0 %v686
    %2128 = vmatpush.msra.mxu0 %v678
    %2129 = vmatpush.msra.mxu0 %v670
    %2130 = vmatpush.msra.mxu0 %v662
    %2131 = vmatpush.msra.mxu0 %v654
    %2132 = vmatmul.f32.gmra.mxu0 %v388
    %v2133 = vpop.f32.mrf.mxu0
    %v2134 = vadd.f32 %v2114, %v2133
    %2135 = vdwg.mxu0
    %2136 = vmatpush.msra.mxu0 %v902
    %2137 = vmatpush.msra.mxu0 %v894
    %2138 = vmatpush.msra.mxu0 %v886
    %2139 = vmatpush.msra.mxu0 %v878
    %2140 = vmatpush.msra.mxu0 %v870
    %2141 = vmatpush.msra.mxu0 %v862
    %2142 = vmatpush.msra.mxu0 %v854
    %2143 = vmatpush.msra.mxu0 %v846
    %2144 = vmatpush.msra.mxu0 %v838
    %2145 = vmatpush.msra.mxu0 %v830
    %2146 = vmatpush.msra.mxu0 %v822
    %2147 = vmatpush.msra.mxu0 %v814
    %2148 = vmatpush.msra.mxu0 %v806
    %2149 = vmatpush.msra.mxu0 %v798
    %2150 = vmatpush.msra.mxu0 %v790
    %2151 = vmatpush.msra.mxu0 %v782
    %2152 = vmatmul.f32.gmra.mxu0 %v389
    %v2153 = vpop.f32.mrf.mxu0
    %v2154 = vadd.f32 %v2134, %v2153
    %2155 = vdwg.mxu0
    %2156 = vmatpush.msra.mxu0 %v1030
    %2157 = vmatpush.msra.mxu0 %v1022
    %2158 = vmatpush.msra.mxu0 %v1014
    %2159 = vmatpush.msra.mxu0 %v1006
    %2160 = vmatpush.msra.mxu0 %v998
    %2161 = vmatpush.msra.mxu0 %v990
    %2162 = vmatpush.msra.mxu0 %v982
    %2163 = vmatpush.msra.mxu0 %v974
    %2164 = vmatpush.msra.mxu0 %v966
    %2165 = vmatpush.msra.mxu0 %v958
    %2166 = vmatpush.msra.mxu0 %v950
    %2167 = vmatpush.msra.mxu0 %v942
    %2168 = vmatpush.msra.mxu0 %v934
    %2169 = vmatpush.msra.mxu0 %v926
    %2170 = vmatpush.msra.mxu0 %v918
    %2171 = vmatpush.msra.mxu0 %v910
    %2172 = vmatmul.f32.gmra.mxu0 %v390
    %v2173 = vpop.f32.mrf.mxu0
    %v2174 = vadd.f32 %v2154, %v2173
    %2175 = vdwg.mxu0
    %2176 = vmatpush.msra.mxu0 %v1158
    %2177 = vmatpush.msra.mxu0 %v1150
    %2178 = vmatpush.msra.mxu0 %v1142
    %2179 = vmatpush.msra.mxu0 %v1134
    %2180 = vmatpush.msra.mxu0 %v1126
    %2181 = vmatpush.msra.mxu0 %v1118
    %2182 = vmatpush.msra.mxu0 %v1110
    %2183 = vmatpush.msra.mxu0 %v1102
    %2184 = vmatpush.msra.mxu0 %v1094
    %2185 = vmatpush.msra.mxu0 %v1086
    %2186 = vmatpush.msra.mxu0 %v1078
    %2187 = vmatpush.msra.mxu0 %v1070
    %2188 = vmatpush.msra.mxu0 %v1062
    %2189 = vmatpush.msra.mxu0 %v1054
    %2190 = vmatpush.msra.mxu0 %v1046
    %2191 = vmatpush.msra.mxu0 %v1038
    %2192 = vmatmul.f32.gmra.mxu0 %v391
    %v2193 = vpop.f32.mrf.mxu0
    %v2194 = vadd.f32 %v2174, %v2193
    %2195 = vdwg.mxu0
    %2196 = vmatpush.msra.mxu0 %v1286
    %2197 = vmatpush.msra.mxu0 %v1278
    %2198 = vmatpush.msra.mxu0 %v1270
    %2199 = vmatpush.msra.mxu0 %v1262
    %2200 = vmatpush.msra.mxu0 %v1254
    %2201 = vmatpush.msra.mxu0 %v1246
    %2202 = vmatpush.msra.mxu0 %v1238
    %2203 = vmatpush.msra.mxu0 %v1230
    %2204 = vmatpush.msra.mxu0 %v1222
    %2205 = vmatpush.msra.mxu0 %v1214
    %2206 = vmatpush.msra.mxu0 %v1206
    %2207 = vmatpush.msra.mxu0 %v1198
    %2208 = vmatpush.msra.mxu0 %v1190
    %2209 = vmatpush.msra.mxu0 %v1182
    %2210 = vmatpush.msra.mxu0 %v1174
    %2211 = vmatpush.msra.mxu0 %v1166
    %2212 = vmatmul.f32.gmra.mxu0 %v392
    %v2213 = vpop.f32.mrf.mxu0
    %v2214 = vadd.f32 %v2194, %v2213
    %2215 = vdwg.mxu0
    %2216 = vmatpush.msra.mxu0 %v1414
    %2217 = vmatpush.msra.mxu0 %v1406
    %2218 = vmatpush.msra.mxu0 %v1398
    %2219 = vmatpush.msra.mxu0 %v1390
    %2220 = vmatpush.msra.mxu0 %v1382
    %2221 = vmatpush.msra.mxu0 %v1374
    %2222 = vmatpush.msra.mxu0 %v1366
    %2223 = vmatpush.msra.mxu0 %v1358
    %2224 = vmatpush.msra.mxu0 %v1350
    %2225 = vmatpush.msra.mxu0 %v1342
    %2226 = vmatpush.msra.mxu0 %v1334
    %2227 = vmatpush.msra.mxu0 %v1326
    %2228 = vmatpush.msra.mxu0 %v1318
    %2229 = vmatpush.msra.mxu0 %v1310
    %2230 = vmatpush.msra.mxu0 %v1302
    %2231 = vmatpush.msra.mxu0 %v1294
    %2232 = vmatmul.f32.gmra.mxu0 %v393
    %v2233 = vpop.f32.mrf.mxu0
    %v2234 = vadd.f32 %v2214, %v2233
    %2235 = vdwg.mxu0
    %2236 = vmatpush.msra.mxu0 %v519
    %2237 = vmatpush.msra.mxu0 %v511
    %2238 = vmatpush.msra.mxu0 %v503
    %2239 = vmatpush.msra.mxu0 %v495
    %2240 = vmatpush.msra.mxu0 %v487
    %2241 = vmatpush.msra.mxu0 %v479
    %2242 = vmatpush.msra.mxu0 %v471
    %2243 = vmatpush.msra.mxu0 %v463
    %2244 = vmatpush.msra.mxu0 %v455
    %2245 = vmatpush.msra.mxu0 %v447
    %2246 = vmatpush.msra.mxu0 %v439
    %2247 = vmatpush.msra.mxu0 %v431
    %2248 = vmatpush.msra.mxu0 %v423
    %2249 = vmatpush.msra.mxu0 %v415
    %2250 = vmatpush.msra.mxu0 %v407
    %2251 = vmatpush.msra.mxu0 %v399
    %2252 = vmatmul.f32.gmra.mxu0 %v386
    %v2253 = vpop.f32.mrf.mxu0
    %v2254 = vadd.f32 %v1425, %v2253
    %2255 = vdwg.mxu0
    %2256 = vmatpush.msra.mxu0 %v647
    %2257 = vmatpush.msra.mxu0 %v639
    %2258 = vmatpush.msra.mxu0 %v631
    %2259 = vmatpush.msra.mxu0 %v623
    %2260 = vmatpush.msra.mxu0 %v615
    %2261 = vmatpush.msra.mxu0 %v607
    %2262 = vmatpush.msra.mxu0 %v599
    %2263 = vmatpush.msra.mxu0 %v591
    %2264 = vmatpush.msra.mxu0 %v583
    %2265 = vmatpush.msra.mxu0 %v575
    %2266 = vmatpush.msra.mxu0 %v567
    %2267 = vmatpush.msra.mxu0 %v559
    %2268 = vmatpush.msra.mxu0 %v551
    %2269 = vmatpush.msra.mxu0 %v543
    %2270 = vmatpush.msra.mxu0 %v535
    %2271 = vmatpush.msra.mxu0 %v527
    %2272 = vmatmul.f32.gmra.mxu0 %v387
    %v2273 = vpop.f32.mrf.mxu0
    %v2274 = vadd.f32 %v2254, %v2273
    %2275 = vdwg.mxu0
    %2276 = vmatpush.msra.mxu0 %v775
    %2277 = vmatpush.msra.mxu0 %v767
    %2278 = vmatpush.msra.mxu0 %v759
    %2279 = vmatpush.msra.mxu0 %v751
    %2280 = vmatpush.msra.mxu0 %v743
    %2281 = vmatpush.msra.mxu0 %v735
    %2282 = vmatpush.msra.mxu0 %v727
    %2283 = vmatpush.msra.mxu0 %v719
    %2284 = vmatpush.msra.mxu0 %v711
    %2285 = vmatpush.msra.mxu0 %v703
    %2286 = vmatpush.msra.mxu0 %v695
    %2287 = vmatpush.msra.mxu0 %v687
    %2288 = vmatpush.msra.mxu0 %v679
    %2289 = vmatpush.msra.mxu0 %v671
    %2290 = vmatpush.msra.mxu0 %v663
    %2291 = vmatpush.msra.mxu0 %v655
    %2292 = vmatmul.f32.gmra.mxu0 %v388
    %v2293 = vpop.f32.mrf.mxu0
    %v2294 = vadd.f32 %v2274, %v2293
    %2295 = vdwg.mxu0
    %2296 = vmatpush.msra.mxu0 %v903
    %2297 = vmatpush.msra.mxu0 %v895
    %2298 = vmatpush.msra.mxu0 %v887
    %2299 = vmatpush.msra.mxu0 %v879
    %2300 = vmatpush.msra.mxu0 %v871
    %2301 = vmatpush.msra.mxu0 %v863
    %2302 = vmatpush.msra.mxu0 %v855
    %2303 = vmatpush.msra.mxu0 %v847
    %2304 = vmatpush.msra.mxu0 %v839
    %2305 = vmatpush.msra.mxu0 %v831
    %2306 = vmatpush.msra.mxu0 %v823
    %2307 = vmatpush.msra.mxu0 %v815
    %2308 = vmatpush.msra.mxu0 %v807
    %2309 = vmatpush.msra.mxu0 %v799
    %2310 = vmatpush.msra.mxu0 %v791
    %2311 = vmatpush.msra.mxu0 %v783
    %2312 = vmatmul.f32.gmra.mxu0 %v389
    %v2313 = vpop.f32.mrf.mxu0
    %v2314 = vadd.f32 %v2294, %v2313
    %2315 = vdwg.mxu0
    %2316 = vmatpush.msra.mxu0 %v1031
    %2317 = vmatpush.msra.mxu0 %v1023
    %2318 = vmatpush.msra.mxu0 %v1015
    %2319 = vmatpush.msra.mxu0 %v1007
    %2320 = vmatpush.msra.mxu0 %v999
    %2321 = vmatpush.msra.mxu0 %v991
    %2322 = vmatpush.msra.mxu0 %v983
    %2323 = vmatpush.msra.mxu0 %v975
    %2324 = vmatpush.msra.mxu0 %v967
    %2325 = vmatpush.msra.mxu0 %v959
    %2326 = vmatpush.msra.mxu0 %v951
    %2327 = vmatpush.msra.mxu0 %v943
    %2328 = vmatpush.msra.mxu0 %v935
    %2329 = vmatpush.msra.mxu0 %v927
    %2330 = vmatpush.msra.mxu0 %v919
    %2331 = vmatpush.msra.mxu0 %v911
    %2332 = vmatmul.f32.gmra.mxu0 %v390
    %v2333 = vpop.f32.mrf.mxu0
    %v2334 = vadd.f32 %v2314, %v2333
    %2335 = vdwg.mxu0
    %2336 = vmatpush.msra.mxu0 %v1159
    %2337 = vmatpush.msra.mxu0 %v1151
    %2338 = vmatpush.msra.mxu0 %v1143
    %2339 = vmatpush.msra.mxu0 %v1135
    %2340 = vmatpush.msra.mxu0 %v1127
    %2341 = vmatpush.msra.mxu0 %v1119
    %2342 = vmatpush.msra.mxu0 %v1111
    %2343 = vmatpush.msra.mxu0 %v1103
    %2344 = vmatpush.msra.mxu0 %v1095
    %2345 = vmatpush.msra.mxu0 %v1087
    %2346 = vmatpush.msra.mxu0 %v1079
    %2347 = vmatpush.msra.mxu0 %v1071
    %2348 = vmatpush.msra.mxu0 %v1063
    %2349 = vmatpush.msra.mxu0 %v1055
    %2350 = vmatpush.msra.mxu0 %v1047
    %2351 = vmatpush.msra.mxu0 %v1039
    %2352 = vmatmul.f32.gmra.mxu0 %v391
    %v2353 = vpop.f32.mrf.mxu0
    %v2354 = vadd.f32 %v2334, %v2353
    %2355 = vdwg.mxu0
    %2356 = vmatpush.msra.mxu0 %v1287
    %2357 = vmatpush.msra.mxu0 %v1279
    %2358 = vmatpush.msra.mxu0 %v1271
    %2359 = vmatpush.msra.mxu0 %v1263
    %2360 = vmatpush.msra.mxu0 %v1255
    %2361 = vmatpush.msra.mxu0 %v1247
    %2362 = vmatpush.msra.mxu0 %v1239
    %2363 = vmatpush.msra.mxu0 %v1231
    %2364 = vmatpush.msra.mxu0 %v1223
    %2365 = vmatpush.msra.mxu0 %v1215
    %2366 = vmatpush.msra.mxu0 %v1207
    %2367 = vmatpush.msra.mxu0 %v1199
    %2368 = vmatpush.msra.mxu0 %v1191
    %2369 = vmatpush.msra.mxu0 %v1183
    %2370 = vmatpush.msra.mxu0 %v1175
    %2371 = vmatpush.msra.mxu0 %v1167
    %2372 = vmatmul.f32.gmra.mxu0 %v392
    %v2373 = vpop.f32.mrf.mxu0
    %v2374 = vadd.f32 %v2354, %v2373
    %2375 = vdwg.mxu0
    %2376 = vmatpush.msra.mxu0 %v1415
    %2377 = vmatpush.msra.mxu0 %v1407
    %2378 = vmatpush.msra.mxu0 %v1399
    %2379 = vmatpush.msra.mxu0 %v1391
    %2380 = vmatpush.msra.mxu0 %v1383
    %2381 = vmatpush.msra.mxu0 %v1375
    %2382 = vmatpush.msra.mxu0 %v1367
    %2383 = vmatpush.msra.mxu0 %v1359
    %2384 = vmatpush.msra.mxu0 %v1351
    %2385 = vmatpush.msra.mxu0 %v1343
    %2386 = vmatpush.msra.mxu0 %v1335
    %2387 = vmatpush.msra.mxu0 %v1327
    %2388 = vmatpush.msra.mxu0 %v1319
    %2389 = vmatpush.msra.mxu0 %v1311
    %2390 = vmatpush.msra.mxu0 %v1303
    %2391 = vmatpush.msra.mxu0 %v1295
    %2392 = vmatmul.f32.gmra.mxu0 %v393
    %v2393 = vpop.f32.mrf.mxu0
    %v2394 = vadd.f32 %v2374, %v2393
    %2395 = vdwg.mxu0
    %2396 = vmatpush.msra.mxu0 %v520
    %2397 = vmatpush.msra.mxu0 %v512
    %2398 = vmatpush.msra.mxu0 %v504
    %2399 = vmatpush.msra.mxu0 %v496
    %2400 = vmatpush.msra.mxu0 %v488
    %2401 = vmatpush.msra.mxu0 %v480
    %2402 = vmatpush.msra.mxu0 %v472
    %2403 = vmatpush.msra.mxu0 %v464
    %2404 = vmatpush.msra.mxu0 %v456
    %2405 = vmatpush.msra.mxu0 %v448
    %2406 = vmatpush.msra.mxu0 %v440
    %2407 = vmatpush.msra.mxu0 %v432
    %2408 = vmatpush.msra.mxu0 %v424
    %2409 = vmatpush.msra.mxu0 %v416
    %2410 = vmatpush.msra.mxu0 %v408
    %2411 = vmatpush.msra.mxu0 %v400
    %2412 = vmatmul.f32.gmra.mxu0 %v386
    %v2413 = vpop.f32.mrf.mxu0
    %v2414 = vadd.f32 %v1426, %v2413
    %2415 = vdwg.mxu0
    %2416 = vmatpush.msra.mxu0 %v648
    %2417 = vmatpush.msra.mxu0 %v640
    %2418 = vmatpush.msra.mxu0 %v632
    %2419 = vmatpush.msra.mxu0 %v624
    %2420 = vmatpush.msra.mxu0 %v616
    %2421 = vmatpush.msra.mxu0 %v608
    %2422 = vmatpush.msra.mxu0 %v600
    %2423 = vmatpush.msra.mxu0 %v592
    %2424 = vmatpush.msra.mxu0 %v584
    %2425 = vmatpush.msra.mxu0 %v576
    %2426 = vmatpush.msra.mxu0 %v568
    %2427 = vmatpush.msra.mxu0 %v560
    %2428 = vmatpush.msra.mxu0 %v552
    %2429 = vmatpush.msra.mxu0 %v544
    %2430 = vmatpush.msra.mxu0 %v536
    %2431 = vmatpush.msra.mxu0 %v528
    %2432 = vmatmul.f32.gmra.mxu0 %v387
    %v2433 = vpop.f32.mrf.mxu0
    %v2434 = vadd.f32 %v2414, %v2433
    %2435 = vdwg.mxu0
    %2436 = vmatpush.msra.mxu0 %v776
    %2437 = vmatpush.msra.mxu0 %v768
    %2438 = vmatpush.msra.mxu0 %v760
    %2439 = vmatpush.msra.mxu0 %v752
    %2440 = vmatpush.msra.mxu0 %v744
    %2441 = vmatpush.msra.mxu0 %v736
    %2442 = vmatpush.msra.mxu0 %v728
    %2443 = vmatpush.msra.mxu0 %v720
    %2444 = vmatpush.msra.mxu0 %v712
    %2445 = vmatpush.msra.mxu0 %v704
    %2446 = vmatpush.msra.mxu0 %v696
    %2447 = vmatpush.msra.mxu0 %v688
    %2448 = vmatpush.msra.mxu0 %v680
    %2449 = vmatpush.msra.mxu0 %v672
    %2450 = vmatpush.msra.mxu0 %v664
    %2451 = vmatpush.msra.mxu0 %v656
    %2452 = vmatmul.f32.gmra.mxu0 %v388
    %v2453 = vpop.f32.mrf.mxu0
    %v2454 = vadd.f32 %v2434, %v2453
    %2455 = vdwg.mxu0
    %2456 = vmatpush.msra.mxu0 %v904
    %2457 = vmatpush.msra.mxu0 %v896
    %2458 = vmatpush.msra.mxu0 %v888
    %2459 = vmatpush.msra.mxu0 %v880
    %2460 = vmatpush.msra.mxu0 %v872
    %2461 = vmatpush.msra.mxu0 %v864
    %2462 = vmatpush.msra.mxu0 %v856
    %2463 = vmatpush.msra.mxu0 %v848
    %2464 = vmatpush.msra.mxu0 %v840
    %2465 = vmatpush.msra.mxu0 %v832
    %2466 = vmatpush.msra.mxu0 %v824
    %2467 = vmatpush.msra.mxu0 %v816
    %2468 = vmatpush.msra.mxu0 %v808
    %2469 = vmatpush.msra.mxu0 %v800
    %2470 = vmatpush.msra.mxu0 %v792
    %2471 = vmatpush.msra.mxu0 %v784
    %2472 = vmatmul.f32.gmra.mxu0 %v389
    %v2473 = vpop.f32.mrf.mxu0
    %v2474 = vadd.f32 %v2454, %v2473
    %2475 = vdwg.mxu0
    %2476 = vmatpush.msra.mxu0 %v1032
    %2477 = vmatpush.msra.mxu0 %v1024
    %2478 = vmatpush.msra.mxu0 %v1016
    %2479 = vmatpush.msra.mxu0 %v1008
    %2480 = vmatpush.msra.mxu0 %v1000
    %2481 = vmatpush.msra.mxu0 %v992
    %2482 = vmatpush.msra.mxu0 %v984
    %2483 = vmatpush.msra.mxu0 %v976
    %2484 = vmatpush.msra.mxu0 %v968
    %2485 = vmatpush.msra.mxu0 %v960
    %2486 = vmatpush.msra.mxu0 %v952
    %2487 = vmatpush.msra.mxu0 %v944
    %2488 = vmatpush.msra.mxu0 %v936
    %2489 = vmatpush.msra.mxu0 %v928
    %2490 = vmatpush.msra.mxu0 %v920
    %2491 = vmatpush.msra.mxu0 %v912
    %2492 = vmatmul.f32.gmra.mxu0 %v390
    %v2493 = vpop.f32.mrf.mxu0
    %v2494 = vadd.f32 %v2474, %v2493
    %2495 = vdwg.mxu0
    %2496 = vmatpush.msra.mxu0 %v1160
    %2497 = vmatpush.msra.mxu0 %v1152
    %2498 = vmatpush.msra.mxu0 %v1144
    %2499 = vmatpush.msra.mxu0 %v1136
    %2500 = vmatpush.msra.mxu0 %v1128
    %2501 = vmatpush.msra.mxu0 %v1120
    %2502 = vmatpush.msra.mxu0 %v1112
    %2503 = vmatpush.msra.mxu0 %v1104
    %2504 = vmatpush.msra.mxu0 %v1096
    %2505 = vmatpush.msra.mxu0 %v1088
    %2506 = vmatpush.msra.mxu0 %v1080
    %2507 = vmatpush.msra.mxu0 %v1072
    %2508 = vmatpush.msra.mxu0 %v1064
    %2509 = vmatpush.msra.mxu0 %v1056
    %2510 = vmatpush.msra.mxu0 %v1048
    %2511 = vmatpush.msra.mxu0 %v1040
    %2512 = vmatmul.f32.gmra.mxu0 %v391
    %v2513 = vpop.f32.mrf.mxu0
    %v2514 = vadd.f32 %v2494, %v2513
    %2515 = vdwg.mxu0
    %2516 = vmatpush.msra.mxu0 %v1288
    %2517 = vmatpush.msra.mxu0 %v1280
    %2518 = vmatpush.msra.mxu0 %v1272
    %2519 = vmatpush.msra.mxu0 %v1264
    %2520 = vmatpush.msra.mxu0 %v1256
    %2521 = vmatpush.msra.mxu0 %v1248
    %2522 = vmatpush.msra.mxu0 %v1240
    %2523 = vmatpush.msra.mxu0 %v1232
    %2524 = vmatpush.msra.mxu0 %v1224
    %2525 = vmatpush.msra.mxu0 %v1216
    %2526 = vmatpush.msra.mxu0 %v1208
    %2527 = vmatpush.msra.mxu0 %v1200
    %2528 = vmatpush.msra.mxu0 %v1192
    %2529 = vmatpush.msra.mxu0 %v1184
    %2530 = vmatpush.msra.mxu0 %v1176
    %2531 = vmatpush.msra.mxu0 %v1168
    %2532 = vmatmul.f32.gmra.mxu0 %v392
    %v2533 = vpop.f32.mrf.mxu0
    %v2534 = vadd.f32 %v2514, %v2533
    %2535 = vdwg.mxu0
    %2536 = vmatpush.msra.mxu0 %v1416
    %2537 = vmatpush.msra.mxu0 %v1408
    %2538 = vmatpush.msra.mxu0 %v1400
    %2539 = vmatpush.msra.mxu0 %v1392
    %2540 = vmatpush.msra.mxu0 %v1384
    %2541 = vmatpush.msra.mxu0 %v1376
    %2542 = vmatpush.msra.mxu0 %v1368
    %2543 = vmatpush.msra.mxu0 %v1360
    %2544 = vmatpush.msra.mxu0 %v1352
    %2545 = vmatpush.msra.mxu0 %v1344
    %2546 = vmatpush.msra.mxu0 %v1336
    %2547 = vmatpush.msra.mxu0 %v1328
    %2548 = vmatpush.msra.mxu0 %v1320
    %2549 = vmatpush.msra.mxu0 %v1312
    %2550 = vmatpush.msra.mxu0 %v1304
    %2551 = vmatpush.msra.mxu0 %v1296
    %2552 = vmatmul.f32.gmra.mxu0 %v393
    %v2553 = vpop.f32.mrf.mxu0
    %v2554 = vadd.f32 %v2534, %v2553
    %2555 = vdwg.mxu0
    %2556 = vmatpush.msra.mxu0 %v521
    %2557 = vmatpush.msra.mxu0 %v513
    %2558 = vmatpush.msra.mxu0 %v505
    %2559 = vmatpush.msra.mxu0 %v497
    %2560 = vmatpush.msra.mxu0 %v489
    %2561 = vmatpush.msra.mxu0 %v481
    %2562 = vmatpush.msra.mxu0 %v473
    %2563 = vmatpush.msra.mxu0 %v465
    %2564 = vmatpush.msra.mxu0 %v457
    %2565 = vmatpush.msra.mxu0 %v449
    %2566 = vmatpush.msra.mxu0 %v441
    %2567 = vmatpush.msra.mxu0 %v433
    %2568 = vmatpush.msra.mxu0 %v425
    %2569 = vmatpush.msra.mxu0 %v417
    %2570 = vmatpush.msra.mxu0 %v409
    %2571 = vmatpush.msra.mxu0 %v401
    %2572 = vmatmul.f32.gmra.mxu0 %v386
    %v2573 = vpop.f32.mrf.mxu0
    %v2574 = vadd.f32 %v1427, %v2573
    %2575 = vdwg.mxu0
    %2576 = vmatpush.msra.mxu0 %v649
    %2577 = vmatpush.msra.mxu0 %v641
    %2578 = vmatpush.msra.mxu0 %v633
    %2579 = vmatpush.msra.mxu0 %v625
    %2580 = vmatpush.msra.mxu0 %v617
    %2581 = vmatpush.msra.mxu0 %v609
    %2582 = vmatpush.msra.mxu0 %v601
    %2583 = vmatpush.msra.mxu0 %v593
    %2584 = vmatpush.msra.mxu0 %v585
    %2585 = vmatpush.msra.mxu0 %v577
    %2586 = vmatpush.msra.mxu0 %v569
    %2587 = vmatpush.msra.mxu0 %v561
    %2588 = vmatpush.msra.mxu0 %v553
    %2589 = vmatpush.msra.mxu0 %v545
    %2590 = vmatpush.msra.mxu0 %v537
    %2591 = vmatpush.msra.mxu0 %v529
    %2592 = vmatmul.f32.gmra.mxu0 %v387
    %v2593 = vpop.f32.mrf.mxu0
    %v2594 = vadd.f32 %v2574, %v2593
    %2595 = vdwg.mxu0
    %2596 = vmatpush.msra.mxu0 %v777
    %2597 = vmatpush.msra.mxu0 %v769
    %2598 = vmatpush.msra.mxu0 %v761
    %2599 = vmatpush.msra.mxu0 %v753
    %2600 = vmatpush.msra.mxu0 %v745
    %2601 = vmatpush.msra.mxu0 %v737
    %2602 = vmatpush.msra.mxu0 %v729
    %2603 = vmatpush.msra.mxu0 %v721
    %2604 = vmatpush.msra.mxu0 %v713
    %2605 = vmatpush.msra.mxu0 %v705
    %2606 = vmatpush.msra.mxu0 %v697
    %2607 = vmatpush.msra.mxu0 %v689
    %2608 = vmatpush.msra.mxu0 %v681
    %2609 = vmatpush.msra.mxu0 %v673
    %2610 = vmatpush.msra.mxu0 %v665
    %2611 = vmatpush.msra.mxu0 %v657
    %2612 = vmatmul.f32.gmra.mxu0 %v388
    %v2613 = vpop.f32.mrf.mxu0
    %v2614 = vadd.f32 %v2594, %v2613
    %2615 = vdwg.mxu0
    %2616 = vmatpush.msra.mxu0 %v905
    %2617 = vmatpush.msra.mxu0 %v897
    %2618 = vmatpush.msra.mxu0 %v889
    %2619 = vmatpush.msra.mxu0 %v881
    %2620 = vmatpush.msra.mxu0 %v873
    %2621 = vmatpush.msra.mxu0 %v865
    %2622 = vmatpush.msra.mxu0 %v857
    %2623 = vmatpush.msra.mxu0 %v849
    %2624 = vmatpush.msra.mxu0 %v841
    %2625 = vmatpush.msra.mxu0 %v833
    %2626 = vmatpush.msra.mxu0 %v825
    %2627 = vmatpush.msra.mxu0 %v817
    %2628 = vmatpush.msra.mxu0 %v809
    %2629 = vmatpush.msra.mxu0 %v801
    %2630 = vmatpush.msra.mxu0 %v793
    %2631 = vmatpush.msra.mxu0 %v785
    %2632 = vmatmul.f32.gmra.mxu0 %v389
    %v2633 = vpop.f32.mrf.mxu0
    %v2634 = vadd.f32 %v2614, %v2633
    %2635 = vdwg.mxu0
    %2636 = vmatpush.msra.mxu0 %v1033
    %2637 = vmatpush.msra.mxu0 %v1025
    %2638 = vmatpush.msra.mxu0 %v1017
    %2639 = vmatpush.msra.mxu0 %v1009
    %2640 = vmatpush.msra.mxu0 %v1001
    %2641 = vmatpush.msra.mxu0 %v993
    %2642 = vmatpush.msra.mxu0 %v985
    %2643 = vmatpush.msra.mxu0 %v977
    %2644 = vmatpush.msra.mxu0 %v969
    %2645 = vmatpush.msra.mxu0 %v961
    %2646 = vmatpush.msra.mxu0 %v953
    %2647 = vmatpush.msra.mxu0 %v945
    %2648 = vmatpush.msra.mxu0 %v937
    %2649 = vmatpush.msra.mxu0 %v929
    %2650 = vmatpush.msra.mxu0 %v921
    %2651 = vmatpush.msra.mxu0 %v913
    %2652 = vmatmul.f32.gmra.mxu0 %v390
    %v2653 = vpop.f32.mrf.mxu0
    %v2654 = vadd.f32 %v2634, %v2653
    %2655 = vdwg.mxu0
    %2656 = vmatpush.msra.mxu0 %v1161
    %2657 = vmatpush.msra.mxu0 %v1153
    %2658 = vmatpush.msra.mxu0 %v1145
    %2659 = vmatpush.msra.mxu0 %v1137
    %2660 = vmatpush.msra.mxu0 %v1129
    %2661 = vmatpush.msra.mxu0 %v1121
    %2662 = vmatpush.msra.mxu0 %v1113
    %2663 = vmatpush.msra.mxu0 %v1105
    %2664 = vmatpush.msra.mxu0 %v1097
    %2665 = vmatpush.msra.mxu0 %v1089
    %2666 = vmatpush.msra.mxu0 %v1081
    %2667 = vmatpush.msra.mxu0 %v1073
    %2668 = vmatpush.msra.mxu0 %v1065
    %2669 = vmatpush.msra.mxu0 %v1057
    %2670 = vmatpush.msra.mxu0 %v1049
    %2671 = vmatpush.msra.mxu0 %v1041
    %2672 = vmatmul.f32.gmra.mxu0 %v391
    %v2673 = vpop.f32.mrf.mxu0
    %v2674 = vadd.f32 %v2654, %v2673
    %2675 = vdwg.mxu0
    %2676 = vmatpush.msra.mxu0 %v1289
    %2677 = vmatpush.msra.mxu0 %v1281
    %2678 = vmatpush.msra.mxu0 %v1273
    %2679 = vmatpush.msra.mxu0 %v1265
    %2680 = vmatpush.msra.mxu0 %v1257
    %2681 = vmatpush.msra.mxu0 %v1249
    %2682 = vmatpush.msra.mxu0 %v1241
    %2683 = vmatpush.msra.mxu0 %v1233
    %2684 = vmatpush.msra.mxu0 %v1225
    %2685 = vmatpush.msra.mxu0 %v1217
    %2686 = vmatpush.msra.mxu0 %v1209
    %2687 = vmatpush.msra.mxu0 %v1201
    %2688 = vmatpush.msra.mxu0 %v1193
    %2689 = vmatpush.msra.mxu0 %v1185
    %2690 = vmatpush.msra.mxu0 %v1177
    %2691 = vmatpush.msra.mxu0 %v1169
    %2692 = vmatmul.f32.gmra.mxu0 %v392
    %v2693 = vpop.f32.mrf.mxu0
    %v2694 = vadd.f32 %v2674, %v2693
    %2695 = vdwg.mxu0
    %2696 = vmatpush.msra.mxu0 %v1417
    %2697 = vmatpush.msra.mxu0 %v1409
    %2698 = vmatpush.msra.mxu0 %v1401
    %2699 = vmatpush.msra.mxu0 %v1393
    %2700 = vmatpush.msra.mxu0 %v1385
    %2701 = vmatpush.msra.mxu0 %v1377
    %2702 = vmatpush.msra.mxu0 %v1369
    %2703 = vmatpush.msra.mxu0 %v1361
    %2704 = vmatpush.msra.mxu0 %v1353
    %2705 = vmatpush.msra.mxu0 %v1345
    %2706 = vmatpush.msra.mxu0 %v1337
    %2707 = vmatpush.msra.mxu0 %v1329
    %2708 = vmatpush.msra.mxu0 %v1321
    %2709 = vmatpush.msra.mxu0 %v1313
    %2710 = vmatpush.msra.mxu0 %v1305
    %2711 = vmatpush.msra.mxu0 %v1297
    %2712 = vmatmul.f32.gmra.mxu0 %v393
    %v2713 = vpop.f32.mrf.mxu0
    %v2714 = vadd.f32 %v2694, %v2713
    %2715 = vdwg.mxu0
    %v2716 = vmax.f32 %v1594, 0.0
    %v2717 = vmax.f32 %v1754, 0.0
    %v2718 = vmax.f32 %v1914, 0.0
    %v2719 = vmax.f32 %v2074, 0.0
    %v2720 = vmax.f32 %v2234, 0.0
    %v2721 = vmax.f32 %v2394, 0.0
    %v2722 = vmax.f32 %v2554, 0.0
    %v2723 = vmax.f32 %v2714, 0.0
    %2724 = vst [vmem:[%s5] sm:$0xff] %v2716
    %2725 = vst [vmem:[%s5 + $0x8] sm:$0xff] %v2717
    %2726 = vst [vmem:[%s5 + $0x10] sm:$0xff] %v2718
    %2727 = vst [vmem:[%s5 + $0x18] sm:$0xff] %v2719
    %2728 = vst [vmem:[%s5 + $0x20] sm:$0xff] %v2720
    %2729 = vst [vmem:[%s5 + $0x28] sm:$0xff] %v2721
    %2730 = vst [vmem:[%s5 + $0x30] sm:$0xff] %v2722
    %2731 = vst [vmem:[%s5 + $0x38] sm:$0xff] %v2723
    // Predicated region
    $region38: #{fc_decoder.2} parent=1 // pred_check
      _
    $region39: #{fc_decoder.2} parent=1 // pred_check_branch
      %2733 = sbr.rel (0) target = $region41
    $region40: #{fc_decoder.2} parent=1 // pred_region
      _
    $region41: #{fc_decoder.2} parent=1 // pred_fallthru
      _
    // Predicated region
    $region42: #{fc_decoder.2} parent=1 // pred_check
      _
    $region43: #{fc_decoder.2} parent=1 // pred_check_branch
      %2735 = sbr.rel (0) target = $region45
    $region44: #{fc_decoder.2} parent=1 // pred_region
      _
    $region45: #{fc_decoder.2} parent=1 // pred_fallthru
      _
    %2736 = vsyncpa [#allocation3], 1
    %2737 = vsyncpa [#allocation5], 1
    %2738 = vsyncpa [#allocation8], 1

</llo_original>
